<compile_context>
chip_gen: v6e
topology: v6e:2x2x1
jax: 0.10.0
libtpu: 0.0.40
codegen_flags: <defaults>
</compile_context>

<pallas_src>
import jax
import jax.numpy as jnp
from jax import lax
from jax.experimental import pallas as pl
from jax.experimental.pallas import tpu as pltpu


_LP = 8  # left zero-pad (columns) of the conv1 scratch: keeps the interior
         # store sublane-aligned while still providing the pad=1 column.


# ------------------------------ fused kernel -------------------------------

def _bottleneck_kernel(x_ref, w1_ref, b1_ref, w2_ref, b2_ref, w3_ref, b3_ref,
                       o_ref, pad_ref):
    # x_ref   : (1, H, W, Cin)   full image, resident across the h grid axis
    # w1_ref  : (Cin, C1)        conv1 1x1, BN1 scale folded in
    # b1_ref  : (1, C1)
    # w2_ref  : (9, C1, C1)      conv2 3x3 taps (dy*3+dx), BN2 scale folded in
    # b2_ref  : (1, C1)
    # w3_ref  : (C1, Cout)       conv3 1x1, BN3 scale folded in
    # b3_ref  : (1, Cout)
    # o_ref   : (1, TH, W, Cout) output row tile
    # pad_ref : (TH+2, W+16, C1) VMEM scratch: zero-padded conv1 row tile
    h = pl.program_id(1)
    W, Cin = x_ref.shape[2], x_ref.shape[3]
    TH = o_ref.shape[1]
    C1 = w1_ref.shape[1]
    Cout = w3_ref.shape[1]
    row0 = pl.multiple_of(h * TH, TH)

    def conv1(v2d):  # (M, Cin) -> relu(v2d @ w1 + b1), float32 (M, C1)
        y = jnp.dot(v2d, w1_ref[...], preferred_element_type=jnp.float32)
        return jnp.maximum(y + b1_ref[...], 0.0)

    # ---- conv1 + bn1 + relu into a zero-padded VMEM tile (pad=1 for 3x3) --
    x_tile = x_ref[0, pl.ds(row0, TH), :, :]              # (TH, W, Cin)
    x2d = x_tile.reshape(TH * W, Cin)
    pad_ref[...] = jnp.zeros_like(pad_ref)
    pad_ref[1:TH + 1, _LP:_LP + W, :] = conv1(x2d).reshape(TH, W, C1)

    @pl.when(h > 0)                        # recompute halo row above the tile
    def _():
        top = x_ref[0, pl.ds(row0 - 1, 1), :, :].reshape(W, Cin)
        pad_ref[0:1, _LP:_LP + W, :] = conv1(top).reshape(1, W, C1)

    @pl.when(h < pl.num_programs(1) - 1)   # recompute halo row below the tile
    def _():
        bot = x_ref[0, pl.ds(row0 + TH, 1), :, :].reshape(W, Cin)
        pad_ref[TH + 1:TH + 2, _LP:_LP + W, :] = conv1(bot).reshape(1, W, C1)

    # ---- conv2 (3x3, stride=1, pad=1) + bn2 + relu -------------------------
    # 9 shifted-window MXU matmuls accumulating in f32 (all from VMEM).
    acc = jnp.zeros((TH * W, C1), jnp.float32)
    for dy in range(3):
        for dx in range(3):
            win = pad_ref[dy:dy + TH, _LP - 1 + dx:_LP - 1 + dx + W, :]
            acc = acc + jnp.dot(win.reshape(TH * W, C1), w2_ref[dy * 3 + dx],
                                preferred_element_type=jnp.float32)
    y2 = jnp.maximum(acc + b2_ref[...], 0.0)

    # ---- conv3 + bn3 + residual + relu (downsample=None: residual = x) -----
    y3 = jnp.dot(y2, w3_ref[...], preferred_element_type=jnp.float32)
    y3 = jnp.maximum(y3 + b3_ref[...] + x2d.astype(jnp.float32), 0.0)
    o_ref[...] = y3.reshape(1, TH, W, Cout).astype(o_ref.dtype)


# --------------------------------- wrapper ---------------------------------

def bottleneck_forward(x, w1, s1, b1, w2, s2, b2, w3, s3, b3, *, tile_h=8):
    """Fused Bottleneck forward (inference-mode BN).  x is NHWC."""
    N, H, W, Cin = x.shape
    C1 = w1.shape[1]
    Cout = w3.shape[1]
    # downsample=None in the reference module: stride=1 and matching shapes.
    assert w1.shape == (Cin, C1)
    assert w2.shape == (3, 3, C1, C1), "conv2 must be 3x3 (stride=1, pad=1)"
    assert w3.shape == (C1, Cout)
    assert Cout == Cin, "downsample=None requires inplanes == planes*expansion"

    TH = tile_h if (H % tile_h == 0) else H   # rows per grid step
    HT = H // TH

    # Fold inference-mode BN scale into the conv weights (host side, free).
    f32 = jnp.float32
    w1f = (w1 * s1[None, :]).astype(f32)
    w2f = (w2 * s2[None, None, None, :]).reshape(9, C1, C1).astype(f32)
    w3f = (w3 * s3[None, :]).astype(f32)

    out = pl.pallas_call(
        _bottleneck_kernel,
        out_shape=jax.ShapeDtypeStruct((N, H, W, Cout), f32),
        grid=(N, HT),
        in_specs=[
            # Full image per n; the block index ignores h, so x is DMA'd once
            # per image and stays resident in VMEM for conv1, the halo rows
            # and the residual add.
            pl.BlockSpec((1, H, W, Cin), lambda n, h: (n, 0, 0, 0)),
            pl.BlockSpec((Cin, C1), lambda n, h: (0, 0)),
            pl.BlockSpec((1, C1), lambda n, h: (0, 0)),
            pl.BlockSpec((9, C1, C1), lambda n, h: (0, 0, 0)),
            pl.BlockSpec((1, C1), lambda n, h: (0, 0)),
            pl.BlockSpec((C1, Cout), lambda n, h: (0, 0)),
            pl.BlockSpec((1, Cout), lambda n, h: (0, 0)),
        ],
        out_specs=pl.BlockSpec((1, TH, W, Cout), lambda n, h: (n, h, 0, 0)),
        scratch_shapes=[pltpu.VMEM((TH + 2, W + 16, C1), f32)],
        compiler_params=pltpu.CompilerParams(
            dimension_semantics=("parallel", "arbitrary"),
            vmem_limit_bytes=32 * 1024 * 1024,
        ),
    )(x, w1f, b1.reshape(1, C1).astype(f32), w2f, b2.reshape(1, C1).astype(f32),
      w3f, b3.reshape(1, Cout).astype(f32))
    return out


# ------------------------- pure-JAX reference check -------------------------

def bottleneck_ref(x, w1, s1, b1, w2, s2, b2, w3, s3, b3):
    y = jnp.einsum('nhwc,co->nhwo', x, w1) * s1 + b1
    y = jnp.maximum(y, 0.0)
    y = lax.conv_general_dilated(
        y, w2, window_strides=(1, 1), padding=((1, 1), (1, 1)),
        dimension_numbers=('NHWC', 'HWIO', 'NHWC')) * s2 + b2
    y = jnp.maximum(y, 0.0)
    y = jnp.einsum('nhwc,co->nhwo', y, w3) * s3 + b3
    return jnp.maximum(y + x, 0.0)


# ----------------------------------- main -----------------------------------

if __name__ == "__main__":
    key = jax.random.PRNGKey(0)
    planes = 4
    expansion = 4
    inplanes = planes * expansion      # 16: residual matches (downsample=None)
    N, H, W = 2, 16, 16

    keys = jax.random.split(key, 8)
    x = jax.random.normal(keys[0], (N, H, W, inplanes), jnp.float32)

    # Conv weights (bias=False): 1x1 stored as (Cin, Cout), 3x3 as HWIO.
    w1 = 0.2 * jax.random.normal(keys[1], (inplanes, planes), jnp.float32)
    w2 = 0.2 * jax.random.normal(keys[2], (3, 3, planes, planes), jnp.float32)
    w3 = 0.2 * jax.random.normal(keys[3], (planes, inplanes), jnp.float32)

    # BatchNorm in inference mode, folded to per-channel scale/bias.
    # TODO(synk): training-mode BN (batch statistics / running-stat updates)
    # is not implemented.
    def bn_params(k, c, eps=1e-5):
        k1, k2, k3, k4 = jax.random.split(k, 4)
        gamma = jax.random.uniform(k1, (c,), minval=0.5, maxval=1.5)
        beta = 0.1 * jax.random.normal(k2, (c,))
        mean = 0.1 * jax.random.normal(k3, (c,))
        var = jax.random.uniform(k4, (c,), minval=0.5, maxval=1.5)
        scale = gamma / jnp.sqrt(var + eps)
        bias = beta - mean * scale
        return scale.astype(jnp.float32), bias.astype(jnp.float32)

    s1, b1 = bn_params(keys[4], planes)
    s2, b2 = bn_params(keys[5], planes)
    s3, b3 = bn_params(keys[6], inplanes)

    out = bottleneck_forward(x, w1, s1, b1, w2, s2, b2, w3, s3, b3)
    out = jax.block_until_ready(out)

    ref = bottleneck_ref(x, w1, s1, b1, w2, s2, b2, w3, s3, b3)
    assert out.shape == (N, H, W, inplanes)
    err = float(jnp.max(jnp.abs(out - ref)))
    assert jnp.allclose(out, ref, atol=1e-4, rtol=1e-4), (
        f"mismatch vs reference: max abs err = {err}")

    print("KERNEL_OK")
</pallas_src>

<mosaic_0001>
module attributes {stable_mosaic.version = 11 : i64} {
  func.func @_bottleneck_kernel(%arg0: i32, %arg1: i32, %arg2: memref<1x16x16x16xf32, #tpu.memory_space<vmem>>, %arg3: memref<16x4xf32, #tpu.memory_space<vmem>>, %arg4: memref<1x4xf32, #tpu.memory_space<vmem>>, %arg5: memref<9x4x4xf32, #tpu.memory_space<vmem>>, %arg6: memref<1x4xf32, #tpu.memory_space<vmem>>, %arg7: memref<4x16xf32, #tpu.memory_space<vmem>>, %arg8: memref<1x16xf32, #tpu.memory_space<vmem>>, %arg9: memref<1x8x16x16xf32, #tpu.memory_space<vmem>>, %arg10: memref<10x32x4xf32, #tpu.memory_space<vmem>>) attributes {dimension_semantics = [#tpu.dimension_semantics<parallel>, #tpu.dimension_semantics<arbitrary>], iteration_bounds = array<i64: 2, 2>, scalar_prefetch = 0 : i64, scratch_operands = 1 : i64, tpu.core_type = #tpu.core_type<tc>, window_params = [{transform_indices = @transform_0, window_bounds = array<i64: 1, 16, 16, 16>}, {pipeline_mode = #tpu.pipeline_mode<synchronous>, transform_indices = @transform_1, window_bounds = array<i64: 16, 4>}, {pipeline_mode = #tpu.pipeline_mode<synchronous>, transform_indices = @transform_2, window_bounds = array<i64: 1, 4>}, {pipeline_mode = #tpu.pipeline_mode<synchronous>, transform_indices = @transform_3, window_bounds = array<i64: 9, 4, 4>}, {pipeline_mode = #tpu.pipeline_mode<synchronous>, transform_indices = @transform_4, window_bounds = array<i64: 1, 4>}, {pipeline_mode = #tpu.pipeline_mode<synchronous>, transform_indices = @transform_5, window_bounds = array<i64: 4, 16>}, {pipeline_mode = #tpu.pipeline_mode<synchronous>, transform_indices = @transform_6, window_bounds = array<i64: 1, 16>}, {transform_indices = @transform_7, window_bounds = array<i64: 1, 8, 16, 16>}]} {
    %c8_i32 = arith.constant 8 : i32
    %0 = arith.muli %arg1, %c8_i32 : i32
    %1 = tpu.assume_multiple %0, 8 : i32
    %c0 = arith.constant 0 : index
    %2 = arith.index_cast %1 : i32 to index
    %c0_0 = arith.constant 0 : index
    %c0_1 = arith.constant 0 : index
    %3 = vector.load %arg2[%c0, %2, %c0_0, %c0_1] : memref<1x16x16x16xf32, #tpu.memory_space<vmem>>, vector<1x8x16x16xf32>
    %4 = vector.shape_cast %3 : vector<1x8x16x16xf32> to vector<8x16x16xf32>
    %5 = vector.shape_cast %4 : vector<8x16x16xf32> to vector<128x16xf32>
    %cst = arith.constant 0.000000e+00 : f32
    %6 = vector.broadcast %cst : f32 to vector<10x32x4xf32>
    %c0_2 = arith.constant 0 : index
    %c0_3 = arith.constant 0 : index
    %c0_4 = arith.constant 0 : index
    %7 = vector.load %arg10[%c0_2, %c0_3, %c0_4] : memref<10x32x4xf32, #tpu.memory_space<vmem>>, vector<10x32x4xf32>
    tpu.vector_store %arg10[%c0_2, %c0_3, %c0_4], %6 {strides = array<i32>} : memref<10x32x4xf32, #tpu.memory_space<vmem>>, vector<10x32x4xf32>,
    %c0_5 = arith.constant 0 : index
    %c0_6 = arith.constant 0 : index
    %8 = vector.load %arg3[%c0_5, %c0_6] : memref<16x4xf32, #tpu.memory_space<vmem>>, vector<16x4xf32>
    %cst_7 = arith.constant dense<0.000000e+00> : vector<128x4xf32>
    %9 = tpu.matmul %5, %8, %cst_7 {dimension_numbers = #tpu.dot_dimension_numbers<[1], [0], [0], [1], [0, 0, 1, 1], [], []>} : vector<128x16xf32>, vector<16x4xf32>, vector<128x4xf32> -> vector<128x4xf32>
    %c0_8 = arith.constant 0 : index
    %c0_9 = arith.constant 0 : index
    %10 = vector.load %arg4[%c0_8, %c0_9] : memref<1x4xf32, #tpu.memory_space<vmem>>, vector<1x4xf32>
    %11 = vector.broadcast %10 : vector<1x4xf32> to vector<128x4xf32>
    %12 = arith.addf %9, %11 : vector<128x4xf32>
    %cst_10 = arith.constant 0.000000e+00 : f32
    %13 = vector.broadcast %cst_10 : f32 to vector<128x4xf32>
    %14 = arith.maximumf %12, %13 : vector<128x4xf32>
    %15 = vector.shape_cast %14 : vector<128x4xf32> to vector<8x16x4xf32>
    %c1 = arith.constant 1 : index
    %c8 = arith.constant 8 : index
    %c0_11 = arith.constant 0 : index
    %16 = vector.load %arg10[%c1, %c8, %c0_11] : memref<10x32x4xf32, #tpu.memory_space<vmem>>, vector<8x16x4xf32>
    tpu.vector_store %arg10[%c1, %c8, %c0_11], %15 {strides = array<i32>} : memref<10x32x4xf32, #tpu.memory_space<vmem>>, vector<8x16x4xf32>,
    %c0_i32 = arith.constant 0 : i32
    %17 = arith.cmpi sgt, %arg1, %c0_i32 : i32
    %18 = arith.extui %17 : i1 to i32
    %c0_i32_12 = arith.constant 0 : i32
    %19 = arith.cmpi ne, %18, %c0_i32_12 : i32
    scf.if %19 {
      %c1_i32_84 = arith.constant 1 : i32
      %93 = arith.subi %1, %c1_i32_84 : i32
      %c0_85 = arith.constant 0 : index
      %94 = arith.index_cast %93 : i32 to index
      %c0_86 = arith.constant 0 : index
      %c0_87 = arith.constant 0 : index
      %95 = vector.load %arg2[%c0_85, %94, %c0_86, %c0_87] : memref<1x16x16x16xf32, #tpu.memory_space<vmem>>, vector<1x1x16x16xf32>
      %96 = vector.shape_cast %95 : vector<1x1x16x16xf32> to vector<1x16x16xf32>
      %97 = vector.shape_cast %96 : vector<1x16x16xf32> to vector<16x16xf32>
      %c0_88 = arith.constant 0 : index
      %c0_89 = arith.constant 0 : index
      %98 = vector.load %arg3[%c0_88, %c0_89] : memref<16x4xf32, #tpu.memory_space<vmem>>, vector<16x4xf32>
      %cst_90 = arith.constant dense<0.000000e+00> : vector<16x4xf32>
      %99 = tpu.matmul %97, %98, %cst_90 {dimension_numbers = #tpu.dot_dimension_numbers<[1], [0], [0], [1], [0, 0, 1, 1], [], []>} : vector<16x16xf32>, vector<16x4xf32>, vector<16x4xf32> -> vector<16x4xf32>
      %c0_91 = arith.constant 0 : index
      %c0_92 = arith.constant 0 : index
      %100 = vector.load %arg4[%c0_91, %c0_92] : memref<1x4xf32, #tpu.memory_space<vmem>>, vector<1x4xf32>
      %101 = vector.broadcast %100 : vector<1x4xf32> to vector<16x4xf32>
      %102 = arith.addf %99, %101 : vector<16x4xf32>
      %cst_93 = arith.constant 0.000000e+00 : f32
      %103 = vector.broadcast %cst_93 : f32 to vector<16x4xf32>
      %104 = arith.maximumf %102, %103 : vector<16x4xf32>
      %105 = vector.shape_cast %104 : vector<16x4xf32> to vector<1x16x4xf32>
      %c0_94 = arith.constant 0 : index
      %c8_95 = arith.constant 8 : index
      %c0_96 = arith.constant 0 : index
      %106 = vector.load %arg10[%c0_94, %c8_95, %c0_96] : memref<10x32x4xf32, #tpu.memory_space<vmem>>, vector<1x16x4xf32>
      tpu.vector_store %arg10[%c0_94, %c8_95, %c0_96], %105 {strides = array<i32>} : memref<10x32x4xf32, #tpu.memory_space<vmem>>, vector<1x16x4xf32>,
    } else {
    }
    %c1_i32 = arith.constant 1 : i32
    %20 = arith.cmpi slt, %arg1, %c1_i32 : i32
    %21 = arith.extui %20 : i1 to i32
    %c0_i32_13 = arith.constant 0 : i32
    %22 = arith.cmpi ne, %21, %c0_i32_13 : i32
    scf.if %22 {
      %c8_i32_84 = arith.constant 8 : i32
      %93 = arith.addi %1, %c8_i32_84 : i32
      %c0_85 = arith.constant 0 : index
      %94 = arith.index_cast %93 : i32 to index
      %c0_86 = arith.constant 0 : index
      %c0_87 = arith.constant 0 : index
      %95 = vector.load %arg2[%c0_85, %94, %c0_86, %c0_87] : memref<1x16x16x16xf32, #tpu.memory_space<vmem>>, vector<1x1x16x16xf32>
      %96 = vector.shape_cast %95 : vector<1x1x16x16xf32> to vector<1x16x16xf32>
      %97 = vector.shape_cast %96 : vector<1x16x16xf32> to vector<16x16xf32>
      %c0_88 = arith.constant 0 : index
      %c0_89 = arith.constant 0 : index
      %98 = vector.load %arg3[%c0_88, %c0_89] : memref<16x4xf32, #tpu.memory_space<vmem>>, vector<16x4xf32>
      %cst_90 = arith.constant dense<0.000000e+00> : vector<16x4xf32>
      %99 = tpu.matmul %97, %98, %cst_90 {dimension_numbers = #tpu.dot_dimension_numbers<[1], [0], [0], [1], [0, 0, 1, 1], [], []>} : vector<16x16xf32>, vector<16x4xf32>, vector<16x4xf32> -> vector<16x4xf32>
      %c0_91 = arith.constant 0 : index
      %c0_92 = arith.constant 0 : index
      %100 = vector.load %arg4[%c0_91, %c0_92] : memref<1x4xf32, #tpu.memory_space<vmem>>, vector<1x4xf32>
      %101 = vector.broadcast %100 : vector<1x4xf32> to vector<16x4xf32>
      %102 = arith.addf %99, %101 : vector<16x4xf32>
      %cst_93 = arith.constant 0.000000e+00 : f32
      %103 = vector.broadcast %cst_93 : f32 to vector<16x4xf32>
      %104 = arith.maximumf %102, %103 : vector<16x4xf32>
      %105 = vector.shape_cast %104 : vector<16x4xf32> to vector<1x16x4xf32>
      %c9_94 = arith.constant 9 : index
      %c8_95 = arith.constant 8 : index
      %c0_96 = arith.constant 0 : index
      %106 = vector.load %arg10[%c9_94, %c8_95, %c0_96] : memref<10x32x4xf32, #tpu.memory_space<vmem>>, vector<1x16x4xf32>
      tpu.vector_store %arg10[%c9_94, %c8_95, %c0_96], %105 {strides = array<i32>} : memref<10x32x4xf32, #tpu.memory_space<vmem>>, vector<1x16x4xf32>,
    } else {
    }
    %cst_14 = arith.constant 0.000000e+00 : f32
    %23 = vector.broadcast %cst_14 : f32 to vector<128x4xf32>
    %c0_15 = arith.constant 0 : index
    %c7 = arith.constant 7 : index
    %c0_16 = arith.constant 0 : index
    %24 = vector.load %arg10[%c0_15, %c7, %c0_16] : memref<10x32x4xf32, #tpu.memory_space<vmem>>, vector<8x16x4xf32>
    %25 = vector.shape_cast %24 : vector<8x16x4xf32> to vector<128x4xf32>
    %c0_17 = arith.constant 0 : index
    %c0_18 = arith.constant 0 : index
    %c0_19 = arith.constant 0 : index
    %26 = vector.load %arg5[%c0_17, %c0_18, %c0_19] : memref<9x4x4xf32, #tpu.memory_space<vmem>>, vector<1x4x4xf32>
    %27 = vector.shape_cast %26 : vector<1x4x4xf32> to vector<4x4xf32>
    %cst_20 = arith.constant dense<0.000000e+00> : vector<128x4xf32>
    %28 = tpu.matmul %25, %27, %cst_20 {dimension_numbers = #tpu.dot_dimension_numbers<[1], [0], [0], [1], [0, 0, 1, 1], [], []>} : vector<128x4xf32>, vector<4x4xf32>, vector<128x4xf32> -> vector<128x4xf32>
    %29 = arith.addf %23, %28 : vector<128x4xf32>
    %c0_21 = arith.constant 0 : index
    %c8_22 = arith.constant 8 : index
    %c0_23 = arith.constant 0 : index
    %30 = vector.load %arg10[%c0_21, %c8_22, %c0_23] : memref<10x32x4xf32, #tpu.memory_space<vmem>>, vector<8x16x4xf32>
    %31 = vector.shape_cast %30 : vector<8x16x4xf32> to vector<128x4xf32>
    %c1_24 = arith.constant 1 : index
    %c0_25 = arith.constant 0 : index
    %c0_26 = arith.constant 0 : index
    %32 = vector.load %arg5[%c1_24, %c0_25, %c0_26] : memref<9x4x4xf32, #tpu.memory_space<vmem>>, vector<1x4x4xf32>
    %33 = vector.shape_cast %32 : vector<1x4x4xf32> to vector<4x4xf32>
    %cst_27 = arith.constant dense<0.000000e+00> : vector<128x4xf32>
    %34 = tpu.matmul %31, %33, %cst_27 {dimension_numbers = #tpu.dot_dimension_numbers<[1], [0], [0], [1], [0, 0, 1, 1], [], []>} : vector<128x4xf32>, vector<4x4xf32>, vector<128x4xf32> -> vector<128x4xf32>
    %35 = arith.addf %29, %34 : vector<128x4xf32>
    %c0_28 = arith.constant 0 : index
    %c9 = arith.constant 9 : index
    %c0_29 = arith.constant 0 : index
    %36 = vector.load %arg10[%c0_28, %c9, %c0_29] : memref<10x32x4xf32, #tpu.memory_space<vmem>>, vector<8x16x4xf32>
    %37 = vector.shape_cast %36 : vector<8x16x4xf32> to vector<128x4xf32>
    %c2 = arith.constant 2 : index
    %c0_30 = arith.constant 0 : index
    %c0_31 = arith.constant 0 : index
    %38 = vector.load %arg5[%c2, %c0_30, %c0_31] : memref<9x4x4xf32, #tpu.memory_space<vmem>>, vector<1x4x4xf32>
    %39 = vector.shape_cast %38 : vector<1x4x4xf32> to vector<4x4xf32>
    %cst_32 = arith.constant dense<0.000000e+00> : vector<128x4xf32>
    %40 = tpu.matmul %37, %39, %cst_32 {dimension_numbers = #tpu.dot_dimension_numbers<[1], [0], [0], [1], [0, 0, 1, 1], [], []>} : vector<128x4xf32>, vector<4x4xf32>, vector<128x4xf32> -> vector<128x4xf32>
    %41 = arith.addf %35, %40 : vector<128x4xf32>
    %c1_33 = arith.constant 1 : index
    %c7_34 = arith.constant 7 : index
    %c0_35 = arith.constant 0 : index
    %42 = vector.load %arg10[%c1_33, %c7_34, %c0_35] : memref<10x32x4xf32, #tpu.memory_space<vmem>>, vector<8x16x4xf32>
    %43 = vector.shape_cast %42 : vector<8x16x4xf32> to vector<128x4xf32>
    %c3 = arith.constant 3 : index
    %c0_36 = arith.constant 0 : index
    %c0_37 = arith.constant 0 : index
    %44 = vector.load %arg5[%c3, %c0_36, %c0_37] : memref<9x4x4xf32, #tpu.memory_space<vmem>>, vector<1x4x4xf32>
    %45 = vector.shape_cast %44 : vector<1x4x4xf32> to vector<4x4xf32>
    %cst_38 = arith.constant dense<0.000000e+00> : vector<128x4xf32>
    %46 = tpu.matmul %43, %45, %cst_38 {dimension_numbers = #tpu.dot_dimension_numbers<[1], [0], [0], [1], [0, 0, 1, 1], [], []>} : vector<128x4xf32>, vector<4x4xf32>, vector<128x4xf32> -> vector<128x4xf32>
    %47 = arith.addf %41, %46 : vector<128x4xf32>
    %c1_39 = arith.constant 1 : index
    %c8_40 = arith.constant 8 : index
    %c0_41 = arith.constant 0 : index
    %48 = vector.load %arg10[%c1_39, %c8_40, %c0_41] : memref<10x32x4xf32, #tpu.memory_space<vmem>>, vector<8x16x4xf32>
    %49 = vector.shape_cast %48 : vector<8x16x4xf32> to vector<128x4xf32>
    %c4 = arith.constant 4 : index
    %c0_42 = arith.constant 0 : index
    %c0_43 = arith.constant 0 : index
    %50 = vector.load %arg5[%c4, %c0_42, %c0_43] : memref<9x4x4xf32, #tpu.memory_space<vmem>>, vector<1x4x4xf32>
    %51 = vector.shape_cast %50 : vector<1x4x4xf32> to vector<4x4xf32>
    %cst_44 = arith.constant dense<0.000000e+00> : vector<128x4xf32>
    %52 = tpu.matmul %49, %51, %cst_44 {dimension_numbers = #tpu.dot_dimension_numbers<[1], [0], [0], [1], [0, 0, 1, 1], [], []>} : vector<128x4xf32>, vector<4x4xf32>, vector<128x4xf32> -> vector<128x4xf32>
    %53 = arith.addf %47, %52 : vector<128x4xf32>
    %c1_45 = arith.constant 1 : index
    %c9_46 = arith.constant 9 : index
    %c0_47 = arith.constant 0 : index
    %54 = vector.load %arg10[%c1_45, %c9_46, %c0_47] : memref<10x32x4xf32, #tpu.memory_space<vmem>>, vector<8x16x4xf32>
    %55 = vector.shape_cast %54 : vector<8x16x4xf32> to vector<128x4xf32>
    %c5 = arith.constant 5 : index
    %c0_48 = arith.constant 0 : index
    %c0_49 = arith.constant 0 : index
    %56 = vector.load %arg5[%c5, %c0_48, %c0_49] : memref<9x4x4xf32, #tpu.memory_space<vmem>>, vector<1x4x4xf32>
    %57 = vector.shape_cast %56 : vector<1x4x4xf32> to vector<4x4xf32>
    %cst_50 = arith.constant dense<0.000000e+00> : vector<128x4xf32>
    %58 = tpu.matmul %55, %57, %cst_50 {dimension_numbers = #tpu.dot_dimension_numbers<[1], [0], [0], [1], [0, 0, 1, 1], [], []>} : vector<128x4xf32>, vector<4x4xf32>, vector<128x4xf32> -> vector<128x4xf32>
    %59 = arith.addf %53, %58 : vector<128x4xf32>
    %c2_51 = arith.constant 2 : index
    %c7_52 = arith.constant 7 : index
    %c0_53 = arith.constant 0 : index
    %60 = vector.load %arg10[%c2_51, %c7_52, %c0_53] : memref<10x32x4xf32, #tpu.memory_space<vmem>>, vector<8x16x4xf32>
    %61 = vector.shape_cast %60 : vector<8x16x4xf32> to vector<128x4xf32>
    %c6 = arith.constant 6 : index
    %c0_54 = arith.constant 0 : index
    %c0_55 = arith.constant 0 : index
    %62 = vector.load %arg5[%c6, %c0_54, %c0_55] : memref<9x4x4xf32, #tpu.memory_space<vmem>>, vector<1x4x4xf32>
    %63 = vector.shape_cast %62 : vector<1x4x4xf32> to vector<4x4xf32>
    %cst_56 = arith.constant dense<0.000000e+00> : vector<128x4xf32>
    %64 = tpu.matmul %61, %63, %cst_56 {dimension_numbers = #tpu.dot_dimension_numbers<[1], [0], [0], [1], [0, 0, 1, 1], [], []>} : vector<128x4xf32>, vector<4x4xf32>, vector<128x4xf32> -> vector<128x4xf32>
    %65 = arith.addf %59, %64 : vector<128x4xf32>
    %c2_57 = arith.constant 2 : index
    %c8_58 = arith.constant 8 : index
    %c0_59 = arith.constant 0 : index
    %66 = vector.load %arg10[%c2_57, %c8_58, %c0_59] : memref<10x32x4xf32, #tpu.memory_space<vmem>>, vector<8x16x4xf32>
    %67 = vector.shape_cast %66 : vector<8x16x4xf32> to vector<128x4xf32>
    %c7_60 = arith.constant 7 : index
    %c0_61 = arith.constant 0 : index
    %c0_62 = arith.constant 0 : index
    %68 = vector.load %arg5[%c7_60, %c0_61, %c0_62] : memref<9x4x4xf32, #tpu.memory_space<vmem>>, vector<1x4x4xf32>
    %69 = vector.shape_cast %68 : vector<1x4x4xf32> to vector<4x4xf32>
    %cst_63 = arith.constant dense<0.000000e+00> : vector<128x4xf32>
    %70 = tpu.matmul %67, %69, %cst_63 {dimension_numbers = #tpu.dot_dimension_numbers<[1], [0], [0], [1], [0, 0, 1, 1], [], []>} : vector<128x4xf32>, vector<4x4xf32>, vector<128x4xf32> -> vector<128x4xf32>
    %71 = arith.addf %65, %70 : vector<128x4xf32>
    %c2_64 = arith.constant 2 : index
    %c9_65 = arith.constant 9 : index
    %c0_66 = arith.constant 0 : index
    %72 = vector.load %arg10[%c2_64, %c9_65, %c0_66] : memref<10x32x4xf32, #tpu.memory_space<vmem>>, vector<8x16x4xf32>
    %73 = vector.shape_cast %72 : vector<8x16x4xf32> to vector<128x4xf32>
    %c8_67 = arith.constant 8 : index
    %c0_68 = arith.constant 0 : index
    %c0_69 = arith.constant 0 : index
    %74 = vector.load %arg5[%c8_67, %c0_68, %c0_69] : memref<9x4x4xf32, #tpu.memory_space<vmem>>, vector<1x4x4xf32>
    %75 = vector.shape_cast %74 : vector<1x4x4xf32> to vector<4x4xf32>
    %cst_70 = arith.constant dense<0.000000e+00> : vector<128x4xf32>
    %76 = tpu.matmul %73, %75, %cst_70 {dimension_numbers = #tpu.dot_dimension_numbers<[1], [0], [0], [1], [0, 0, 1, 1], [], []>} : vector<128x4xf32>, vector<4x4xf32>, vector<128x4xf32> -> vector<128x4xf32>
    %77 = arith.addf %71, %76 : vector<128x4xf32>
    %c0_71 = arith.constant 0 : index
    %c0_72 = arith.constant 0 : index
    %78 = vector.load %arg6[%c0_71, %c0_72] : memref<1x4xf32, #tpu.memory_space<vmem>>, vector<1x4xf32>
    %79 = vector.broadcast %78 : vector<1x4xf32> to vector<128x4xf32>
    %80 = arith.addf %77, %79 : vector<128x4xf32>
    %cst_73 = arith.constant 0.000000e+00 : f32
    %81 = vector.broadcast %cst_73 : f32 to vector<128x4xf32>
    %82 = arith.maximumf %80, %81 : vector<128x4xf32>
    %c0_74 = arith.constant 0 : index
    %c0_75 = arith.constant 0 : index
    %83 = vector.load %arg7[%c0_74, %c0_75] : memref<4x16xf32, #tpu.memory_space<vmem>>, vector<4x16xf32>
    %cst_76 = arith.constant dense<0.000000e+00> : vector<128x16xf32>
    %84 = tpu.matmul %82, %83, %cst_76 {dimension_numbers = #tpu.dot_dimension_numbers<[1], [0], [0], [1], [0, 0, 1, 1], [], []>} : vector<128x4xf32>, vector<4x16xf32>, vector<128x16xf32> -> vector<128x16xf32>
    %c0_77 = arith.constant 0 : index
    %c0_78 = arith.constant 0 : index
    %85 = vector.load %arg8[%c0_77, %c0_78] : memref<1x16xf32, #tpu.memory_space<vmem>>, vector<1x16xf32>
    %86 = vector.broadcast %85 : vector<1x16xf32> to vector<128x16xf32>
    %87 = arith.addf %84, %86 : vector<128x16xf32>
    %88 = arith.addf %87, %5 : vector<128x16xf32>
    %cst_79 = arith.constant 0.000000e+00 : f32
    %89 = vector.broadcast %cst_79 : f32 to vector<128x16xf32>
    %90 = arith.maximumf %88, %89 : vector<128x16xf32>
    %91 = vector.shape_cast %90 : vector<128x16xf32> to vector<1x8x16x16xf32>
    %c0_80 = arith.constant 0 : index
    %c0_81 = arith.constant 0 : index
    %c0_82 = arith.constant 0 : index
    %c0_83 = arith.constant 0 : index
    %92 = vector.load %arg9[%c0_80, %c0_81, %c0_82, %c0_83] : memref<1x8x16x16xf32, #tpu.memory_space<vmem>>, vector<1x8x16x16xf32>
    tpu.vector_store %arg9[%c0_80, %c0_81, %c0_82, %c0_83], %91 {strides = array<i32>} : memref<1x8x16x16xf32, #tpu.memory_space<vmem>>, vector<1x8x16x16xf32>,
    return
  }
  func.func @transform_0(%arg0: i32, %arg1: i32) -> (i32, i32, i32, i32) {
    %c0_i32 = arith.constant 0 : i32
    %c0_i32_0 = arith.constant 0 : i32
    %c0_i32_1 = arith.constant 0 : i32
    %c0_i32_2 = arith.constant 0 : i32
    return %arg0, %c0_i32, %c0_i32_0, %c0_i32_1 : i32, i32, i32, i32
  }
  func.func @transform_1(%arg0: i32, %arg1: i32) -> (i32, i32) {
    %c0_i32 = arith.constant 0 : i32
    %c0_i32_0 = arith.constant 0 : i32
    %c0_i32_1 = arith.constant 0 : i32
    return %c0_i32, %c0_i32_0 : i32, i32
  }
  func.func @transform_2(%arg0: i32, %arg1: i32) -> (i32, i32) {
    %c0_i32 = arith.constant 0 : i32
    %c0_i32_0 = arith.constant 0 : i32
    %c0_i32_1 = arith.constant 0 : i32
    return %c0_i32, %c0_i32_0 : i32, i32
  }
  func.func @transform_3(%arg0: i32, %arg1: i32) -> (i32, i32, i32) {
    %c0_i32 = arith.constant 0 : i32
    %c0_i32_0 = arith.constant 0 : i32
    %c0_i32_1 = arith.constant 0 : i32
    %c0_i32_2 = arith.constant 0 : i32
    return %c0_i32, %c0_i32_0, %c0_i32_1 : i32, i32, i32
  }
  func.func @transform_4(%arg0: i32, %arg1: i32) -> (i32, i32) {
    %c0_i32 = arith.constant 0 : i32
    %c0_i32_0 = arith.constant 0 : i32
    %c0_i32_1 = arith.constant 0 : i32
    return %c0_i32, %c0_i32_0 : i32, i32
  }
  func.func @transform_5(%arg0: i32, %arg1: i32) -> (i32, i32) {
    %c0_i32 = arith.constant 0 : i32
    %c0_i32_0 = arith.constant 0 : i32
    %c0_i32_1 = arith.constant 0 : i32
    return %c0_i32, %c0_i32_0 : i32, i32
  }
  func.func @transform_6(%arg0: i32, %arg1: i32) -> (i32, i32) {
    %c0_i32 = arith.constant 0 : i32
    %c0_i32_0 = arith.constant 0 : i32
    %c0_i32_1 = arith.constant 0 : i32
    return %c0_i32, %c0_i32_0 : i32, i32
  }
  func.func @transform_7(%arg0: i32, %arg1: i32) -> (i32, i32, i32, i32) {
    %c0_i32 = arith.constant 0 : i32
    %c0_i32_0 = arith.constant 0 : i32
    %c0_i32_1 = arith.constant 0 : i32
    return %arg0, %arg1, %c0_i32, %c0_i32_0 : i32, i32, i32, i32
  }
}

</mosaic_0001>

<llo_original>
// kernel: tpu_custom_call.1
$region0: #{tpu_custom_call.1}
  #allocation0 [shape = 'u32[]', space=smem, size = 0x4, offset = 0x4, fixed_abs, tag = 'smem constant byte address 0x4 - core index']
  #allocation1 [shape = 'u32[144,128]{1,0:T(1,128)}', space=vmem, size = 0x12000, scoped, tag = 'internal scratch']
  #allocation2 [shape = 'f32[10,32,4]{2,1,0:T(8,128)}', space=vmem, size = 0x28000, scoped, tag = 'scratch operand']
  %s0 = inlined_call_operand.hbm [shape: f32[2,16,16,16], index: 0, kind: input, shape index: {}]
  %s1 = inlined_call_operand.vmem [shape: f32[16,4], index: 1, kind: input, shape index: {}]
  %s2 = inlined_call_operand.vmem [shape: f32[1,4], index: 2, kind: input, shape index: {}]
  %s3 = inlined_call_operand.vmem [shape: f32[9,4,4], index: 3, kind: input, shape index: {}]
  %s4 = inlined_call_operand.vmem [shape: f32[1,4], index: 4, kind: input, shape index: {}]
  %s5 = inlined_call_operand.vmem [shape: f32[4,16], index: 5, kind: input, shape index: {}]
  %s6 = inlined_call_operand.vmem [shape: f32[1,16], index: 6, kind: input, shape index: {}]
  %s7 = inlined_call_operand.hbm [shape: f32[2,16,16,16], index: 7, kind: output, shape index: {}]
  %s8 = sld [smem:[#allocation0]]
  $region73: #{tpu_custom_call.1} parent=0
    _
  %s10 = ssub.s32 1, %s8
  %s11 = scalar_select 0, %s10, %s8
  $region1: #{tpu_custom_call.1} parent=0
    #allocation3 [shape = 'u8[262144]{0}', space=vmem, size = 0x40000, scoped, tag = 'input window, operand 0']
    #allocation4 [shape = 's32[2]{0}', space=sflag, size = 0x8, scoped, tag = 'scoped memory for tpu_custom_call.1']
    #allocation5 [shape = 's32[2]{0}', space=sflag, size = 0x8, scoped, tag = 'scoped memory for tpu_custom_call.1']
    #allocation6 [shape = 'u8[131072]{0}', space=vmem, size = 0x20000, scoped, tag = 'output window, operand 0']
    %12 = vsyncpa [#allocation4], 0
    %s13 = scalar_lea.sflag [#allocation4], 1
    %14 = vsyncpa %s13, 0
    %15 = vsyncpa [#allocation5], 0
    %s16 = scalar_lea.sflag [#allocation5], 1
    %17 = vsyncpa %s16, 0
    loop: start=0, step=1, limit=6
    $region2: #{tpu_custom_call.1} parent=1 // loop_pre_header
      _
    $region3: #{tpu_custom_call.1} parent=1 // loop_header
      %s19 = sphi 0, %s23
      %p20 = scmp.ge.s32.totalorder %s19, 6
      %s26 = sphi 0, %s38
      %s27 = sphi 0, %s34
      %s28 = sphi 0, %s26
      %s29 = sphi 0, %s27
      %s30 = sphi 0, %s28
      %s31 = sphi 0, %s29
      %s41 = sphi 0, %s43
      %s44 = sphi 0, %s41
      %s45 = sphi 0, %s44
      %s61 = sphi 0, %s45
      %s65 = sphi 0, %s65
      %s67 = sphi 0, %s65
      %s68 = sphi 0, %s67
      %s82 = sphi 0, %s68
      %s86 = sphi 0, %s86
      %s88 = sphi 0, %s86
      %s89 = sphi 0, %s88
      %s103 = sphi 0, %s89
      %s107 = sphi 0, %s107
      %s109 = sphi 0, %s107
      %s110 = sphi 0, %s109
      %s124 = sphi 0, %s110
      %s128 = sphi 0, %s128
      %s130 = sphi 0, %s128
      %s131 = sphi 0, %s130
      %s145 = sphi 0, %s131
      %s149 = sphi 0, %s149
      %s151 = sphi 0, %s149
      %s152 = sphi 0, %s151
      %s166 = sphi 0, %s152
      %s170 = sphi 0, %s170
      %s172 = sphi 0, %s170
      %s173 = sphi 0, %s172
      %s187 = sphi 0, %s173
      %s195 = sphi 0, %s197
      %s198 = sphi 0, %s195
      %s199 = sphi 0, %s198
      %s215 = sphi 0, %s199
    $region4: #{tpu_custom_call.1} parent=1 // loop_header_branch
      %22 = sbr.rel (%p20) target = $region8
    $region5: #{tpu_custom_call.1} parent=1 // loop_body
      %s24 = ssub.s32 %s19, 1
      %s25 = ssub.s32 %s19, 2
      %s32 = sadd.s32 1, %s27
      %p33 = scmp.ge.s32.totalorder %s32, 2
      %s34 = scalar_select %p33, 0, %s32
      %s35 = sadd.s32 1, %s26
      %s36 = scalar_select %p33, %s35, %s26
      %p37 = scmp.ge.s32.totalorder %s36, 2
      %s38 = scalar_select %p37, 0, %s36
      %s39 = ssub.s32 %s26, %s38
      %p40 = scmp.eq.s32.totalorder %s39, 0
      %s42 = sadd.s32 %s41, 1
      %s43 = scalar_select %p40, %s41, %s42
      %p46 = pneg %p40
      %p47 = scmp.eq.s32.totalorder %s19, 3
      %p48 = por %p46, %p47
      %p49 = scmp.ne.s32.totalorder %s41, %s44
      %p50 = scmp.eq.s32.totalorder %s19, 0
      %p51 = por %p49, %p50
      %p52 = scmp.ne.s32.totalorder %s41, %s44
      %p53 = scmp.eq.s32.totalorder %s24, 3
      %p54 = por %p52, %p53
      %p55 = scmp.ne.s32.totalorder %s44, %s45
      %p56 = scmp.eq.s32.totalorder %s24, 0
      %p57 = por %p55, %p56
      %p58 = scmp.ne.s32.totalorder %s44, %s45
      %p59 = scmp.eq.s32.totalorder %s25, 3
      %p60 = por %p58, %p59
      %p62 = scmp.ne.s32.totalorder %s45, %s61
      %p63 = scmp.eq.s32.totalorder %s25, 0
      %p64 = por %p62, %p63
      %s66 = sadd.s32 %s65, 1
      %p69 = scmp.eq.s32.totalorder %s19, 3
      %p70 = scmp.ne.s32.totalorder %s65, %s67
      %p71 = scmp.eq.s32.totalorder %s19, 0
      %p72 = por %p70, %p71
      %p73 = scmp.ne.s32.totalorder %s65, %s67
      %p74 = scmp.eq.s32.totalorder %s24, 3
      %p75 = por %p73, %p74
      %p76 = scmp.ne.s32.totalorder %s67, %s68
      %p77 = scmp.eq.s32.totalorder %s24, 0
      %p78 = por %p76, %p77
      %p79 = scmp.ne.s32.totalorder %s67, %s68
      %p80 = scmp.eq.s32.totalorder %s25, 3
      %p81 = por %p79, %p80
      %p83 = scmp.ne.s32.totalorder %s68, %s82
      %p84 = scmp.eq.s32.totalorder %s25, 0
      %p85 = por %p83, %p84
      %s87 = sadd.s32 %s86, 1
      %p90 = scmp.eq.s32.totalorder %s19, 3
      %p91 = scmp.ne.s32.totalorder %s86, %s88
      %p92 = scmp.eq.s32.totalorder %s19, 0
      %p93 = por %p91, %p92
      %p94 = scmp.ne.s32.totalorder %s86, %s88
      %p95 = scmp.eq.s32.totalorder %s24, 3
      %p96 = por %p94, %p95
      %p97 = scmp.ne.s32.totalorder %s88, %s89
      %p98 = scmp.eq.s32.totalorder %s24, 0
      %p99 = por %p97, %p98
      %p100 = scmp.ne.s32.totalorder %s88, %s89
      %p101 = scmp.eq.s32.totalorder %s25, 3
      %p102 = por %p100, %p101
      %p104 = scmp.ne.s32.totalorder %s89, %s103
      %p105 = scmp.eq.s32.totalorder %s25, 0
      %p106 = por %p104, %p105
      %s108 = sadd.s32 %s107, 1
      %p111 = scmp.eq.s32.totalorder %s19, 3
      %p112 = scmp.ne.s32.totalorder %s107, %s109
      %p113 = scmp.eq.s32.totalorder %s19, 0
      %p114 = por %p112, %p113
      %p115 = scmp.ne.s32.totalorder %s107, %s109
      %p116 = scmp.eq.s32.totalorder %s24, 3
      %p117 = por %p115, %p116
      %p118 = scmp.ne.s32.totalorder %s109, %s110
      %p119 = scmp.eq.s32.totalorder %s24, 0
      %p120 = por %p118, %p119
      %p121 = scmp.ne.s32.totalorder %s109, %s110
      %p122 = scmp.eq.s32.totalorder %s25, 3
      %p123 = por %p121, %p122
      %p125 = scmp.ne.s32.totalorder %s110, %s124
      %p126 = scmp.eq.s32.totalorder %s25, 0
      %p127 = por %p125, %p126
      %s129 = sadd.s32 %s128, 1
      %p132 = scmp.eq.s32.totalorder %s19, 3
      %p133 = scmp.ne.s32.totalorder %s128, %s130
      %p134 = scmp.eq.s32.totalorder %s19, 0
      %p135 = por %p133, %p134
      %p136 = scmp.ne.s32.totalorder %s128, %s130
      %p137 = scmp.eq.s32.totalorder %s24, 3
      %p138 = por %p136, %p137
      %p139 = scmp.ne.s32.totalorder %s130, %s131
      %p140 = scmp.eq.s32.totalorder %s24, 0
      %p141 = por %p139, %p140
      %p142 = scmp.ne.s32.totalorder %s130, %s131
      %p143 = scmp.eq.s32.totalorder %s25, 3
      %p144 = por %p142, %p143
      %p146 = scmp.ne.s32.totalorder %s131, %s145
      %p147 = scmp.eq.s32.totalorder %s25, 0
      %p148 = por %p146, %p147
      %s150 = sadd.s32 %s149, 1
      %p153 = scmp.eq.s32.totalorder %s19, 3
      %p154 = scmp.ne.s32.totalorder %s149, %s151
      %p155 = scmp.eq.s32.totalorder %s19, 0
      %p156 = por %p154, %p155
      %p157 = scmp.ne.s32.totalorder %s149, %s151
      %p158 = scmp.eq.s32.totalorder %s24, 3
      %p159 = por %p157, %p158
      %p160 = scmp.ne.s32.totalorder %s151, %s152
      %p161 = scmp.eq.s32.totalorder %s24, 0
      %p162 = por %p160, %p161
      %p163 = scmp.ne.s32.totalorder %s151, %s152
      %p164 = scmp.eq.s32.totalorder %s25, 3
      %p165 = por %p163, %p164
      %p167 = scmp.ne.s32.totalorder %s152, %s166
      %p168 = scmp.eq.s32.totalorder %s25, 0
      %p169 = por %p167, %p168
      %s171 = sadd.s32 %s170, 1
      %p174 = scmp.eq.s32.totalorder %s19, 3
      %p175 = scmp.ne.s32.totalorder %s170, %s172
      %p176 = scmp.eq.s32.totalorder %s19, 0
      %p177 = por %p175, %p176
      %p178 = scmp.ne.s32.totalorder %s170, %s172
      %p179 = scmp.eq.s32.totalorder %s24, 3
      %p180 = por %p178, %p179
      %p181 = scmp.ne.s32.totalorder %s172, %s173
      %p182 = scmp.eq.s32.totalorder %s24, 0
      %p183 = por %p181, %p182
      %p184 = scmp.ne.s32.totalorder %s172, %s173
      %p185 = scmp.eq.s32.totalorder %s25, 3
      %p186 = por %p184, %p185
      %p188 = scmp.ne.s32.totalorder %s173, %s187
      %p189 = scmp.eq.s32.totalorder %s25, 0
      %p190 = por %p188, %p189
      %s191 = ssub.s32 %s26, %s38
      %s192 = ssub.s32 %s27, %s34
      %s193 = sor.u32 %s191, %s192
      %p194 = scmp.eq.s32.totalorder %s193, 0
      %s196 = sadd.s32 %s195, 1
      %s197 = scalar_select %p194, %s195, %s196
      %p200 = pneg %p194
      %p201 = scmp.eq.s32.totalorder %s19, 3
      %p202 = por %p200, %p201
      %p203 = scmp.ne.s32.totalorder %s195, %s198
      %p204 = scmp.eq.s32.totalorder %s19, 0
      %p205 = por %p203, %p204
      %p206 = scmp.ne.s32.totalorder %s195, %s198
      %p207 = scmp.eq.s32.totalorder %s24, 3
      %p208 = por %p206, %p207
      %p209 = scmp.ne.s32.totalorder %s198, %s199
      %p210 = scmp.eq.s32.totalorder %s24, 0
      %p211 = por %p209, %p210
      %p212 = scmp.ne.s32.totalorder %s198, %s199
      %p213 = scmp.eq.s32.totalorder %s25, 3
      %p214 = por %p212, %p213
      %p216 = scmp.ne.s32.totalorder %s199, %s215
      %p217 = scmp.eq.s32.totalorder %s25, 0
      %p218 = por %p216, %p217
      %p219 = scmp.le.s32.totalorder 1, %s19
      %p220 = scmp.lt.s32.totalorder %s19, 5
      %p221 = pnand %p219, %p220
      %p222 = pneg %p221
      // Predicated region
      $region9: #{tpu_custom_call.1} parent=5 // pred_check
        _
      $region10: #{tpu_custom_call.1} parent=5 // pred_check_branch
        %224 = sbr.rel (%p221) target = $region12
      $region11: #{tpu_custom_call.1} parent=5 // pred_region
        %s225 = ssub.s32 %s19, 1
        // Predicated region
        $region13: #{tpu_custom_call.1} parent=11 // pred_check
          %p226 = pneg %p78
        $region14: #{tpu_custom_call.1} parent=11 // pred_check_branch
          %228 = sbr.rel (%p226) target = $region16
        $region15: #{tpu_custom_call.1} parent=11 // pred_region
          _
        $region16: #{tpu_custom_call.1} parent=11 // pred_fallthru
          _
        // Predicated region
        $region17: #{tpu_custom_call.1} parent=11 // pred_check
          %p229 = pneg %p99
        $region18: #{tpu_custom_call.1} parent=11 // pred_check_branch
          %231 = sbr.rel (%p229) target = $region20
        $region19: #{tpu_custom_call.1} parent=11 // pred_region
          _
        $region20: #{tpu_custom_call.1} parent=11 // pred_fallthru
          _
        // Predicated region
        $region21: #{tpu_custom_call.1} parent=11 // pred_check
          %p232 = pneg %p120
        $region22: #{tpu_custom_call.1} parent=11 // pred_check_branch
          %234 = sbr.rel (%p232) target = $region24
        $region23: #{tpu_custom_call.1} parent=11 // pred_region
          _
        $region24: #{tpu_custom_call.1} parent=11 // pred_fallthru
          _
        // Predicated region
        $region25: #{tpu_custom_call.1} parent=11 // pred_check
          %p235 = pneg %p141
        $region26: #{tpu_custom_call.1} parent=11 // pred_check_branch
          %237 = sbr.rel (%p235) target = $region28
        $region27: #{tpu_custom_call.1} parent=11 // pred_region
          _
        $region28: #{tpu_custom_call.1} parent=11 // pred_fallthru
          _
        // Predicated region
        $region29: #{tpu_custom_call.1} parent=11 // pred_check
          %p238 = pneg %p162
        $region30: #{tpu_custom_call.1} parent=11 // pred_check_branch
          %240 = sbr.rel (%p238) target = $region32
        $region31: #{tpu_custom_call.1} parent=11 // pred_region
          _
        $region32: #{tpu_custom_call.1} parent=11 // pred_fallthru
          _
        // Predicated region
        $region33: #{tpu_custom_call.1} parent=11 // pred_check
          %p241 = pneg %p183
        $region34: #{tpu_custom_call.1} parent=11 // pred_check_branch
          %243 = sbr.rel (%p241) target = $region36
        $region35: #{tpu_custom_call.1} parent=11 // pred_region
          _
        $region36: #{tpu_custom_call.1} parent=11 // pred_fallthru
          _
      $region12: #{tpu_custom_call.1} parent=5 // pred_fallthru
        _
      %p244 = scmp.lt.s32.totalorder %s19, 4
      // Predicated region
      $region37: #{tpu_custom_call.1} parent=5 // pred_check
        %p245 = pneg %p244
      $region38: #{tpu_custom_call.1} parent=5 // pred_check_branch
        %247 = sbr.rel (%p245) target = $region40
      $region39: #{tpu_custom_call.1} parent=5 // pred_region
        // Predicated region
        $region41: #{tpu_custom_call.1} parent=39 // pred_check
          %p248 = pneg %p51
        $region42: #{tpu_custom_call.1} parent=39 // pred_check_branch
          %250 = sbr.rel (%p248) target = $region44
        $region43: #{tpu_custom_call.1} parent=39 // pred_region
          %s251 = sand.u32 %s41, 1
          %s252 = scalar_lea.sflag [#allocation4], %s251
          %s253 = sand.u32 %s41, 1
          %s254 = smul.addr %s253, 256
          %s255 = scalar_lea.vmem [#allocation3], %s254
          %s257 = ssub.s32 4096, 4096
          %258 = vsyncadd %s252, %s257
          %s259 = smul.addr %s26, 32
          %s260 = smul.addr %s259, 128
          %s261 = scalar_lea.hbm %s0, %s260
          %s262 = sshll.u32 %s255, 4
          %s263 = int_to_ptr.vmem [resolvable:$true] %s262
          %268 = dma.hbm_to_vmem [thread:$0]  %s261, 4096, %s263, %s252, 128, 128, 8
        $region44: #{tpu_custom_call.1} parent=39 // pred_fallthru
          _
      $region40: #{tpu_custom_call.1} parent=5 // pred_fallthru
        _
      %p269 = scmp.le.s32.totalorder 1, %s19
      %p270 = scmp.lt.s32.totalorder %s19, 5
      %p271 = pnand %p269, %p270
      %p272 = pneg %p271
      // Predicated region
      $region45: #{tpu_custom_call.1} parent=5 // pred_check
        _
      $region46: #{tpu_custom_call.1} parent=5 // pred_check_branch
        %274 = sbr.rel (%p271) target = $region48
      $region47: #{tpu_custom_call.1} parent=5 // pred_region
        %s275 = ssub.s32 %s19, 1
        %s276 = sand.u32 %s44, 1
        %s277 = scalar_lea.sflag [#allocation4], %s276
        %s278 = sand.u32 %s44, 1
        %s279 = smul.addr %s278, 256
        %s280 = scalar_lea.vmem [#allocation3], %s279
        // Predicated region
        $region49: #{tpu_custom_call.1} parent=47 // pred_check
          %p281 = pneg %p57
        $region50: #{tpu_custom_call.1} parent=47 // pred_check_branch
          %283 = sbr.rel (%p281) target = $region52
        $region51: #{tpu_custom_call.1} parent=47 // pred_region
          %284 = dma.done %s277, 4096
        $region52: #{tpu_custom_call.1} parent=47 // pred_fallthru
          _
        %s285 = sand.u32 %s44, 1
        %s286 = scalar_lea.sflag [#allocation4], %s285
        %s287 = sand.u32 %s44, 1
        %s288 = smul.addr %s287, 256
        %s289 = scalar_lea.vmem [#allocation3], %s288
        %p290 = pneg %p57
        %p291 = pneg %p54
        %p292 = pneg %p78
        %p293 = pneg %p75
        %p294 = pneg %p99
        %p295 = pneg %p96
        %p296 = pneg %p120
        %p297 = pneg %p117
        %p298 = pneg %p141
        %p299 = pneg %p138
        %p300 = pneg %p162
        %p301 = pneg %p159
        %p302 = pneg %p183
        %p303 = pneg %p180
        %p304 = pneg %p211
        %p305 = pneg %p208
        %s306 = sand.u32 %s198, 1
        %s307 = scalar_lea.sflag [#allocation5], %s306
        %s308 = sand.u32 %s198, 1
        %s309 = smul.addr %s308, 128
        %s310 = scalar_lea.vmem [#allocation6], %s309
        %s311 = smul.u32 8, %s29
        %s312 = smul.u32 %s29, 8
        %s313 = smul.u32 %s312, 16
        %s314 = scalar_lea.vmem %s280, %s313 [#allocation3]
        %v315 = vld [vmem:[%s314] sm:$0xff]
        %v316 = vld [vmem:[%s314 + $0x8] sm:$0xff]
        %v317 = vld [vmem:[%s314 + $0x10] sm:$0xff]
        %v318 = vld [vmem:[%s314 + $0x18] sm:$0xff]
        %v319 = vld [vmem:[%s314 + $0x20] sm:$0xff]
        %v320 = vld [vmem:[%s314 + $0x28] sm:$0xff]
        %v321 = vld [vmem:[%s314 + $0x30] sm:$0xff]
        %v322 = vld [vmem:[%s314 + $0x38] sm:$0xff]
        %v323 = vld [vmem:[%s314 + $0x40] sm:$0xff]
        %v324 = vld [vmem:[%s314 + $0x48] sm:$0xff]
        %v325 = vld [vmem:[%s314 + $0x50] sm:$0xff]
        %v326 = vld [vmem:[%s314 + $0x58] sm:$0xff]
        %v327 = vld [vmem:[%s314 + $0x60] sm:$0xff]
        %v328 = vld [vmem:[%s314 + $0x68] sm:$0xff]
        %v329 = vld [vmem:[%s314 + $0x70] sm:$0xff]
        %v330 = vld [vmem:[%s314 + $0x78] sm:$0xff]
        %vm331 = vcmask 31744
        %332 = vst.msk [vmem:[#allocation2] sm:$0xff] %vm331, 0.0
        %333 = vst.msk [vmem:[#allocation2 + $0x8] sm:$0xff] %vm331, 0.0
        %334 = vst.msk [vmem:[#allocation2 + $0x10] sm:$0xff] %vm331, 0.0
        %335 = vst.msk [vmem:[#allocation2 + $0x18] sm:$0xff] %vm331, 0.0
        %336 = vst.msk [vmem:[#allocation2 + $0x20] sm:$0xff] %vm331, 0.0
        %337 = vst.msk [vmem:[#allocation2 + $0x28] sm:$0xff] %vm331, 0.0
        %338 = vst.msk [vmem:[#allocation2 + $0x30] sm:$0xff] %vm331, 0.0
        %339 = vst.msk [vmem:[#allocation2 + $0x38] sm:$0xff] %vm331, 0.0
        %340 = vst.msk [vmem:[#allocation2 + $0x40] sm:$0xff] %vm331, 0.0
        %341 = vst.msk [vmem:[#allocation2 + $0x48] sm:$0xff] %vm331, 0.0
        %342 = vst.msk [vmem:[#allocation2 + $0x50] sm:$0xff] %vm331, 0.0
        %343 = vst.msk [vmem:[#allocation2 + $0x58] sm:$0xff] %vm331, 0.0
        %344 = vst.msk [vmem:[#allocation2 + $0x60] sm:$0xff] %vm331, 0.0
        %345 = vst.msk [vmem:[#allocation2 + $0x68] sm:$0xff] %vm331, 0.0
        %346 = vst.msk [vmem:[#allocation2 + $0x70] sm:$0xff] %vm331, 0.0
        %347 = vst.msk [vmem:[#allocation2 + $0x78] sm:$0xff] %vm331, 0.0
        %348 = vst.msk [vmem:[#allocation2 + $0x80] sm:$0xff] %vm331, 0.0
        %349 = vst.msk [vmem:[#allocation2 + $0x88] sm:$0xff] %vm331, 0.0
        %350 = vst.msk [vmem:[#allocation2 + $0x90] sm:$0xff] %vm331, 0.0
        %351 = vst.msk [vmem:[#allocation2 + $0x98] sm:$0xff] %vm331, 0.0
        %352 = vst.msk [vmem:[#allocation2 + $0xa0] sm:$0xff] %vm331, 0.0
        %353 = vst.msk [vmem:[#allocation2 + $0xa8] sm:$0xff] %vm331, 0.0
        %354 = vst.msk [vmem:[#allocation2 + $0xb0] sm:$0xff] %vm331, 0.0
        %355 = vst.msk [vmem:[#allocation2 + $0xb8] sm:$0xff] %vm331, 0.0
        %356 = vst.msk [vmem:[#allocation2 + $0xc0] sm:$0xff] %vm331, 0.0
        %357 = vst.msk [vmem:[#allocation2 + $0xc8] sm:$0xff] %vm331, 0.0
        %358 = vst.msk [vmem:[#allocation2 + $0xd0] sm:$0xff] %vm331, 0.0
        %359 = vst.msk [vmem:[#allocation2 + $0xd8] sm:$0xff] %vm331, 0.0
        %360 = vst.msk [vmem:[#allocation2 + $0xe0] sm:$0xff] %vm331, 0.0
        %361 = vst.msk [vmem:[#allocation2 + $0xe8] sm:$0xff] %vm331, 0.0
        %362 = vst.msk [vmem:[#allocation2 + $0xf0] sm:$0xff] %vm331, 0.0
        %363 = vst.msk [vmem:[#allocation2 + $0xf8] sm:$0xff] %vm331, 0.0
        %364 = vst.msk [vmem:[#allocation2 + $0x100] sm:$0xff] %vm331, 0.0
        %365 = vst.msk [vmem:[#allocation2 + $0x108] sm:$0xff] %vm331, 0.0
        %366 = vst.msk [vmem:[#allocation2 + $0x110] sm:$0xff] %vm331, 0.0
        %367 = vst.msk [vmem:[#allocation2 + $0x118] sm:$0xff] %vm331, 0.0
        %368 = vst.msk [vmem:[#allocation2 + $0x120] sm:$0xff] %vm331, 0.0
        %369 = vst.msk [vmem:[#allocation2 + $0x128] sm:$0xff] %vm331, 0.0
        %370 = vst.msk [vmem:[#allocation2 + $0x130] sm:$0xff] %vm331, 0.0
        %371 = vst.msk [vmem:[#allocation2 + $0x138] sm:$0xff] %vm331, 0.0
        %v372 = vld [vmem:[%s1] sm:$0xff]
        %v373 = vld [vmem:[%s1 + $0x8] sm:$0xff]
        %v374 = vld [vmem:[%s2] sm:$0x1]
        %v376 = vlaneseq
        %v377 = vshrl.u32 %v376, 7
        %v378 = vsub.s32 0, %v377
        %v379 = vrot.slane %v374, %v378
        %vm381 = vcmask 130048
        %v383 = vsel %vm381, %v315, 0
        %v386 = vsel %vm381, %v316, 0
        %v389 = vsel %vm381, %v317, 0
        %v392 = vsel %vm381, %v318, 0
        %v395 = vsel %vm381, %v319, 0
        %v398 = vsel %vm381, %v320, 0
        %v401 = vsel %vm381, %v321, 0
        %v404 = vsel %vm381, %v322, 0
        %v407 = vsel %vm381, %v323, 0
        %v410 = vsel %vm381, %v324, 0
        %v413 = vsel %vm381, %v325, 0
        %v416 = vsel %vm381, %v326, 0
        %v419 = vsel %vm381, %v327, 0
        %v422 = vsel %vm381, %v328, 0
        %v425 = vsel %vm381, %v329, 0
        %v428 = vsel %vm381, %v330, 0
        %430 = vmatprep.subr.mxu0 0.0
        %431 = vmatpush1.msra.mxu0 0.0
        %432 = vmatprep.subr.mxu0 0.0
        %433 = vmatpush1.msra.mxu0 0.0
        %434 = vmatprep.subr.mxu0 0.0
        %435 = vmatpush1.msra.mxu0 0.0
        %436 = vmatprep.subr.mxu0 0.0
        %437 = vmatpush1.msra.mxu0 0.0
        %438 = vmatprep.subr.mxu0 0.0
        %439 = vmatpush1.msra.mxu0 0.0
        %440 = vmatprep.subr.mxu0 0.0
        %441 = vmatpush1.msra.mxu0 0.0
        %442 = vmatprep.subr.mxu0 0.0
        %443 = vmatpush1.msra.mxu0 0.0
        %444 = vmatprep.subr.mxu0 0.0
        %445 = vmatpush1.msra.mxu0 0.0
        %446 = vmatprep.subr.mxu0 0.0
        %447 = vmatpush1.msra.mxu0 0.0
        %448 = vmatprep.subr.mxu0 0.0
        %449 = vmatpush1.msra.mxu0 0.0
        %450 = vmatprep.subr.mxu0 0.0
        %451 = vmatpush1.msra.mxu0 0.0
        %452 = vmatprep.subr.mxu0 0.0
        %453 = vmatpush1.msra.mxu0 0.0
        %454 = vmatprep.subr.mxu0 0.0
        %455 = vmatpush1.msra.mxu0 0.0
        %456 = vmatprep.subr.mxu0 0.0
        %457 = vmatpush1.msra.mxu0 0.0
        %458 = vmatprep.subr.mxu0 0.0
        %459 = vmatpush1.msra.mxu0 %v373
        %460 = vmatprep.subr.mxu0 0.0
        %461 = vmatpush1.msra.mxu0 %v372
        %462 = vmatprep.subr.mxu0 0.0
        %463 = vmatpush2.msra.mxu0 0.0
        %464 = vmatprep.subr.mxu0 0.0
        %465 = vmatpush2.msra.mxu0 0.0
        %466 = vmatprep.subr.mxu0 0.0
        %467 = vmatpush2.msra.mxu0 0.0
        %468 = vmatprep.subr.mxu0 0.0
        %469 = vmatpush2.msra.mxu0 0.0
        %470 = vmatprep.subr.mxu0 0.0
        %471 = vmatpush2.msra.mxu0 0.0
        %472 = vmatprep.subr.mxu0 0.0
        %473 = vmatpush2.msra.mxu0 0.0
        %474 = vmatprep.subr.mxu0 0.0
        %475 = vmatpush2.msra.mxu0 0.0
        %476 = vmatprep.subr.mxu0 0.0
        %477 = vmatpush2.msra.mxu0 0.0
        %478 = vmatprep.subr.mxu0 0.0
        %479 = vmatpush2.msra.mxu0 0.0
        %480 = vmatprep.subr.mxu0 0.0
        %481 = vmatpush2.msra.mxu0 0.0
        %482 = vmatprep.subr.mxu0 0.0
        %483 = vmatpush2.msra.mxu0 0.0
        %484 = vmatprep.subr.mxu0 0.0
        %485 = vmatpush2.msra.mxu0 0.0
        %486 = vmatprep.subr.mxu0 0.0
        %487 = vmatpush2.msra.mxu0 0.0
        %488 = vmatprep.subr.mxu0 0.0
        %489 = vmatpush2.msra.mxu0 0.0
        %490 = vmatprep.subr.mxu0 0.0
        %491 = vmatpush2.msra.mxu0 0.0
        %492 = vmatprep.subr.mxu0 0.0
        %493 = vmatpush2.msra.mxu0 0.0
        %494 = vmatprep.mubr.f32.mxu0 0.0
        %495 = vmatmul.mubr.f32.gmra.mxu0 %v383
        %v496 = vpop.f32.mrf.mxu0
        %v497 = vadd.f32 %v379, %v496
        %v498 = vpop.f32.mrf.mxu0
        %499 = vmatprep.mubr.f32.mxu0 0.0
        %500 = vmatmul.mubr.f32.gmra.mxu0 %v386
        %v501 = vpop.f32.mrf.mxu0
        %v502 = vadd.f32 %v379, %v501
        %v503 = vpop.f32.mrf.mxu0
        %504 = vmatprep.mubr.f32.mxu0 0.0
        %505 = vmatmul.mubr.f32.gmra.mxu0 %v389
        %v506 = vpop.f32.mrf.mxu0
        %v507 = vadd.f32 %v379, %v506
        %v508 = vpop.f32.mrf.mxu0
        %509 = vmatprep.mubr.f32.mxu0 0.0
        %510 = vmatmul.mubr.f32.gmra.mxu0 %v392
        %v511 = vpop.f32.mrf.mxu0
        %v512 = vadd.f32 %v379, %v511
        %v513 = vpop.f32.mrf.mxu0
        %514 = vmatprep.mubr.f32.mxu0 0.0
        %515 = vmatmul.mubr.f32.gmra.mxu0 %v395
        %v516 = vpop.f32.mrf.mxu0
        %v517 = vadd.f32 %v379, %v516
        %v518 = vpop.f32.mrf.mxu0
        %519 = vmatprep.mubr.f32.mxu0 0.0
        %520 = vmatmul.mubr.f32.gmra.mxu0 %v398
        %v521 = vpop.f32.mrf.mxu0
        %v522 = vadd.f32 %v379, %v521
        %v523 = vpop.f32.mrf.mxu0
        %524 = vmatprep.mubr.f32.mxu0 0.0
        %525 = vmatmul.mubr.f32.gmra.mxu0 %v401
        %v526 = vpop.f32.mrf.mxu0
        %v527 = vadd.f32 %v379, %v526
        %v528 = vpop.f32.mrf.mxu0
        %529 = vmatprep.mubr.f32.mxu0 0.0
        %530 = vmatmul.mubr.f32.gmra.mxu0 %v404
        %v531 = vpop.f32.mrf.mxu0
        %v532 = vadd.f32 %v379, %v531
        %v533 = vpop.f32.mrf.mxu0
        %534 = vmatprep.mubr.f32.mxu0 0.0
        %535 = vmatmul.mubr.f32.gmra.mxu0 %v407
        %v536 = vpop.f32.mrf.mxu0
        %v537 = vadd.f32 %v379, %v536
        %v538 = vpop.f32.mrf.mxu0
        %539 = vmatprep.mubr.f32.mxu0 0.0
        %540 = vmatmul.mubr.f32.gmra.mxu0 %v410
        %v541 = vpop.f32.mrf.mxu0
        %v542 = vadd.f32 %v379, %v541
        %v543 = vpop.f32.mrf.mxu0
        %544 = vmatprep.mubr.f32.mxu0 0.0
        %545 = vmatmul.mubr.f32.gmra.mxu0 %v413
        %v546 = vpop.f32.mrf.mxu0
        %v547 = vadd.f32 %v379, %v546
        %v548 = vpop.f32.mrf.mxu0
        %549 = vmatprep.mubr.f32.mxu0 0.0
        %550 = vmatmul.mubr.f32.gmra.mxu0 %v416
        %v551 = vpop.f32.mrf.mxu0
        %v552 = vadd.f32 %v379, %v551
        %v553 = vpop.f32.mrf.mxu0
        %554 = vmatprep.mubr.f32.mxu0 0.0
        %555 = vmatmul.mubr.f32.gmra.mxu0 %v419
        %v556 = vpop.f32.mrf.mxu0
        %v557 = vadd.f32 %v379, %v556
        %v558 = vpop.f32.mrf.mxu0
        %559 = vmatprep.mubr.f32.mxu0 0.0
        %560 = vmatmul.mubr.f32.gmra.mxu0 %v422
        %v561 = vpop.f32.mrf.mxu0
        %v562 = vadd.f32 %v379, %v561
        %v563 = vpop.f32.mrf.mxu0
        %564 = vmatprep.mubr.f32.mxu0 0.0
        %565 = vmatmul.mubr.f32.gmra.mxu0 %v425
        %v566 = vpop.f32.mrf.mxu0
        %v567 = vadd.f32 %v379, %v566
        %v568 = vpop.f32.mrf.mxu0
        %569 = vmatprep.mubr.f32.mxu0 0.0
        %570 = vmatmul.mubr.f32.gmra.mxu0 %v428
        %v571 = vpop.f32.mrf.mxu0
        %v572 = vadd.f32 %v379, %v571
        %v573 = vpop.f32.mrf.mxu0
        %574 = vdwg.mxu0
        %v575 = vmax.f32 %v497, 0.0
        %v576 = vmax.f32 %v502, 0.0
        %v577 = vmax.f32 %v507, 0.0
        %v578 = vmax.f32 %v512, 0.0
        %v579 = vmax.f32 %v517, 0.0
        %v580 = vmax.f32 %v522, 0.0
        %v581 = vmax.f32 %v527, 0.0
        %v582 = vmax.f32 %v532, 0.0
        %v583 = vmax.f32 %v537, 0.0
        %v584 = vmax.f32 %v542, 0.0
        %v585 = vmax.f32 %v547, 0.0
        %v586 = vmax.f32 %v552, 0.0
        %v587 = vmax.f32 %v557, 0.0
        %v588 = vmax.f32 %v562, 0.0
        %v589 = vmax.f32 %v567, 0.0
        %v590 = vmax.f32 %v572, 0.0
        %s591 = scalar_lea.vmem [#allocation2], 32
        %592 = vst.msk [vmem:[%s591 + $0x8] sm:$0xff] %vm331, %v575
        %593 = vst.msk [vmem:[%s591 + $0x10] sm:$0xff] %vm331, %v576
        %594 = vst.msk [vmem:[%s591 + $0x28] sm:$0xff] %vm331, %v577
        %595 = vst.msk [vmem:[%s591 + $0x30] sm:$0xff] %vm331, %v578
        %596 = vst.msk [vmem:[%s591 + $0x48] sm:$0xff] %vm331, %v579
        %597 = vst.msk [vmem:[%s591 + $0x50] sm:$0xff] %vm331, %v580
        %598 = vst.msk [vmem:[%s591 + $0x68] sm:$0xff] %vm331, %v581
        %599 = vst.msk [vmem:[%s591 + $0x70] sm:$0xff] %vm331, %v582
        %600 = vst.msk [vmem:[%s591 + $0x88] sm:$0xff] %vm331, %v583
        %601 = vst.msk [vmem:[%s591 + $0x90] sm:$0xff] %vm331, %v584
        %602 = vst.msk [vmem:[%s591 + $0xa8] sm:$0xff] %vm331, %v585
        %603 = vst.msk [vmem:[%s591 + $0xb0] sm:$0xff] %vm331, %v586
        %604 = vst.msk [vmem:[%s591 + $0xc8] sm:$0xff] %vm331, %v587
        %605 = vst.msk [vmem:[%s591 + $0xd0] sm:$0xff] %vm331, %v588
        %606 = vst.msk [vmem:[%s591 + $0xe8] sm:$0xff] %vm331, %v589
        %607 = vst.msk [vmem:[%s591 + $0xf0] sm:$0xff] %vm331, %v590
        %p608 = scmp.gt.s32.totalorder %s29, 0
        // Predicated region
        $region53: #{tpu_custom_call.1} parent=47 // pred_check
          %p609 = pneg %p608
        $region54: #{tpu_custom_call.1} parent=47 // pred_check_branch
          %611 = sbr.rel (%p609) target = $region56
        $region55: #{tpu_custom_call.1} parent=47 // pred_region
          %s612 = ssub.s32 %s312, 1
          %s613 = smul.u32 %s612, 16
          %s614 = scalar_lea.vmem %s280, %s613 [#allocation3]
          %v615 = vld [vmem:[%s614] sm:$0xff]
          %v616 = vld [vmem:[%s614 + $0x8] sm:$0xff]
          %v617 = vld [vmem:[%s1] sm:$0xff]
          %v618 = vld [vmem:[%s1 + $0x8] sm:$0xff]
          %v619 = vld [vmem:[%s2] sm:$0x1]
          %v621 = vlaneseq
          %v622 = vshrl.u32 %v621, 7
          %v623 = vsub.s32 0, %v622
          %v624 = vrot.slane %v619, %v623
          %v627 = vsel %vm381, %v615, 0
          %v630 = vsel %vm381, %v616, 0
          %632 = vmatprep.subr.mxu0 0.0
          %633 = vmatpush1.msra.mxu0 0.0
          %634 = vmatprep.subr.mxu0 0.0
          %635 = vmatpush1.msra.mxu0 0.0
          %636 = vmatprep.subr.mxu0 0.0
          %637 = vmatpush1.msra.mxu0 0.0
          %638 = vmatprep.subr.mxu0 0.0
          %639 = vmatpush1.msra.mxu0 0.0
          %640 = vmatprep.subr.mxu0 0.0
          %641 = vmatpush1.msra.mxu0 0.0
          %642 = vmatprep.subr.mxu0 0.0
          %643 = vmatpush1.msra.mxu0 0.0
          %644 = vmatprep.subr.mxu0 0.0
          %645 = vmatpush1.msra.mxu0 0.0
          %646 = vmatprep.subr.mxu0 0.0
          %647 = vmatpush1.msra.mxu0 0.0
          %648 = vmatprep.subr.mxu0 0.0
          %649 = vmatpush1.msra.mxu0 0.0
          %650 = vmatprep.subr.mxu0 0.0
          %651 = vmatpush1.msra.mxu0 0.0
          %652 = vmatprep.subr.mxu0 0.0
          %653 = vmatpush1.msra.mxu0 0.0
          %654 = vmatprep.subr.mxu0 0.0
          %655 = vmatpush1.msra.mxu0 0.0
          %656 = vmatprep.subr.mxu0 0.0
          %657 = vmatpush1.msra.mxu0 0.0
          %658 = vmatprep.subr.mxu0 0.0
          %659 = vmatpush1.msra.mxu0 0.0
          %660 = vmatprep.subr.mxu0 0.0
          %661 = vmatpush1.msra.mxu0 %v618
          %662 = vmatprep.subr.mxu0 0.0
          %663 = vmatpush1.msra.mxu0 %v617
          %664 = vmatprep.subr.mxu0 0.0
          %665 = vmatpush2.msra.mxu0 0.0
          %666 = vmatprep.subr.mxu0 0.0
          %667 = vmatpush2.msra.mxu0 0.0
          %668 = vmatprep.subr.mxu0 0.0
          %669 = vmatpush2.msra.mxu0 0.0
          %670 = vmatprep.subr.mxu0 0.0
          %671 = vmatpush2.msra.mxu0 0.0
          %672 = vmatprep.subr.mxu0 0.0
          %673 = vmatpush2.msra.mxu0 0.0
          %674 = vmatprep.subr.mxu0 0.0
          %675 = vmatpush2.msra.mxu0 0.0
          %676 = vmatprep.subr.mxu0 0.0
          %677 = vmatpush2.msra.mxu0 0.0
          %678 = vmatprep.subr.mxu0 0.0
          %679 = vmatpush2.msra.mxu0 0.0
          %680 = vmatprep.subr.mxu0 0.0
          %681 = vmatpush2.msra.mxu0 0.0
          %682 = vmatprep.subr.mxu0 0.0
          %683 = vmatpush2.msra.mxu0 0.0
          %684 = vmatprep.subr.mxu0 0.0
          %685 = vmatpush2.msra.mxu0 0.0
          %686 = vmatprep.subr.mxu0 0.0
          %687 = vmatpush2.msra.mxu0 0.0
          %688 = vmatprep.subr.mxu0 0.0
          %689 = vmatpush2.msra.mxu0 0.0
          %690 = vmatprep.subr.mxu0 0.0
          %691 = vmatpush2.msra.mxu0 0.0
          %692 = vmatprep.subr.mxu0 0.0
          %693 = vmatpush2.msra.mxu0 0.0
          %694 = vmatprep.subr.mxu0 0.0
          %695 = vmatpush2.msra.mxu0 0.0
          %696 = vmatprep.mubr.f32.mxu0 0.0
          %697 = vmatmul.mubr.f32.gmra.mxu0 %v627
          %v698 = vpop.f32.mrf.mxu0
          %v699 = vadd.f32 %v624, %v698
          %v700 = vpop.f32.mrf.mxu0
          %701 = vmatprep.mubr.f32.mxu0 0.0
          %702 = vmatmul.mubr.f32.gmra.mxu0 %v630
          %v703 = vpop.f32.mrf.mxu0
          %v704 = vadd.f32 %v624, %v703
          %v705 = vpop.f32.mrf.mxu0
          %706 = vdwg.mxu0
          %v707 = vmax.f32 %v699, 0.0
          %v708 = vmax.f32 %v704, 0.0
          %709 = vst.msk [vmem:[#allocation2 + $0x8] sm:$0xff] %vm331, %v707
          %710 = vst.msk [vmem:[#allocation2 + $0x10] sm:$0xff] %vm331, %v708
        $region56: #{tpu_custom_call.1} parent=47 // pred_fallthru
          _
        %p711 = scmp.lt.s32.totalorder %s29, 1
        // Predicated region
        $region57: #{tpu_custom_call.1} parent=47 // pred_check
          %p712 = pneg %p711
        $region58: #{tpu_custom_call.1} parent=47 // pred_check_branch
          %714 = sbr.rel (%p712) target = $region60
        $region59: #{tpu_custom_call.1} parent=47 // pred_region
          %s715 = sadd.s32 %s312, 8
          %s716 = smul.u32 %s715, 16
          %s717 = scalar_lea.vmem %s280, %s716 [#allocation3]
          %v718 = vld [vmem:[%s717] sm:$0xff]
          %v719 = vld [vmem:[%s717 + $0x8] sm:$0xff]
          %v720 = vld [vmem:[%s1] sm:$0xff]
          %v721 = vld [vmem:[%s1 + $0x8] sm:$0xff]
          %v722 = vld [vmem:[%s2] sm:$0x1]
          %v724 = vlaneseq
          %v725 = vshrl.u32 %v724, 7
          %v726 = vsub.s32 0, %v725
          %v727 = vrot.slane %v722, %v726
          %v730 = vsel %vm381, %v718, 0
          %v733 = vsel %vm381, %v719, 0
          %735 = vmatprep.subr.mxu0 0.0
          %736 = vmatpush1.msra.mxu0 0.0
          %737 = vmatprep.subr.mxu0 0.0
          %738 = vmatpush1.msra.mxu0 0.0
          %739 = vmatprep.subr.mxu0 0.0
          %740 = vmatpush1.msra.mxu0 0.0
          %741 = vmatprep.subr.mxu0 0.0
          %742 = vmatpush1.msra.mxu0 0.0
          %743 = vmatprep.subr.mxu0 0.0
          %744 = vmatpush1.msra.mxu0 0.0
          %745 = vmatprep.subr.mxu0 0.0
          %746 = vmatpush1.msra.mxu0 0.0
          %747 = vmatprep.subr.mxu0 0.0
          %748 = vmatpush1.msra.mxu0 0.0
          %749 = vmatprep.subr.mxu0 0.0
          %750 = vmatpush1.msra.mxu0 0.0
          %751 = vmatprep.subr.mxu0 0.0
          %752 = vmatpush1.msra.mxu0 0.0
          %753 = vmatprep.subr.mxu0 0.0
          %754 = vmatpush1.msra.mxu0 0.0
          %755 = vmatprep.subr.mxu0 0.0
          %756 = vmatpush1.msra.mxu0 0.0
          %757 = vmatprep.subr.mxu0 0.0
          %758 = vmatpush1.msra.mxu0 0.0
          %759 = vmatprep.subr.mxu0 0.0
          %760 = vmatpush1.msra.mxu0 0.0
          %761 = vmatprep.subr.mxu0 0.0
          %762 = vmatpush1.msra.mxu0 0.0
          %763 = vmatprep.subr.mxu0 0.0
          %764 = vmatpush1.msra.mxu0 %v721
          %765 = vmatprep.subr.mxu0 0.0
          %766 = vmatpush1.msra.mxu0 %v720
          %767 = vmatprep.subr.mxu0 0.0
          %768 = vmatpush2.msra.mxu0 0.0
          %769 = vmatprep.subr.mxu0 0.0
          %770 = vmatpush2.msra.mxu0 0.0
          %771 = vmatprep.subr.mxu0 0.0
          %772 = vmatpush2.msra.mxu0 0.0
          %773 = vmatprep.subr.mxu0 0.0
          %774 = vmatpush2.msra.mxu0 0.0
          %775 = vmatprep.subr.mxu0 0.0
          %776 = vmatpush2.msra.mxu0 0.0
          %777 = vmatprep.subr.mxu0 0.0
          %778 = vmatpush2.msra.mxu0 0.0
          %779 = vmatprep.subr.mxu0 0.0
          %780 = vmatpush2.msra.mxu0 0.0
          %781 = vmatprep.subr.mxu0 0.0
          %782 = vmatpush2.msra.mxu0 0.0
          %783 = vmatprep.subr.mxu0 0.0
          %784 = vmatpush2.msra.mxu0 0.0
          %785 = vmatprep.subr.mxu0 0.0
          %786 = vmatpush2.msra.mxu0 0.0
          %787 = vmatprep.subr.mxu0 0.0
          %788 = vmatpush2.msra.mxu0 0.0
          %789 = vmatprep.subr.mxu0 0.0
          %790 = vmatpush2.msra.mxu0 0.0
          %791 = vmatprep.subr.mxu0 0.0
          %792 = vmatpush2.msra.mxu0 0.0
          %793 = vmatprep.subr.mxu0 0.0
          %794 = vmatpush2.msra.mxu0 0.0
          %795 = vmatprep.subr.mxu0 0.0
          %796 = vmatpush2.msra.mxu0 0.0
          %797 = vmatprep.subr.mxu0 0.0
          %798 = vmatpush2.msra.mxu0 0.0
          %799 = vmatprep.mubr.f32.mxu0 0.0
          %800 = vmatmul.mubr.f32.gmra.mxu0 %v730
          %v801 = vpop.f32.mrf.mxu0
          %v802 = vadd.f32 %v727, %v801
          %v803 = vpop.f32.mrf.mxu0
          %804 = vmatprep.mubr.f32.mxu0 0.0
          %805 = vmatmul.mubr.f32.gmra.mxu0 %v733
          %v806 = vpop.f32.mrf.mxu0
          %v807 = vadd.f32 %v727, %v806
          %v808 = vpop.f32.mrf.mxu0
          %809 = vdwg.mxu0
          %v810 = vmax.f32 %v802, 0.0
          %v811 = vmax.f32 %v807, 0.0
          %s812 = scalar_lea.vmem [#allocation2], 288
          %813 = vst.msk [vmem:[%s812 + $0x8] sm:$0xff] %vm331, %v810
          %814 = vst.msk [vmem:[%s812 + $0x10] sm:$0xff] %vm331, %v811
        $region60: #{tpu_custom_call.1} parent=47 // pred_fallthru
          _
        %v815 = vld [vmem:[#allocation2 + $0x7] sm:$0xff]
        %v816 = vld [vmem:[#allocation2 + $0xf] sm:$0xff]
        %v817 = vld [vmem:[#allocation2 + $0x27] sm:$0xff]
        %v818 = vld [vmem:[#allocation2 + $0x2f] sm:$0xff]
        %v819 = vld [vmem:[#allocation2 + $0x47] sm:$0xff]
        %v820 = vld [vmem:[#allocation2 + $0x4f] sm:$0xff]
        %v821 = vld [vmem:[#allocation2 + $0x67] sm:$0xff]
        %v822 = vld [vmem:[#allocation2 + $0x6f] sm:$0xff]
        %v823 = vld [vmem:[#allocation2 + $0x87] sm:$0xff]
        %v824 = vld [vmem:[#allocation2 + $0x8f] sm:$0xff]
        %v825 = vld [vmem:[#allocation2 + $0xa7] sm:$0xff]
        %v826 = vld [vmem:[#allocation2 + $0xaf] sm:$0xff]
        %v827 = vld [vmem:[#allocation2 + $0xc7] sm:$0xff]
        %v828 = vld [vmem:[#allocation2 + $0xcf] sm:$0xff]
        %v829 = vld [vmem:[#allocation2 + $0xe7] sm:$0xff]
        %v830 = vld [vmem:[#allocation2 + $0xef] sm:$0xff]
        %v831 = vld [vmem:[%s3] sm:$0xf]
        %v832 = vld [vmem:[#allocation2 + $0x8] sm:$0xff]
        %v833 = vld [vmem:[#allocation2 + $0x10] sm:$0xff]
        %v834 = vld [vmem:[#allocation2 + $0x28] sm:$0xff]
        %v835 = vld [vmem:[#allocation2 + $0x30] sm:$0xff]
        %v836 = vld [vmem:[#allocation2 + $0x48] sm:$0xff]
        %v837 = vld [vmem:[#allocation2 + $0x50] sm:$0xff]
        %v838 = vld [vmem:[#allocation2 + $0x68] sm:$0xff]
        %v839 = vld [vmem:[#allocation2 + $0x70] sm:$0xff]
        %v840 = vld [vmem:[#allocation2 + $0x88] sm:$0xff]
        %v841 = vld [vmem:[#allocation2 + $0x90] sm:$0xff]
        %v842 = vld [vmem:[#allocation2 + $0xa8] sm:$0xff]
        %v843 = vld [vmem:[#allocation2 + $0xb0] sm:$0xff]
        %v844 = vld [vmem:[#allocation2 + $0xc8] sm:$0xff]
        %v845 = vld [vmem:[#allocation2 + $0xd0] sm:$0xff]
        %v846 = vld [vmem:[#allocation2 + $0xe8] sm:$0xff]
        %v847 = vld [vmem:[#allocation2 + $0xf0] sm:$0xff]
        %s848 = scalar_lea.vmem %s3, 4
        %v849 = vld [vmem:[%s848] sm:$0xf]
        %v851 = vsel %vm331, %v832, 0
        %v854 = vsel %vm331, %v833, 0
        %v857 = vsel %vm331, %v834, 0
        %v860 = vsel %vm331, %v835, 0
        %v863 = vsel %vm331, %v836, 0
        %v866 = vsel %vm331, %v837, 0
        %v869 = vsel %vm331, %v838, 0
        %v872 = vsel %vm331, %v839, 0
        %v875 = vsel %vm331, %v840, 0
        %v878 = vsel %vm331, %v841, 0
        %v881 = vsel %vm331, %v842, 0
        %v884 = vsel %vm331, %v843, 0
        %v887 = vsel %vm331, %v844, 0
        %v890 = vsel %vm331, %v845, 0
        %v893 = vsel %vm331, %v846, 0
        %v896 = vsel %vm331, %v847, 0
        %vm898 = vcmask 1043456
        %v900 = vsel %vm898, %v849, 0
        %902 = vmatprep.subr.mxu0 0.0
        %903 = vmatpush1.msra.mxu0 0.0
        %904 = vmatprep.subr.mxu0 0.0
        %905 = vmatpush1.msra.mxu0 0.0
        %906 = vmatprep.subr.mxu0 0.0
        %907 = vmatpush1.msra.mxu0 0.0
        %908 = vmatprep.subr.mxu0 0.0
        %909 = vmatpush1.msra.mxu0 0.0
        %910 = vmatprep.subr.mxu0 0.0
        %911 = vmatpush1.msra.mxu0 0.0
        %912 = vmatprep.subr.mxu0 0.0
        %913 = vmatpush1.msra.mxu0 0.0
        %914 = vmatprep.subr.mxu0 0.0
        %915 = vmatpush1.msra.mxu0 0.0
        %916 = vmatprep.subr.mxu0 0.0
        %917 = vmatpush1.msra.mxu0 0.0
        %918 = vmatprep.subr.mxu0 0.0
        %919 = vmatpush1.msra.mxu0 0.0
        %920 = vmatprep.subr.mxu0 0.0
        %921 = vmatpush1.msra.mxu0 0.0
        %922 = vmatprep.subr.mxu0 0.0
        %923 = vmatpush1.msra.mxu0 0.0
        %924 = vmatprep.subr.mxu0 0.0
        %925 = vmatpush1.msra.mxu0 0.0
        %926 = vmatprep.subr.mxu0 0.0
        %927 = vmatpush1.msra.mxu0 0.0
        %928 = vmatprep.subr.mxu0 0.0
        %929 = vmatpush1.msra.mxu0 0.0
        %930 = vmatprep.subr.mxu0 0.0
        %931 = vmatpush1.msra.mxu0 0.0
        %932 = vmatprep.subr.mxu0 0.0
        %933 = vmatpush1.msra.mxu0 %v900
        %934 = vmatprep.subr.mxu0 0.0
        %935 = vmatpush2.msra.mxu0 0.0
        %936 = vmatprep.subr.mxu0 0.0
        %937 = vmatpush2.msra.mxu0 0.0
        %938 = vmatprep.subr.mxu0 0.0
        %939 = vmatpush2.msra.mxu0 0.0
        %940 = vmatprep.subr.mxu0 0.0
        %941 = vmatpush2.msra.mxu0 0.0
        %942 = vmatprep.subr.mxu0 0.0
        %943 = vmatpush2.msra.mxu0 0.0
        %944 = vmatprep.subr.mxu0 0.0
        %945 = vmatpush2.msra.mxu0 0.0
        %946 = vmatprep.subr.mxu0 0.0
        %947 = vmatpush2.msra.mxu0 0.0
        %948 = vmatprep.subr.mxu0 0.0
        %949 = vmatpush2.msra.mxu0 0.0
        %950 = vmatprep.subr.mxu0 0.0
        %951 = vmatpush2.msra.mxu0 0.0
        %952 = vmatprep.subr.mxu0 0.0
        %953 = vmatpush2.msra.mxu0 0.0
        %954 = vmatprep.subr.mxu0 0.0
        %955 = vmatpush2.msra.mxu0 0.0
        %956 = vmatprep.subr.mxu0 0.0
        %957 = vmatpush2.msra.mxu0 0.0
        %958 = vmatprep.subr.mxu0 0.0
        %959 = vmatpush2.msra.mxu0 0.0
        %960 = vmatprep.subr.mxu0 0.0
        %961 = vmatpush2.msra.mxu0 0.0
        %962 = vmatprep.subr.mxu0 0.0
        %963 = vmatpush2.msra.mxu0 0.0
        %964 = vmatprep.subr.mxu0 0.0
        %965 = vmatpush2.msra.mxu0 0.0
        %966 = vmatprep.mubr.f32.mxu0 0.0
        %967 = vmatmul.mubr.f32.gmra.mxu0 %v851
        %v968 = vpop.f32.mrf.mxu0
        %v969 = vadd.f32 0.0, %v968
        %v970 = vpop.f32.mrf.mxu0
        %971 = vmatprep.mubr.f32.mxu0 0.0
        %972 = vmatmul.mubr.f32.gmra.mxu0 %v854
        %v973 = vpop.f32.mrf.mxu0
        %v974 = vadd.f32 0.0, %v973
        %v975 = vpop.f32.mrf.mxu0
        %976 = vmatprep.mubr.f32.mxu0 0.0
        %977 = vmatmul.mubr.f32.gmra.mxu0 %v857
        %v978 = vpop.f32.mrf.mxu0
        %v979 = vadd.f32 0.0, %v978
        %v980 = vpop.f32.mrf.mxu0
        %981 = vmatprep.mubr.f32.mxu0 0.0
        %982 = vmatmul.mubr.f32.gmra.mxu0 %v860
        %v983 = vpop.f32.mrf.mxu0
        %v984 = vadd.f32 0.0, %v983
        %v985 = vpop.f32.mrf.mxu0
        %986 = vmatprep.mubr.f32.mxu0 0.0
        %987 = vmatmul.mubr.f32.gmra.mxu0 %v863
        %v988 = vpop.f32.mrf.mxu0
        %v989 = vadd.f32 0.0, %v988
        %v990 = vpop.f32.mrf.mxu0
        %991 = vmatprep.mubr.f32.mxu0 0.0
        %992 = vmatmul.mubr.f32.gmra.mxu0 %v866
        %v993 = vpop.f32.mrf.mxu0
        %v994 = vadd.f32 0.0, %v993
        %v995 = vpop.f32.mrf.mxu0
        %996 = vmatprep.mubr.f32.mxu0 0.0
        %997 = vmatmul.mubr.f32.gmra.mxu0 %v869
        %v998 = vpop.f32.mrf.mxu0
        %v999 = vadd.f32 0.0, %v998
        %v1000 = vpop.f32.mrf.mxu0
        %1001 = vmatprep.mubr.f32.mxu0 0.0
        %1002 = vmatmul.mubr.f32.gmra.mxu0 %v872
        %v1003 = vpop.f32.mrf.mxu0
        %v1004 = vadd.f32 0.0, %v1003
        %v1005 = vpop.f32.mrf.mxu0
        %1006 = vmatprep.mubr.f32.mxu0 0.0
        %1007 = vmatmul.mubr.f32.gmra.mxu0 %v875
        %v1008 = vpop.f32.mrf.mxu0
        %v1009 = vadd.f32 0.0, %v1008
        %v1010 = vpop.f32.mrf.mxu0
        %1011 = vmatprep.mubr.f32.mxu0 0.0
        %1012 = vmatmul.mubr.f32.gmra.mxu0 %v878
        %v1013 = vpop.f32.mrf.mxu0
        %v1014 = vadd.f32 0.0, %v1013
        %v1015 = vpop.f32.mrf.mxu0
        %1016 = vmatprep.mubr.f32.mxu0 0.0
        %1017 = vmatmul.mubr.f32.gmra.mxu0 %v881
        %v1018 = vpop.f32.mrf.mxu0
        %v1019 = vadd.f32 0.0, %v1018
        %v1020 = vpop.f32.mrf.mxu0
        %1021 = vmatprep.mubr.f32.mxu0 0.0
        %1022 = vmatmul.mubr.f32.gmra.mxu0 %v884
        %v1023 = vpop.f32.mrf.mxu0
        %v1024 = vadd.f32 0.0, %v1023
        %v1025 = vpop.f32.mrf.mxu0
        %1026 = vmatprep.mubr.f32.mxu0 0.0
        %1027 = vmatmul.mubr.f32.gmra.mxu0 %v887
        %v1028 = vpop.f32.mrf.mxu0
        %v1029 = vadd.f32 0.0, %v1028
        %v1030 = vpop.f32.mrf.mxu0
        %1031 = vmatprep.mubr.f32.mxu0 0.0
        %1032 = vmatmul.mubr.f32.gmra.mxu0 %v890
        %v1033 = vpop.f32.mrf.mxu0
        %v1034 = vadd.f32 0.0, %v1033
        %v1035 = vpop.f32.mrf.mxu0
        %1036 = vmatprep.mubr.f32.mxu0 0.0
        %1037 = vmatmul.mubr.f32.gmra.mxu0 %v893
        %v1038 = vpop.f32.mrf.mxu0
        %v1039 = vadd.f32 0.0, %v1038
        %v1040 = vpop.f32.mrf.mxu0
        %1041 = vmatprep.mubr.f32.mxu0 0.0
        %1042 = vmatmul.mubr.f32.gmra.mxu0 %v896
        %v1043 = vpop.f32.mrf.mxu0
        %v1044 = vadd.f32 0.0, %v1043
        %v1045 = vpop.f32.mrf.mxu0
        %1046 = vdwg.mxu0
        %v1048 = vsel %vm331, %v815, 0
        %v1051 = vsel %vm331, %v816, 0
        %v1054 = vsel %vm331, %v817, 0
        %v1057 = vsel %vm331, %v818, 0
        %v1060 = vsel %vm331, %v819, 0
        %v1063 = vsel %vm331, %v820, 0
        %v1066 = vsel %vm331, %v821, 0
        %v1069 = vsel %vm331, %v822, 0
        %v1072 = vsel %vm331, %v823, 0
        %v1075 = vsel %vm331, %v824, 0
        %v1078 = vsel %vm331, %v825, 0
        %v1081 = vsel %vm331, %v826, 0
        %v1084 = vsel %vm331, %v827, 0
        %v1087 = vsel %vm331, %v828, 0
        %v1090 = vsel %vm331, %v829, 0
        %v1093 = vsel %vm331, %v830, 0
        %v1096 = vsel %vm898, %v831, 0
        %1098 = vmatprep.subr.mxu0 0.0
        %1099 = vmatpush1.msra.mxu0 0.0
        %1100 = vmatprep.subr.mxu0 0.0
        %1101 = vmatpush1.msra.mxu0 0.0
        %1102 = vmatprep.subr.mxu0 0.0
        %1103 = vmatpush1.msra.mxu0 0.0
        %1104 = vmatprep.subr.mxu0 0.0
        %1105 = vmatpush1.msra.mxu0 0.0
        %1106 = vmatprep.subr.mxu0 0.0
        %1107 = vmatpush1.msra.mxu0 0.0
        %1108 = vmatprep.subr.mxu0 0.0
        %1109 = vmatpush1.msra.mxu0 0.0
        %1110 = vmatprep.subr.mxu0 0.0
        %1111 = vmatpush1.msra.mxu0 0.0
        %1112 = vmatprep.subr.mxu0 0.0
        %1113 = vmatpush1.msra.mxu0 0.0
        %1114 = vmatprep.subr.mxu0 0.0
        %1115 = vmatpush1.msra.mxu0 0.0
        %1116 = vmatprep.subr.mxu0 0.0
        %1117 = vmatpush1.msra.mxu0 0.0
        %1118 = vmatprep.subr.mxu0 0.0
        %1119 = vmatpush1.msra.mxu0 0.0
        %1120 = vmatprep.subr.mxu0 0.0
        %1121 = vmatpush1.msra.mxu0 0.0
        %1122 = vmatprep.subr.mxu0 0.0
        %1123 = vmatpush1.msra.mxu0 0.0
        %1124 = vmatprep.subr.mxu0 0.0
        %1125 = vmatpush1.msra.mxu0 0.0
        %1126 = vmatprep.subr.mxu0 0.0
        %1127 = vmatpush1.msra.mxu0 0.0
        %1128 = vmatprep.subr.mxu0 0.0
        %1129 = vmatpush1.msra.mxu0 %v1096
        %1130 = vmatprep.subr.mxu0 0.0
        %1131 = vmatpush2.msra.mxu0 0.0
        %1132 = vmatprep.subr.mxu0 0.0
        %1133 = vmatpush2.msra.mxu0 0.0
        %1134 = vmatprep.subr.mxu0 0.0
        %1135 = vmatpush2.msra.mxu0 0.0
        %1136 = vmatprep.subr.mxu0 0.0
        %1137 = vmatpush2.msra.mxu0 0.0
        %1138 = vmatprep.subr.mxu0 0.0
        %1139 = vmatpush2.msra.mxu0 0.0
        %1140 = vmatprep.subr.mxu0 0.0
        %1141 = vmatpush2.msra.mxu0 0.0
        %1142 = vmatprep.subr.mxu0 0.0
        %1143 = vmatpush2.msra.mxu0 0.0
        %1144 = vmatprep.subr.mxu0 0.0
        %1145 = vmatpush2.msra.mxu0 0.0
        %1146 = vmatprep.subr.mxu0 0.0
        %1147 = vmatpush2.msra.mxu0 0.0
        %1148 = vmatprep.subr.mxu0 0.0
        %1149 = vmatpush2.msra.mxu0 0.0
        %1150 = vmatprep.subr.mxu0 0.0
        %1151 = vmatpush2.msra.mxu0 0.0
        %1152 = vmatprep.subr.mxu0 0.0
        %1153 = vmatpush2.msra.mxu0 0.0
        %1154 = vmatprep.subr.mxu0 0.0
        %1155 = vmatpush2.msra.mxu0 0.0
        %1156 = vmatprep.subr.mxu0 0.0
        %1157 = vmatpush2.msra.mxu0 0.0
        %1158 = vmatprep.subr.mxu0 0.0
        %1159 = vmatpush2.msra.mxu0 0.0
        %1160 = vmatprep.subr.mxu0 0.0
        %1161 = vmatpush2.msra.mxu0 0.0
        %1162 = vmatprep.mubr.f32.mxu0 0.0
        %1163 = vmatmul.mubr.f32.gmra.mxu0 %v1048
        %v1164 = vpop.f32.mrf.mxu0
        %v1165 = vadd.f32 %v969, %v1164
        %v1166 = vpop.f32.mrf.mxu0
        %1167 = vmatprep.mubr.f32.mxu0 0.0
        %1168 = vmatmul.mubr.f32.gmra.mxu0 %v1051
        %v1169 = vpop.f32.mrf.mxu0
        %v1170 = vadd.f32 %v974, %v1169
        %v1171 = vpop.f32.mrf.mxu0
        %1172 = vmatprep.mubr.f32.mxu0 0.0
        %1173 = vmatmul.mubr.f32.gmra.mxu0 %v1054
        %v1174 = vpop.f32.mrf.mxu0
        %v1175 = vadd.f32 %v979, %v1174
        %v1176 = vpop.f32.mrf.mxu0
        %1177 = vmatprep.mubr.f32.mxu0 0.0
        %1178 = vmatmul.mubr.f32.gmra.mxu0 %v1057
        %v1179 = vpop.f32.mrf.mxu0
        %v1180 = vadd.f32 %v984, %v1179
        %v1181 = vpop.f32.mrf.mxu0
        %1182 = vmatprep.mubr.f32.mxu0 0.0
        %1183 = vmatmul.mubr.f32.gmra.mxu0 %v1060
        %v1184 = vpop.f32.mrf.mxu0
        %v1185 = vadd.f32 %v989, %v1184
        %v1186 = vpop.f32.mrf.mxu0
        %1187 = vmatprep.mubr.f32.mxu0 0.0
        %1188 = vmatmul.mubr.f32.gmra.mxu0 %v1063
        %v1189 = vpop.f32.mrf.mxu0
        %v1190 = vadd.f32 %v994, %v1189
        %v1191 = vpop.f32.mrf.mxu0
        %1192 = vmatprep.mubr.f32.mxu0 0.0
        %1193 = vmatmul.mubr.f32.gmra.mxu0 %v1066
        %v1194 = vpop.f32.mrf.mxu0
        %v1195 = vadd.f32 %v999, %v1194
        %v1196 = vpop.f32.mrf.mxu0
        %1197 = vmatprep.mubr.f32.mxu0 0.0
        %1198 = vmatmul.mubr.f32.gmra.mxu0 %v1069
        %v1199 = vpop.f32.mrf.mxu0
        %v1200 = vadd.f32 %v1004, %v1199
        %v1201 = vpop.f32.mrf.mxu0
        %1202 = vmatprep.mubr.f32.mxu0 0.0
        %1203 = vmatmul.mubr.f32.gmra.mxu0 %v1072
        %v1204 = vpop.f32.mrf.mxu0
        %v1205 = vadd.f32 %v1009, %v1204
        %v1206 = vpop.f32.mrf.mxu0
        %1207 = vmatprep.mubr.f32.mxu0 0.0
        %1208 = vmatmul.mubr.f32.gmra.mxu0 %v1075
        %v1209 = vpop.f32.mrf.mxu0
        %v1210 = vadd.f32 %v1014, %v1209
        %v1211 = vpop.f32.mrf.mxu0
        %1212 = vmatprep.mubr.f32.mxu0 0.0
        %1213 = vmatmul.mubr.f32.gmra.mxu0 %v1078
        %v1214 = vpop.f32.mrf.mxu0
        %v1215 = vadd.f32 %v1019, %v1214
        %v1216 = vpop.f32.mrf.mxu0
        %1217 = vmatprep.mubr.f32.mxu0 0.0
        %1218 = vmatmul.mubr.f32.gmra.mxu0 %v1081
        %v1219 = vpop.f32.mrf.mxu0
        %v1220 = vadd.f32 %v1024, %v1219
        %v1221 = vpop.f32.mrf.mxu0
        %1222 = vmatprep.mubr.f32.mxu0 0.0
        %1223 = vmatmul.mubr.f32.gmra.mxu0 %v1084
        %v1224 = vpop.f32.mrf.mxu0
        %v1225 = vadd.f32 %v1029, %v1224
        %v1226 = vpop.f32.mrf.mxu0
        %1227 = vmatprep.mubr.f32.mxu0 0.0
        %1228 = vmatmul.mubr.f32.gmra.mxu0 %v1087
        %v1229 = vpop.f32.mrf.mxu0
        %v1230 = vadd.f32 %v1034, %v1229
        %v1231 = vpop.f32.mrf.mxu0
        %1232 = vmatprep.mubr.f32.mxu0 0.0
        %1233 = vmatmul.mubr.f32.gmra.mxu0 %v1090
        %v1234 = vpop.f32.mrf.mxu0
        %v1235 = vadd.f32 %v1039, %v1234
        %v1236 = vpop.f32.mrf.mxu0
        %1237 = vmatprep.mubr.f32.mxu0 0.0
        %1238 = vmatmul.mubr.f32.gmra.mxu0 %v1093
        %v1239 = vpop.f32.mrf.mxu0
        %v1240 = vadd.f32 %v1044, %v1239
        %v1241 = vpop.f32.mrf.mxu0
        %1242 = vdwg.mxu0
        %v1243 = vld [vmem:[#allocation2 + $0x9] sm:$0xff]
        %v1244 = vld [vmem:[#allocation2 + $0x11] sm:$0xff]
        %v1245 = vld [vmem:[#allocation2 + $0x29] sm:$0xff]
        %v1246 = vld [vmem:[#allocation2 + $0x31] sm:$0xff]
        %v1247 = vld [vmem:[#allocation2 + $0x49] sm:$0xff]
        %v1248 = vld [vmem:[#allocation2 + $0x51] sm:$0xff]
        %v1249 = vld [vmem:[#allocation2 + $0x69] sm:$0xff]
        %v1250 = vld [vmem:[#allocation2 + $0x71] sm:$0xff]
        %v1251 = vld [vmem:[#allocation2 + $0x89] sm:$0xff]
        %v1252 = vld [vmem:[#allocation2 + $0x91] sm:$0xff]
        %v1253 = vld [vmem:[#allocation2 + $0xa9] sm:$0xff]
        %v1254 = vld [vmem:[#allocation2 + $0xb1] sm:$0xff]
        %v1255 = vld [vmem:[#allocation2 + $0xc9] sm:$0xff]
        %v1256 = vld [vmem:[#allocation2 + $0xd1] sm:$0xff]
        %v1257 = vld [vmem:[#allocation2 + $0xe9] sm:$0xff]
        %v1258 = vld [vmem:[#allocation2 + $0xf1] sm:$0xff]
        %s1259 = scalar_lea.vmem %s3, 8
        %v1260 = vld [vmem:[%s1259] sm:$0xf]
        %v1262 = vsel %vm331, %v1243, 0
        %v1265 = vsel %vm331, %v1244, 0
        %v1268 = vsel %vm331, %v1245, 0
        %v1271 = vsel %vm331, %v1246, 0
        %v1274 = vsel %vm331, %v1247, 0
        %v1277 = vsel %vm331, %v1248, 0
        %v1280 = vsel %vm331, %v1249, 0
        %v1283 = vsel %vm331, %v1250, 0
        %v1286 = vsel %vm331, %v1251, 0
        %v1289 = vsel %vm331, %v1252, 0
        %v1292 = vsel %vm331, %v1253, 0
        %v1295 = vsel %vm331, %v1254, 0
        %v1298 = vsel %vm331, %v1255, 0
        %v1301 = vsel %vm331, %v1256, 0
        %v1304 = vsel %vm331, %v1257, 0
        %v1307 = vsel %vm331, %v1258, 0
        %v1310 = vsel %vm898, %v1260, 0
        %1312 = vmatprep.subr.mxu0 0.0
        %1313 = vmatpush1.msra.mxu0 0.0
        %1314 = vmatprep.subr.mxu0 0.0
        %1315 = vmatpush1.msra.mxu0 0.0
        %1316 = vmatprep.subr.mxu0 0.0
        %1317 = vmatpush1.msra.mxu0 0.0
        %1318 = vmatprep.subr.mxu0 0.0
        %1319 = vmatpush1.msra.mxu0 0.0
        %1320 = vmatprep.subr.mxu0 0.0
        %1321 = vmatpush1.msra.mxu0 0.0
        %1322 = vmatprep.subr.mxu0 0.0
        %1323 = vmatpush1.msra.mxu0 0.0
        %1324 = vmatprep.subr.mxu0 0.0
        %1325 = vmatpush1.msra.mxu0 0.0
        %1326 = vmatprep.subr.mxu0 0.0
        %1327 = vmatpush1.msra.mxu0 0.0
        %1328 = vmatprep.subr.mxu0 0.0
        %1329 = vmatpush1.msra.mxu0 0.0
        %1330 = vmatprep.subr.mxu0 0.0
        %1331 = vmatpush1.msra.mxu0 0.0
        %1332 = vmatprep.subr.mxu0 0.0
        %1333 = vmatpush1.msra.mxu0 0.0
        %1334 = vmatprep.subr.mxu0 0.0
        %1335 = vmatpush1.msra.mxu0 0.0
        %1336 = vmatprep.subr.mxu0 0.0
        %1337 = vmatpush1.msra.mxu0 0.0
        %1338 = vmatprep.subr.mxu0 0.0
        %1339 = vmatpush1.msra.mxu0 0.0
        %1340 = vmatprep.subr.mxu0 0.0
        %1341 = vmatpush1.msra.mxu0 0.0
        %1342 = vmatprep.subr.mxu0 0.0
        %1343 = vmatpush1.msra.mxu0 %v1310
        %1344 = vmatprep.subr.mxu0 0.0
        %1345 = vmatpush2.msra.mxu0 0.0
        %1346 = vmatprep.subr.mxu0 0.0
        %1347 = vmatpush2.msra.mxu0 0.0
        %1348 = vmatprep.subr.mxu0 0.0
        %1349 = vmatpush2.msra.mxu0 0.0
        %1350 = vmatprep.subr.mxu0 0.0
        %1351 = vmatpush2.msra.mxu0 0.0
        %1352 = vmatprep.subr.mxu0 0.0
        %1353 = vmatpush2.msra.mxu0 0.0
        %1354 = vmatprep.subr.mxu0 0.0
        %1355 = vmatpush2.msra.mxu0 0.0
        %1356 = vmatprep.subr.mxu0 0.0
        %1357 = vmatpush2.msra.mxu0 0.0
        %1358 = vmatprep.subr.mxu0 0.0
        %1359 = vmatpush2.msra.mxu0 0.0
        %1360 = vmatprep.subr.mxu0 0.0
        %1361 = vmatpush2.msra.mxu0 0.0
        %1362 = vmatprep.subr.mxu0 0.0
        %1363 = vmatpush2.msra.mxu0 0.0
        %1364 = vmatprep.subr.mxu0 0.0
        %1365 = vmatpush2.msra.mxu0 0.0
        %1366 = vmatprep.subr.mxu0 0.0
        %1367 = vmatpush2.msra.mxu0 0.0
        %1368 = vmatprep.subr.mxu0 0.0
        %1369 = vmatpush2.msra.mxu0 0.0
        %1370 = vmatprep.subr.mxu0 0.0
        %1371 = vmatpush2.msra.mxu0 0.0
        %1372 = vmatprep.subr.mxu0 0.0
        %1373 = vmatpush2.msra.mxu0 0.0
        %1374 = vmatprep.subr.mxu0 0.0
        %1375 = vmatpush2.msra.mxu0 0.0
        %1376 = vmatprep.mubr.f32.mxu0 0.0
        %1377 = vmatmul.mubr.f32.gmra.mxu0 %v1262
        %v1378 = vpop.f32.mrf.mxu0
        %v1379 = vadd.f32 0.0, %v1378
        %v1380 = vpop.f32.mrf.mxu0
        %1381 = vmatprep.mubr.f32.mxu0 0.0
        %1382 = vmatmul.mubr.f32.gmra.mxu0 %v1265
        %v1383 = vpop.f32.mrf.mxu0
        %v1384 = vadd.f32 0.0, %v1383
        %v1385 = vpop.f32.mrf.mxu0
        %1386 = vmatprep.mubr.f32.mxu0 0.0
        %1387 = vmatmul.mubr.f32.gmra.mxu0 %v1268
        %v1388 = vpop.f32.mrf.mxu0
        %v1389 = vadd.f32 0.0, %v1388
        %v1390 = vpop.f32.mrf.mxu0
        %1391 = vmatprep.mubr.f32.mxu0 0.0
        %1392 = vmatmul.mubr.f32.gmra.mxu0 %v1271
        %v1393 = vpop.f32.mrf.mxu0
        %v1394 = vadd.f32 0.0, %v1393
        %v1395 = vpop.f32.mrf.mxu0
        %1396 = vmatprep.mubr.f32.mxu0 0.0
        %1397 = vmatmul.mubr.f32.gmra.mxu0 %v1274
        %v1398 = vpop.f32.mrf.mxu0
        %v1399 = vadd.f32 0.0, %v1398
        %v1400 = vpop.f32.mrf.mxu0
        %1401 = vmatprep.mubr.f32.mxu0 0.0
        %1402 = vmatmul.mubr.f32.gmra.mxu0 %v1277
        %v1403 = vpop.f32.mrf.mxu0
        %v1404 = vadd.f32 0.0, %v1403
        %v1405 = vpop.f32.mrf.mxu0
        %1406 = vmatprep.mubr.f32.mxu0 0.0
        %1407 = vmatmul.mubr.f32.gmra.mxu0 %v1280
        %v1408 = vpop.f32.mrf.mxu0
        %v1409 = vadd.f32 0.0, %v1408
        %v1410 = vpop.f32.mrf.mxu0
        %1411 = vmatprep.mubr.f32.mxu0 0.0
        %1412 = vmatmul.mubr.f32.gmra.mxu0 %v1283
        %v1413 = vpop.f32.mrf.mxu0
        %v1414 = vadd.f32 0.0, %v1413
        %v1415 = vpop.f32.mrf.mxu0
        %1416 = vmatprep.mubr.f32.mxu0 0.0
        %1417 = vmatmul.mubr.f32.gmra.mxu0 %v1286
        %v1418 = vpop.f32.mrf.mxu0
        %v1419 = vadd.f32 0.0, %v1418
        %v1420 = vpop.f32.mrf.mxu0
        %1421 = vmatprep.mubr.f32.mxu0 0.0
        %1422 = vmatmul.mubr.f32.gmra.mxu0 %v1289
        %v1423 = vpop.f32.mrf.mxu0
        %v1424 = vadd.f32 0.0, %v1423
        %v1425 = vpop.f32.mrf.mxu0
        %1426 = vmatprep.mubr.f32.mxu0 0.0
        %1427 = vmatmul.mubr.f32.gmra.mxu0 %v1292
        %v1428 = vpop.f32.mrf.mxu0
        %v1429 = vadd.f32 0.0, %v1428
        %v1430 = vpop.f32.mrf.mxu0
        %1431 = vmatprep.mubr.f32.mxu0 0.0
        %1432 = vmatmul.mubr.f32.gmra.mxu0 %v1295
        %v1433 = vpop.f32.mrf.mxu0
        %v1434 = vadd.f32 0.0, %v1433
        %v1435 = vpop.f32.mrf.mxu0
        %1436 = vmatprep.mubr.f32.mxu0 0.0
        %1437 = vmatmul.mubr.f32.gmra.mxu0 %v1298
        %v1438 = vpop.f32.mrf.mxu0
        %v1439 = vadd.f32 0.0, %v1438
        %v1440 = vpop.f32.mrf.mxu0
        %1441 = vmatprep.mubr.f32.mxu0 0.0
        %1442 = vmatmul.mubr.f32.gmra.mxu0 %v1301
        %v1443 = vpop.f32.mrf.mxu0
        %v1444 = vadd.f32 0.0, %v1443
        %v1445 = vpop.f32.mrf.mxu0
        %1446 = vmatprep.mubr.f32.mxu0 0.0
        %1447 = vmatmul.mubr.f32.gmra.mxu0 %v1304
        %v1448 = vpop.f32.mrf.mxu0
        %v1449 = vadd.f32 0.0, %v1448
        %v1450 = vpop.f32.mrf.mxu0
        %1451 = vmatprep.mubr.f32.mxu0 0.0
        %1452 = vmatmul.mubr.f32.gmra.mxu0 %v1307
        %v1453 = vpop.f32.mrf.mxu0
        %v1454 = vadd.f32 0.0, %v1453
        %v1455 = vpop.f32.mrf.mxu0
        %1456 = vdwg.mxu0
        %v1457 = vadd.f32 %v1165, %v1379
        %v1458 = vadd.f32 %v1170, %v1384
        %v1459 = vadd.f32 %v1175, %v1389
        %v1460 = vadd.f32 %v1180, %v1394
        %v1461 = vadd.f32 %v1185, %v1399
        %v1462 = vadd.f32 %v1190, %v1404
        %v1463 = vadd.f32 %v1195, %v1409
        %v1464 = vadd.f32 %v1200, %v1414
        %v1465 = vadd.f32 %v1205, %v1419
        %v1466 = vadd.f32 %v1210, %v1424
        %v1467 = vadd.f32 %v1215, %v1429
        %v1468 = vadd.f32 %v1220, %v1434
        %v1469 = vadd.f32 %v1225, %v1439
        %v1470 = vadd.f32 %v1230, %v1444
        %v1471 = vadd.f32 %v1235, %v1449
        %v1472 = vadd.f32 %v1240, %v1454
        %v1473 = vld [vmem:[%s591 + $0x7] sm:$0xff]
        %v1474 = vld [vmem:[%s591 + $0xf] sm:$0xff]
        %v1475 = vld [vmem:[%s591 + $0x27] sm:$0xff]
        %v1476 = vld [vmem:[%s591 + $0x2f] sm:$0xff]
        %v1477 = vld [vmem:[%s591 + $0x47] sm:$0xff]
        %v1478 = vld [vmem:[%s591 + $0x4f] sm:$0xff]
        %v1479 = vld [vmem:[%s591 + $0x67] sm:$0xff]
        %v1480 = vld [vmem:[%s591 + $0x6f] sm:$0xff]
        %v1481 = vld [vmem:[%s591 + $0x87] sm:$0xff]
        %v1482 = vld [vmem:[%s591 + $0x8f] sm:$0xff]
        %v1483 = vld [vmem:[%s591 + $0xa7] sm:$0xff]
        %v1484 = vld [vmem:[%s591 + $0xaf] sm:$0xff]
        %v1485 = vld [vmem:[%s591 + $0xc7] sm:$0xff]
        %v1486 = vld [vmem:[%s591 + $0xcf] sm:$0xff]
        %v1487 = vld [vmem:[%s591 + $0xe7] sm:$0xff]
        %v1488 = vld [vmem:[%s591 + $0xef] sm:$0xff]
        %s1489 = scalar_lea.vmem %s3, 12
        %v1490 = vld [vmem:[%s1489] sm:$0xf]
        %v1492 = vsel %vm331, %v1473, 0
        %v1495 = vsel %vm331, %v1474, 0
        %v1498 = vsel %vm331, %v1475, 0
        %v1501 = vsel %vm331, %v1476, 0
        %v1504 = vsel %vm331, %v1477, 0
        %v1507 = vsel %vm331, %v1478, 0
        %v1510 = vsel %vm331, %v1479, 0
        %v1513 = vsel %vm331, %v1480, 0
        %v1516 = vsel %vm331, %v1481, 0
        %v1519 = vsel %vm331, %v1482, 0
        %v1522 = vsel %vm331, %v1483, 0
        %v1525 = vsel %vm331, %v1484, 0
        %v1528 = vsel %vm331, %v1485, 0
        %v1531 = vsel %vm331, %v1486, 0
        %v1534 = vsel %vm331, %v1487, 0
        %v1537 = vsel %vm331, %v1488, 0
        %v1540 = vsel %vm898, %v1490, 0
        %1542 = vmatprep.subr.mxu0 0.0
        %1543 = vmatpush1.msra.mxu0 0.0
        %1544 = vmatprep.subr.mxu0 0.0
        %1545 = vmatpush1.msra.mxu0 0.0
        %1546 = vmatprep.subr.mxu0 0.0
        %1547 = vmatpush1.msra.mxu0 0.0
        %1548 = vmatprep.subr.mxu0 0.0
        %1549 = vmatpush1.msra.mxu0 0.0
        %1550 = vmatprep.subr.mxu0 0.0
        %1551 = vmatpush1.msra.mxu0 0.0
        %1552 = vmatprep.subr.mxu0 0.0
        %1553 = vmatpush1.msra.mxu0 0.0
        %1554 = vmatprep.subr.mxu0 0.0
        %1555 = vmatpush1.msra.mxu0 0.0
        %1556 = vmatprep.subr.mxu0 0.0
        %1557 = vmatpush1.msra.mxu0 0.0
        %1558 = vmatprep.subr.mxu0 0.0
        %1559 = vmatpush1.msra.mxu0 0.0
        %1560 = vmatprep.subr.mxu0 0.0
        %1561 = vmatpush1.msra.mxu0 0.0
        %1562 = vmatprep.subr.mxu0 0.0
        %1563 = vmatpush1.msra.mxu0 0.0
        %1564 = vmatprep.subr.mxu0 0.0
        %1565 = vmatpush1.msra.mxu0 0.0
        %1566 = vmatprep.subr.mxu0 0.0
        %1567 = vmatpush1.msra.mxu0 0.0
        %1568 = vmatprep.subr.mxu0 0.0
        %1569 = vmatpush1.msra.mxu0 0.0
        %1570 = vmatprep.subr.mxu0 0.0
        %1571 = vmatpush1.msra.mxu0 0.0
        %1572 = vmatprep.subr.mxu0 0.0
        %1573 = vmatpush1.msra.mxu0 %v1540
        %1574 = vmatprep.subr.mxu0 0.0
        %1575 = vmatpush2.msra.mxu0 0.0
        %1576 = vmatprep.subr.mxu0 0.0
        %1577 = vmatpush2.msra.mxu0 0.0
        %1578 = vmatprep.subr.mxu0 0.0
        %1579 = vmatpush2.msra.mxu0 0.0
        %1580 = vmatprep.subr.mxu0 0.0
        %1581 = vmatpush2.msra.mxu0 0.0
        %1582 = vmatprep.subr.mxu0 0.0
        %1583 = vmatpush2.msra.mxu0 0.0
        %1584 = vmatprep.subr.mxu0 0.0
        %1585 = vmatpush2.msra.mxu0 0.0
        %1586 = vmatprep.subr.mxu0 0.0
        %1587 = vmatpush2.msra.mxu0 0.0
        %1588 = vmatprep.subr.mxu0 0.0
        %1589 = vmatpush2.msra.mxu0 0.0
        %1590 = vmatprep.subr.mxu0 0.0
        %1591 = vmatpush2.msra.mxu0 0.0
        %1592 = vmatprep.subr.mxu0 0.0
        %1593 = vmatpush2.msra.mxu0 0.0
        %1594 = vmatprep.subr.mxu0 0.0
        %1595 = vmatpush2.msra.mxu0 0.0
        %1596 = vmatprep.subr.mxu0 0.0
        %1597 = vmatpush2.msra.mxu0 0.0
        %1598 = vmatprep.subr.mxu0 0.0
        %1599 = vmatpush2.msra.mxu0 0.0
        %1600 = vmatprep.subr.mxu0 0.0
        %1601 = vmatpush2.msra.mxu0 0.0
        %1602 = vmatprep.subr.mxu0 0.0
        %1603 = vmatpush2.msra.mxu0 0.0
        %1604 = vmatprep.subr.mxu0 0.0
        %1605 = vmatpush2.msra.mxu0 0.0
        %1606 = vmatprep.mubr.f32.mxu0 0.0
        %1607 = vmatmul.mubr.f32.gmra.mxu0 %v1492
        %v1608 = vpop.f32.mrf.mxu0
        %v1609 = vadd.f32 0.0, %v1608
        %v1610 = vpop.f32.mrf.mxu0
        %1611 = vmatprep.mubr.f32.mxu0 0.0
        %1612 = vmatmul.mubr.f32.gmra.mxu0 %v1495
        %v1613 = vpop.f32.mrf.mxu0
        %v1614 = vadd.f32 0.0, %v1613
        %v1615 = vpop.f32.mrf.mxu0
        %1616 = vmatprep.mubr.f32.mxu0 0.0
        %1617 = vmatmul.mubr.f32.gmra.mxu0 %v1498
        %v1618 = vpop.f32.mrf.mxu0
        %v1619 = vadd.f32 0.0, %v1618
        %v1620 = vpop.f32.mrf.mxu0
        %1621 = vmatprep.mubr.f32.mxu0 0.0
        %1622 = vmatmul.mubr.f32.gmra.mxu0 %v1501
        %v1623 = vpop.f32.mrf.mxu0
        %v1624 = vadd.f32 0.0, %v1623
        %v1625 = vpop.f32.mrf.mxu0
        %1626 = vmatprep.mubr.f32.mxu0 0.0
        %1627 = vmatmul.mubr.f32.gmra.mxu0 %v1504
        %v1628 = vpop.f32.mrf.mxu0
        %v1629 = vadd.f32 0.0, %v1628
        %v1630 = vpop.f32.mrf.mxu0
        %1631 = vmatprep.mubr.f32.mxu0 0.0
        %1632 = vmatmul.mubr.f32.gmra.mxu0 %v1507
        %v1633 = vpop.f32.mrf.mxu0
        %v1634 = vadd.f32 0.0, %v1633
        %v1635 = vpop.f32.mrf.mxu0
        %1636 = vmatprep.mubr.f32.mxu0 0.0
        %1637 = vmatmul.mubr.f32.gmra.mxu0 %v1510
        %v1638 = vpop.f32.mrf.mxu0
        %v1639 = vadd.f32 0.0, %v1638
        %v1640 = vpop.f32.mrf.mxu0
        %1641 = vmatprep.mubr.f32.mxu0 0.0
        %1642 = vmatmul.mubr.f32.gmra.mxu0 %v1513
        %v1643 = vpop.f32.mrf.mxu0
        %v1644 = vadd.f32 0.0, %v1643
        %v1645 = vpop.f32.mrf.mxu0
        %1646 = vmatprep.mubr.f32.mxu0 0.0
        %1647 = vmatmul.mubr.f32.gmra.mxu0 %v1516
        %v1648 = vpop.f32.mrf.mxu0
        %v1649 = vadd.f32 0.0, %v1648
        %v1650 = vpop.f32.mrf.mxu0
        %1651 = vmatprep.mubr.f32.mxu0 0.0
        %1652 = vmatmul.mubr.f32.gmra.mxu0 %v1519
        %v1653 = vpop.f32.mrf.mxu0
        %v1654 = vadd.f32 0.0, %v1653
        %v1655 = vpop.f32.mrf.mxu0
        %1656 = vmatprep.mubr.f32.mxu0 0.0
        %1657 = vmatmul.mubr.f32.gmra.mxu0 %v1522
        %v1658 = vpop.f32.mrf.mxu0
        %v1659 = vadd.f32 0.0, %v1658
        %v1660 = vpop.f32.mrf.mxu0
        %1661 = vmatprep.mubr.f32.mxu0 0.0
        %1662 = vmatmul.mubr.f32.gmra.mxu0 %v1525
        %v1663 = vpop.f32.mrf.mxu0
        %v1664 = vadd.f32 0.0, %v1663
        %v1665 = vpop.f32.mrf.mxu0
        %1666 = vmatprep.mubr.f32.mxu0 0.0
        %1667 = vmatmul.mubr.f32.gmra.mxu0 %v1528
        %v1668 = vpop.f32.mrf.mxu0
        %v1669 = vadd.f32 0.0, %v1668
        %v1670 = vpop.f32.mrf.mxu0
        %1671 = vmatprep.mubr.f32.mxu0 0.0
        %1672 = vmatmul.mubr.f32.gmra.mxu0 %v1531
        %v1673 = vpop.f32.mrf.mxu0
        %v1674 = vadd.f32 0.0, %v1673
        %v1675 = vpop.f32.mrf.mxu0
        %1676 = vmatprep.mubr.f32.mxu0 0.0
        %1677 = vmatmul.mubr.f32.gmra.mxu0 %v1534
        %v1678 = vpop.f32.mrf.mxu0
        %v1679 = vadd.f32 0.0, %v1678
        %v1680 = vpop.f32.mrf.mxu0
        %1681 = vmatprep.mubr.f32.mxu0 0.0
        %1682 = vmatmul.mubr.f32.gmra.mxu0 %v1537
        %v1683 = vpop.f32.mrf.mxu0
        %v1684 = vadd.f32 0.0, %v1683
        %v1685 = vpop.f32.mrf.mxu0
        %1686 = vdwg.mxu0
        %v1687 = vadd.f32 %v1457, %v1609
        %v1688 = vadd.f32 %v1458, %v1614
        %v1689 = vadd.f32 %v1459, %v1619
        %v1690 = vadd.f32 %v1460, %v1624
        %v1691 = vadd.f32 %v1461, %v1629
        %v1692 = vadd.f32 %v1462, %v1634
        %v1693 = vadd.f32 %v1463, %v1639
        %v1694 = vadd.f32 %v1464, %v1644
        %v1695 = vadd.f32 %v1465, %v1649
        %v1696 = vadd.f32 %v1466, %v1654
        %v1697 = vadd.f32 %v1467, %v1659
        %v1698 = vadd.f32 %v1468, %v1664
        %v1699 = vadd.f32 %v1469, %v1669
        %v1700 = vadd.f32 %v1470, %v1674
        %v1701 = vadd.f32 %v1471, %v1679
        %v1702 = vadd.f32 %v1472, %v1684
        %v1703 = vld [vmem:[%s591 + $0x8] sm:$0xff]
        %v1704 = vld [vmem:[%s591 + $0x10] sm:$0xff]
        %v1705 = vld [vmem:[%s591 + $0x28] sm:$0xff]
        %v1706 = vld [vmem:[%s591 + $0x30] sm:$0xff]
        %v1707 = vld [vmem:[%s591 + $0x48] sm:$0xff]
        %v1708 = vld [vmem:[%s591 + $0x50] sm:$0xff]
        %v1709 = vld [vmem:[%s591 + $0x68] sm:$0xff]
        %v1710 = vld [vmem:[%s591 + $0x70] sm:$0xff]
        %v1711 = vld [vmem:[%s591 + $0x88] sm:$0xff]
        %v1712 = vld [vmem:[%s591 + $0x90] sm:$0xff]
        %v1713 = vld [vmem:[%s591 + $0xa8] sm:$0xff]
        %v1714 = vld [vmem:[%s591 + $0xb0] sm:$0xff]
        %v1715 = vld [vmem:[%s591 + $0xc8] sm:$0xff]
        %v1716 = vld [vmem:[%s591 + $0xd0] sm:$0xff]
        %v1717 = vld [vmem:[%s591 + $0xe8] sm:$0xff]
        %v1718 = vld [vmem:[%s591 + $0xf0] sm:$0xff]
        %s1719 = scalar_lea.vmem %s3, 16
        %v1720 = vld [vmem:[%s1719] sm:$0xf]
        %v1722 = vsel %vm331, %v1703, 0
        %v1725 = vsel %vm331, %v1704, 0
        %v1728 = vsel %vm331, %v1705, 0
        %v1731 = vsel %vm331, %v1706, 0
        %v1734 = vsel %vm331, %v1707, 0
        %v1737 = vsel %vm331, %v1708, 0
        %v1740 = vsel %vm331, %v1709, 0
        %v1743 = vsel %vm331, %v1710, 0
        %v1746 = vsel %vm331, %v1711, 0
        %v1749 = vsel %vm331, %v1712, 0
        %v1752 = vsel %vm331, %v1713, 0
        %v1755 = vsel %vm331, %v1714, 0
        %v1758 = vsel %vm331, %v1715, 0
        %v1761 = vsel %vm331, %v1716, 0
        %v1764 = vsel %vm331, %v1717, 0
        %v1767 = vsel %vm331, %v1718, 0
        %v1770 = vsel %vm898, %v1720, 0
        %1772 = vmatprep.subr.mxu0 0.0
        %1773 = vmatpush1.msra.mxu0 0.0
        %1774 = vmatprep.subr.mxu0 0.0
        %1775 = vmatpush1.msra.mxu0 0.0
        %1776 = vmatprep.subr.mxu0 0.0
        %1777 = vmatpush1.msra.mxu0 0.0
        %1778 = vmatprep.subr.mxu0 0.0
        %1779 = vmatpush1.msra.mxu0 0.0
        %1780 = vmatprep.subr.mxu0 0.0
        %1781 = vmatpush1.msra.mxu0 0.0
        %1782 = vmatprep.subr.mxu0 0.0
        %1783 = vmatpush1.msra.mxu0 0.0
        %1784 = vmatprep.subr.mxu0 0.0
        %1785 = vmatpush1.msra.mxu0 0.0
        %1786 = vmatprep.subr.mxu0 0.0
        %1787 = vmatpush1.msra.mxu0 0.0
        %1788 = vmatprep.subr.mxu0 0.0
        %1789 = vmatpush1.msra.mxu0 0.0
        %1790 = vmatprep.subr.mxu0 0.0
        %1791 = vmatpush1.msra.mxu0 0.0
        %1792 = vmatprep.subr.mxu0 0.0
        %1793 = vmatpush1.msra.mxu0 0.0
        %1794 = vmatprep.subr.mxu0 0.0
        %1795 = vmatpush1.msra.mxu0 0.0
        %1796 = vmatprep.subr.mxu0 0.0
        %1797 = vmatpush1.msra.mxu0 0.0
        %1798 = vmatprep.subr.mxu0 0.0
        %1799 = vmatpush1.msra.mxu0 0.0
        %1800 = vmatprep.subr.mxu0 0.0
        %1801 = vmatpush1.msra.mxu0 0.0
        %1802 = vmatprep.subr.mxu0 0.0
        %1803 = vmatpush1.msra.mxu0 %v1770
        %1804 = vmatprep.subr.mxu0 0.0
        %1805 = vmatpush2.msra.mxu0 0.0
        %1806 = vmatprep.subr.mxu0 0.0
        %1807 = vmatpush2.msra.mxu0 0.0
        %1808 = vmatprep.subr.mxu0 0.0
        %1809 = vmatpush2.msra.mxu0 0.0
        %1810 = vmatprep.subr.mxu0 0.0
        %1811 = vmatpush2.msra.mxu0 0.0
        %1812 = vmatprep.subr.mxu0 0.0
        %1813 = vmatpush2.msra.mxu0 0.0
        %1814 = vmatprep.subr.mxu0 0.0
        %1815 = vmatpush2.msra.mxu0 0.0
        %1816 = vmatprep.subr.mxu0 0.0
        %1817 = vmatpush2.msra.mxu0 0.0
        %1818 = vmatprep.subr.mxu0 0.0
        %1819 = vmatpush2.msra.mxu0 0.0
        %1820 = vmatprep.subr.mxu0 0.0
        %1821 = vmatpush2.msra.mxu0 0.0
        %1822 = vmatprep.subr.mxu0 0.0
        %1823 = vmatpush2.msra.mxu0 0.0
        %1824 = vmatprep.subr.mxu0 0.0
        %1825 = vmatpush2.msra.mxu0 0.0
        %1826 = vmatprep.subr.mxu0 0.0
        %1827 = vmatpush2.msra.mxu0 0.0
        %1828 = vmatprep.subr.mxu0 0.0
        %1829 = vmatpush2.msra.mxu0 0.0
        %1830 = vmatprep.subr.mxu0 0.0
        %1831 = vmatpush2.msra.mxu0 0.0
        %1832 = vmatprep.subr.mxu0 0.0
        %1833 = vmatpush2.msra.mxu0 0.0
        %1834 = vmatprep.subr.mxu0 0.0
        %1835 = vmatpush2.msra.mxu0 0.0
        %1836 = vmatprep.mubr.f32.mxu0 0.0
        %1837 = vmatmul.mubr.f32.gmra.mxu0 %v1722
        %v1838 = vpop.f32.mrf.mxu0
        %v1839 = vadd.f32 0.0, %v1838
        %v1840 = vpop.f32.mrf.mxu0
        %1841 = vmatprep.mubr.f32.mxu0 0.0
        %1842 = vmatmul.mubr.f32.gmra.mxu0 %v1725
        %v1843 = vpop.f32.mrf.mxu0
        %v1844 = vadd.f32 0.0, %v1843
        %v1845 = vpop.f32.mrf.mxu0
        %1846 = vmatprep.mubr.f32.mxu0 0.0
        %1847 = vmatmul.mubr.f32.gmra.mxu0 %v1728
        %v1848 = vpop.f32.mrf.mxu0
        %v1849 = vadd.f32 0.0, %v1848
        %v1850 = vpop.f32.mrf.mxu0
        %1851 = vmatprep.mubr.f32.mxu0 0.0
        %1852 = vmatmul.mubr.f32.gmra.mxu0 %v1731
        %v1853 = vpop.f32.mrf.mxu0
        %v1854 = vadd.f32 0.0, %v1853
        %v1855 = vpop.f32.mrf.mxu0
        %1856 = vmatprep.mubr.f32.mxu0 0.0
        %1857 = vmatmul.mubr.f32.gmra.mxu0 %v1734
        %v1858 = vpop.f32.mrf.mxu0
        %v1859 = vadd.f32 0.0, %v1858
        %v1860 = vpop.f32.mrf.mxu0
        %1861 = vmatprep.mubr.f32.mxu0 0.0
        %1862 = vmatmul.mubr.f32.gmra.mxu0 %v1737
        %v1863 = vpop.f32.mrf.mxu0
        %v1864 = vadd.f32 0.0, %v1863
        %v1865 = vpop.f32.mrf.mxu0
        %1866 = vmatprep.mubr.f32.mxu0 0.0
        %1867 = vmatmul.mubr.f32.gmra.mxu0 %v1740
        %v1868 = vpop.f32.mrf.mxu0
        %v1869 = vadd.f32 0.0, %v1868
        %v1870 = vpop.f32.mrf.mxu0
        %1871 = vmatprep.mubr.f32.mxu0 0.0
        %1872 = vmatmul.mubr.f32.gmra.mxu0 %v1743
        %v1873 = vpop.f32.mrf.mxu0
        %v1874 = vadd.f32 0.0, %v1873
        %v1875 = vpop.f32.mrf.mxu0
        %1876 = vmatprep.mubr.f32.mxu0 0.0
        %1877 = vmatmul.mubr.f32.gmra.mxu0 %v1746
        %v1878 = vpop.f32.mrf.mxu0
        %v1879 = vadd.f32 0.0, %v1878
        %v1880 = vpop.f32.mrf.mxu0
        %1881 = vmatprep.mubr.f32.mxu0 0.0
        %1882 = vmatmul.mubr.f32.gmra.mxu0 %v1749
        %v1883 = vpop.f32.mrf.mxu0
        %v1884 = vadd.f32 0.0, %v1883
        %v1885 = vpop.f32.mrf.mxu0
        %1886 = vmatprep.mubr.f32.mxu0 0.0
        %1887 = vmatmul.mubr.f32.gmra.mxu0 %v1752
        %v1888 = vpop.f32.mrf.mxu0
        %v1889 = vadd.f32 0.0, %v1888
        %v1890 = vpop.f32.mrf.mxu0
        %1891 = vmatprep.mubr.f32.mxu0 0.0
        %1892 = vmatmul.mubr.f32.gmra.mxu0 %v1755
        %v1893 = vpop.f32.mrf.mxu0
        %v1894 = vadd.f32 0.0, %v1893
        %v1895 = vpop.f32.mrf.mxu0
        %1896 = vmatprep.mubr.f32.mxu0 0.0
        %1897 = vmatmul.mubr.f32.gmra.mxu0 %v1758
        %v1898 = vpop.f32.mrf.mxu0
        %v1899 = vadd.f32 0.0, %v1898
        %v1900 = vpop.f32.mrf.mxu0
        %1901 = vmatprep.mubr.f32.mxu0 0.0
        %1902 = vmatmul.mubr.f32.gmra.mxu0 %v1761
        %v1903 = vpop.f32.mrf.mxu0
        %v1904 = vadd.f32 0.0, %v1903
        %v1905 = vpop.f32.mrf.mxu0
        %1906 = vmatprep.mubr.f32.mxu0 0.0
        %1907 = vmatmul.mubr.f32.gmra.mxu0 %v1764
        %v1908 = vpop.f32.mrf.mxu0
        %v1909 = vadd.f32 0.0, %v1908
        %v1910 = vpop.f32.mrf.mxu0
        %1911 = vmatprep.mubr.f32.mxu0 0.0
        %1912 = vmatmul.mubr.f32.gmra.mxu0 %v1767
        %v1913 = vpop.f32.mrf.mxu0
        %v1914 = vadd.f32 0.0, %v1913
        %v1915 = vpop.f32.mrf.mxu0
        %1916 = vdwg.mxu0
        %v1917 = vadd.f32 %v1687, %v1839
        %v1918 = vadd.f32 %v1688, %v1844
        %v1919 = vadd.f32 %v1689, %v1849
        %v1920 = vadd.f32 %v1690, %v1854
        %v1921 = vadd.f32 %v1691, %v1859
        %v1922 = vadd.f32 %v1692, %v1864
        %v1923 = vadd.f32 %v1693, %v1869
        %v1924 = vadd.f32 %v1694, %v1874
        %v1925 = vadd.f32 %v1695, %v1879
        %v1926 = vadd.f32 %v1696, %v1884
        %v1927 = vadd.f32 %v1697, %v1889
        %v1928 = vadd.f32 %v1698, %v1894
        %v1929 = vadd.f32 %v1699, %v1899
        %v1930 = vadd.f32 %v1700, %v1904
        %v1931 = vadd.f32 %v1701, %v1909
        %v1932 = vadd.f32 %v1702, %v1914
        %v1933 = vld [vmem:[%s591 + $0x9] sm:$0xff]
        %v1934 = vld [vmem:[%s591 + $0x11] sm:$0xff]
        %v1935 = vld [vmem:[%s591 + $0x29] sm:$0xff]
        %v1936 = vld [vmem:[%s591 + $0x31] sm:$0xff]
        %v1937 = vld [vmem:[%s591 + $0x49] sm:$0xff]
        %v1938 = vld [vmem:[%s591 + $0x51] sm:$0xff]
        %v1939 = vld [vmem:[%s591 + $0x69] sm:$0xff]
        %v1940 = vld [vmem:[%s591 + $0x71] sm:$0xff]
        %v1941 = vld [vmem:[%s591 + $0x89] sm:$0xff]
        %v1942 = vld [vmem:[%s591 + $0x91] sm:$0xff]
        %v1943 = vld [vmem:[%s591 + $0xa9] sm:$0xff]
        %v1944 = vld [vmem:[%s591 + $0xb1] sm:$0xff]
        %v1945 = vld [vmem:[%s591 + $0xc9] sm:$0xff]
        %v1946 = vld [vmem:[%s591 + $0xd1] sm:$0xff]
        %v1947 = vld [vmem:[%s591 + $0xe9] sm:$0xff]
        %v1948 = vld [vmem:[%s591 + $0xf1] sm:$0xff]
        %s1949 = scalar_lea.vmem %s3, 20
        %v1950 = vld [vmem:[%s1949] sm:$0xf]
        %v1952 = vsel %vm331, %v1933, 0
        %v1955 = vsel %vm331, %v1934, 0
        %v1958 = vsel %vm331, %v1935, 0
        %v1961 = vsel %vm331, %v1936, 0
        %v1964 = vsel %vm331, %v1937, 0
        %v1967 = vsel %vm331, %v1938, 0
        %v1970 = vsel %vm331, %v1939, 0
        %v1973 = vsel %vm331, %v1940, 0
        %v1976 = vsel %vm331, %v1941, 0
        %v1979 = vsel %vm331, %v1942, 0
        %v1982 = vsel %vm331, %v1943, 0
        %v1985 = vsel %vm331, %v1944, 0
        %v1988 = vsel %vm331, %v1945, 0
        %v1991 = vsel %vm331, %v1946, 0
        %v1994 = vsel %vm331, %v1947, 0
        %v1997 = vsel %vm331, %v1948, 0
        %v2000 = vsel %vm898, %v1950, 0
        %2002 = vmatprep.subr.mxu0 0.0
        %2003 = vmatpush1.msra.mxu0 0.0
        %2004 = vmatprep.subr.mxu0 0.0
        %2005 = vmatpush1.msra.mxu0 0.0
        %2006 = vmatprep.subr.mxu0 0.0
        %2007 = vmatpush1.msra.mxu0 0.0
        %2008 = vmatprep.subr.mxu0 0.0
        %2009 = vmatpush1.msra.mxu0 0.0
        %2010 = vmatprep.subr.mxu0 0.0
        %2011 = vmatpush1.msra.mxu0 0.0
        %2012 = vmatprep.subr.mxu0 0.0
        %2013 = vmatpush1.msra.mxu0 0.0
        %2014 = vmatprep.subr.mxu0 0.0
        %2015 = vmatpush1.msra.mxu0 0.0
        %2016 = vmatprep.subr.mxu0 0.0
        %2017 = vmatpush1.msra.mxu0 0.0
        %2018 = vmatprep.subr.mxu0 0.0
        %2019 = vmatpush1.msra.mxu0 0.0
        %2020 = vmatprep.subr.mxu0 0.0
        %2021 = vmatpush1.msra.mxu0 0.0
        %2022 = vmatprep.subr.mxu0 0.0
        %2023 = vmatpush1.msra.mxu0 0.0
        %2024 = vmatprep.subr.mxu0 0.0
        %2025 = vmatpush1.msra.mxu0 0.0
        %2026 = vmatprep.subr.mxu0 0.0
        %2027 = vmatpush1.msra.mxu0 0.0
        %2028 = vmatprep.subr.mxu0 0.0
        %2029 = vmatpush1.msra.mxu0 0.0
        %2030 = vmatprep.subr.mxu0 0.0
        %2031 = vmatpush1.msra.mxu0 0.0
        %2032 = vmatprep.subr.mxu0 0.0
        %2033 = vmatpush1.msra.mxu0 %v2000
        %2034 = vmatprep.subr.mxu0 0.0
        %2035 = vmatpush2.msra.mxu0 0.0
        %2036 = vmatprep.subr.mxu0 0.0
        %2037 = vmatpush2.msra.mxu0 0.0
        %2038 = vmatprep.subr.mxu0 0.0
        %2039 = vmatpush2.msra.mxu0 0.0
        %2040 = vmatprep.subr.mxu0 0.0
        %2041 = vmatpush2.msra.mxu0 0.0
        %2042 = vmatprep.subr.mxu0 0.0
        %2043 = vmatpush2.msra.mxu0 0.0
        %2044 = vmatprep.subr.mxu0 0.0
        %2045 = vmatpush2.msra.mxu0 0.0
        %2046 = vmatprep.subr.mxu0 0.0
        %2047 = vmatpush2.msra.mxu0 0.0
        %2048 = vmatprep.subr.mxu0 0.0
        %2049 = vmatpush2.msra.mxu0 0.0
        %2050 = vmatprep.subr.mxu0 0.0
        %2051 = vmatpush2.msra.mxu0 0.0
        %2052 = vmatprep.subr.mxu0 0.0
        %2053 = vmatpush2.msra.mxu0 0.0
        %2054 = vmatprep.subr.mxu0 0.0
        %2055 = vmatpush2.msra.mxu0 0.0
        %2056 = vmatprep.subr.mxu0 0.0
        %2057 = vmatpush2.msra.mxu0 0.0
        %2058 = vmatprep.subr.mxu0 0.0
        %2059 = vmatpush2.msra.mxu0 0.0
        %2060 = vmatprep.subr.mxu0 0.0
        %2061 = vmatpush2.msra.mxu0 0.0
        %2062 = vmatprep.subr.mxu0 0.0
        %2063 = vmatpush2.msra.mxu0 0.0
        %2064 = vmatprep.subr.mxu0 0.0
        %2065 = vmatpush2.msra.mxu0 0.0
        %2066 = vmatprep.mubr.f32.mxu0 0.0
        %2067 = vmatmul.mubr.f32.gmra.mxu0 %v1952
        %v2068 = vpop.f32.mrf.mxu0
        %v2069 = vadd.f32 0.0, %v2068
        %v2070 = vpop.f32.mrf.mxu0
        %2071 = vmatprep.mubr.f32.mxu0 0.0
        %2072 = vmatmul.mubr.f32.gmra.mxu0 %v1955
        %v2073 = vpop.f32.mrf.mxu0
        %v2074 = vadd.f32 0.0, %v2073
        %v2075 = vpop.f32.mrf.mxu0
        %2076 = vmatprep.mubr.f32.mxu0 0.0
        %2077 = vmatmul.mubr.f32.gmra.mxu0 %v1958
        %v2078 = vpop.f32.mrf.mxu0
        %v2079 = vadd.f32 0.0, %v2078
        %v2080 = vpop.f32.mrf.mxu0
        %2081 = vmatprep.mubr.f32.mxu0 0.0
        %2082 = vmatmul.mubr.f32.gmra.mxu0 %v1961
        %v2083 = vpop.f32.mrf.mxu0
        %v2084 = vadd.f32 0.0, %v2083
        %v2085 = vpop.f32.mrf.mxu0
        %2086 = vmatprep.mubr.f32.mxu0 0.0
        %2087 = vmatmul.mubr.f32.gmra.mxu0 %v1964
        %v2088 = vpop.f32.mrf.mxu0
        %v2089 = vadd.f32 0.0, %v2088
        %v2090 = vpop.f32.mrf.mxu0
        %2091 = vmatprep.mubr.f32.mxu0 0.0
        %2092 = vmatmul.mubr.f32.gmra.mxu0 %v1967
        %v2093 = vpop.f32.mrf.mxu0
        %v2094 = vadd.f32 0.0, %v2093
        %v2095 = vpop.f32.mrf.mxu0
        %2096 = vmatprep.mubr.f32.mxu0 0.0
        %2097 = vmatmul.mubr.f32.gmra.mxu0 %v1970
        %v2098 = vpop.f32.mrf.mxu0
        %v2099 = vadd.f32 0.0, %v2098
        %v2100 = vpop.f32.mrf.mxu0
        %2101 = vmatprep.mubr.f32.mxu0 0.0
        %2102 = vmatmul.mubr.f32.gmra.mxu0 %v1973
        %v2103 = vpop.f32.mrf.mxu0
        %v2104 = vadd.f32 0.0, %v2103
        %v2105 = vpop.f32.mrf.mxu0
        %2106 = vmatprep.mubr.f32.mxu0 0.0
        %2107 = vmatmul.mubr.f32.gmra.mxu0 %v1976
        %v2108 = vpop.f32.mrf.mxu0
        %v2109 = vadd.f32 0.0, %v2108
        %v2110 = vpop.f32.mrf.mxu0
        %2111 = vmatprep.mubr.f32.mxu0 0.0
        %2112 = vmatmul.mubr.f32.gmra.mxu0 %v1979
        %v2113 = vpop.f32.mrf.mxu0
        %v2114 = vadd.f32 0.0, %v2113
        %v2115 = vpop.f32.mrf.mxu0
        %2116 = vmatprep.mubr.f32.mxu0 0.0
        %2117 = vmatmul.mubr.f32.gmra.mxu0 %v1982
        %v2118 = vpop.f32.mrf.mxu0
        %v2119 = vadd.f32 0.0, %v2118
        %v2120 = vpop.f32.mrf.mxu0
        %2121 = vmatprep.mubr.f32.mxu0 0.0
        %2122 = vmatmul.mubr.f32.gmra.mxu0 %v1985
        %v2123 = vpop.f32.mrf.mxu0
        %v2124 = vadd.f32 0.0, %v2123
        %v2125 = vpop.f32.mrf.mxu0
        %2126 = vmatprep.mubr.f32.mxu0 0.0
        %2127 = vmatmul.mubr.f32.gmra.mxu0 %v1988
        %v2128 = vpop.f32.mrf.mxu0
        %v2129 = vadd.f32 0.0, %v2128
        %v2130 = vpop.f32.mrf.mxu0
        %2131 = vmatprep.mubr.f32.mxu0 0.0
        %2132 = vmatmul.mubr.f32.gmra.mxu0 %v1991
        %v2133 = vpop.f32.mrf.mxu0
        %v2134 = vadd.f32 0.0, %v2133
        %v2135 = vpop.f32.mrf.mxu0
        %2136 = vmatprep.mubr.f32.mxu0 0.0
        %2137 = vmatmul.mubr.f32.gmra.mxu0 %v1994
        %v2138 = vpop.f32.mrf.mxu0
        %v2139 = vadd.f32 0.0, %v2138
        %v2140 = vpop.f32.mrf.mxu0
        %2141 = vmatprep.mubr.f32.mxu0 0.0
        %2142 = vmatmul.mubr.f32.gmra.mxu0 %v1997
        %v2143 = vpop.f32.mrf.mxu0
        %v2144 = vadd.f32 0.0, %v2143
        %v2145 = vpop.f32.mrf.mxu0
        %2146 = vdwg.mxu0
        %v2147 = vadd.f32 %v1917, %v2069
        %v2148 = vadd.f32 %v1918, %v2074
        %v2149 = vadd.f32 %v1919, %v2079
        %v2150 = vadd.f32 %v1920, %v2084
        %v2151 = vadd.f32 %v1921, %v2089
        %v2152 = vadd.f32 %v1922, %v2094
        %v2153 = vadd.f32 %v1923, %v2099
        %v2154 = vadd.f32 %v1924, %v2104
        %v2155 = vadd.f32 %v1925, %v2109
        %v2156 = vadd.f32 %v1926, %v2114
        %v2157 = vadd.f32 %v1927, %v2119
        %v2158 = vadd.f32 %v1928, %v2124
        %v2159 = vadd.f32 %v1929, %v2129
        %v2160 = vadd.f32 %v1930, %v2134
        %v2161 = vadd.f32 %v1931, %v2139
        %v2162 = vadd.f32 %v1932, %v2144
        %s2163 = scalar_lea.vmem [#allocation2], 64
        %v2164 = vld [vmem:[%s2163 + $0x7] sm:$0xff]
        %v2165 = vld [vmem:[%s2163 + $0xf] sm:$0xff]
        %v2166 = vld [vmem:[%s2163 + $0x27] sm:$0xff]
        %v2167 = vld [vmem:[%s2163 + $0x2f] sm:$0xff]
        %v2168 = vld [vmem:[%s2163 + $0x47] sm:$0xff]
        %v2169 = vld [vmem:[%s2163 + $0x4f] sm:$0xff]
        %v2170 = vld [vmem:[%s2163 + $0x67] sm:$0xff]
        %v2171 = vld [vmem:[%s2163 + $0x6f] sm:$0xff]
        %v2172 = vld [vmem:[%s2163 + $0x87] sm:$0xff]
        %v2173 = vld [vmem:[%s2163 + $0x8f] sm:$0xff]
        %v2174 = vld [vmem:[%s2163 + $0xa7] sm:$0xff]
        %v2175 = vld [vmem:[%s2163 + $0xaf] sm:$0xff]
        %v2176 = vld [vmem:[%s2163 + $0xc7] sm:$0xff]
        %v2177 = vld [vmem:[%s2163 + $0xcf] sm:$0xff]
        %v2178 = vld [vmem:[%s2163 + $0xe7] sm:$0xff]
        %v2179 = vld [vmem:[%s2163 + $0xef] sm:$0xff]
        %s2180 = scalar_lea.vmem %s3, 24
        %v2181 = vld [vmem:[%s2180] sm:$0xf]
        %v2183 = vsel %vm331, %v2164, 0
        %v2186 = vsel %vm331, %v2165, 0
        %v2189 = vsel %vm331, %v2166, 0
        %v2192 = vsel %vm331, %v2167, 0
        %v2195 = vsel %vm331, %v2168, 0
        %v2198 = vsel %vm331, %v2169, 0
        %v2201 = vsel %vm331, %v2170, 0
        %v2204 = vsel %vm331, %v2171, 0
        %v2207 = vsel %vm331, %v2172, 0
        %v2210 = vsel %vm331, %v2173, 0
        %v2213 = vsel %vm331, %v2174, 0
        %v2216 = vsel %vm331, %v2175, 0
        %v2219 = vsel %vm331, %v2176, 0
        %v2222 = vsel %vm331, %v2177, 0
        %v2225 = vsel %vm331, %v2178, 0
        %v2228 = vsel %vm331, %v2179, 0
        %v2231 = vsel %vm898, %v2181, 0
        %2233 = vmatprep.subr.mxu0 0.0
        %2234 = vmatpush1.msra.mxu0 0.0
        %2235 = vmatprep.subr.mxu0 0.0
        %2236 = vmatpush1.msra.mxu0 0.0
        %2237 = vmatprep.subr.mxu0 0.0
        %2238 = vmatpush1.msra.mxu0 0.0
        %2239 = vmatprep.subr.mxu0 0.0
        %2240 = vmatpush1.msra.mxu0 0.0
        %2241 = vmatprep.subr.mxu0 0.0
        %2242 = vmatpush1.msra.mxu0 0.0
        %2243 = vmatprep.subr.mxu0 0.0
        %2244 = vmatpush1.msra.mxu0 0.0
        %2245 = vmatprep.subr.mxu0 0.0
        %2246 = vmatpush1.msra.mxu0 0.0
        %2247 = vmatprep.subr.mxu0 0.0
        %2248 = vmatpush1.msra.mxu0 0.0
        %2249 = vmatprep.subr.mxu0 0.0
        %2250 = vmatpush1.msra.mxu0 0.0
        %2251 = vmatprep.subr.mxu0 0.0
        %2252 = vmatpush1.msra.mxu0 0.0
        %2253 = vmatprep.subr.mxu0 0.0
        %2254 = vmatpush1.msra.mxu0 0.0
        %2255 = vmatprep.subr.mxu0 0.0
        %2256 = vmatpush1.msra.mxu0 0.0
        %2257 = vmatprep.subr.mxu0 0.0
        %2258 = vmatpush1.msra.mxu0 0.0
        %2259 = vmatprep.subr.mxu0 0.0
        %2260 = vmatpush1.msra.mxu0 0.0
        %2261 = vmatprep.subr.mxu0 0.0
        %2262 = vmatpush1.msra.mxu0 0.0
        %2263 = vmatprep.subr.mxu0 0.0
        %2264 = vmatpush1.msra.mxu0 %v2231
        %2265 = vmatprep.subr.mxu0 0.0
        %2266 = vmatpush2.msra.mxu0 0.0
        %2267 = vmatprep.subr.mxu0 0.0
        %2268 = vmatpush2.msra.mxu0 0.0
        %2269 = vmatprep.subr.mxu0 0.0
        %2270 = vmatpush2.msra.mxu0 0.0
        %2271 = vmatprep.subr.mxu0 0.0
        %2272 = vmatpush2.msra.mxu0 0.0
        %2273 = vmatprep.subr.mxu0 0.0
        %2274 = vmatpush2.msra.mxu0 0.0
        %2275 = vmatprep.subr.mxu0 0.0
        %2276 = vmatpush2.msra.mxu0 0.0
        %2277 = vmatprep.subr.mxu0 0.0
        %2278 = vmatpush2.msra.mxu0 0.0
        %2279 = vmatprep.subr.mxu0 0.0
        %2280 = vmatpush2.msra.mxu0 0.0
        %2281 = vmatprep.subr.mxu0 0.0
        %2282 = vmatpush2.msra.mxu0 0.0
        %2283 = vmatprep.subr.mxu0 0.0
        %2284 = vmatpush2.msra.mxu0 0.0
        %2285 = vmatprep.subr.mxu0 0.0
        %2286 = vmatpush2.msra.mxu0 0.0
        %2287 = vmatprep.subr.mxu0 0.0
        %2288 = vmatpush2.msra.mxu0 0.0
        %2289 = vmatprep.subr.mxu0 0.0
        %2290 = vmatpush2.msra.mxu0 0.0
        %2291 = vmatprep.subr.mxu0 0.0
        %2292 = vmatpush2.msra.mxu0 0.0
        %2293 = vmatprep.subr.mxu0 0.0
        %2294 = vmatpush2.msra.mxu0 0.0
        %2295 = vmatprep.subr.mxu0 0.0
        %2296 = vmatpush2.msra.mxu0 0.0
        %2297 = vmatprep.mubr.f32.mxu0 0.0
        %2298 = vmatmul.mubr.f32.gmra.mxu0 %v2183
        %v2299 = vpop.f32.mrf.mxu0
        %v2300 = vadd.f32 0.0, %v2299
        %v2301 = vpop.f32.mrf.mxu0
        %2302 = vmatprep.mubr.f32.mxu0 0.0
        %2303 = vmatmul.mubr.f32.gmra.mxu0 %v2186
        %v2304 = vpop.f32.mrf.mxu0
        %v2305 = vadd.f32 0.0, %v2304
        %v2306 = vpop.f32.mrf.mxu0
        %2307 = vmatprep.mubr.f32.mxu0 0.0
        %2308 = vmatmul.mubr.f32.gmra.mxu0 %v2189
        %v2309 = vpop.f32.mrf.mxu0
        %v2310 = vadd.f32 0.0, %v2309
        %v2311 = vpop.f32.mrf.mxu0
        %2312 = vmatprep.mubr.f32.mxu0 0.0
        %2313 = vmatmul.mubr.f32.gmra.mxu0 %v2192
        %v2314 = vpop.f32.mrf.mxu0
        %v2315 = vadd.f32 0.0, %v2314
        %v2316 = vpop.f32.mrf.mxu0
        %2317 = vmatprep.mubr.f32.mxu0 0.0
        %2318 = vmatmul.mubr.f32.gmra.mxu0 %v2195
        %v2319 = vpop.f32.mrf.mxu0
        %v2320 = vadd.f32 0.0, %v2319
        %v2321 = vpop.f32.mrf.mxu0
        %2322 = vmatprep.mubr.f32.mxu0 0.0
        %2323 = vmatmul.mubr.f32.gmra.mxu0 %v2198
        %v2324 = vpop.f32.mrf.mxu0
        %v2325 = vadd.f32 0.0, %v2324
        %v2326 = vpop.f32.mrf.mxu0
        %2327 = vmatprep.mubr.f32.mxu0 0.0
        %2328 = vmatmul.mubr.f32.gmra.mxu0 %v2201
        %v2329 = vpop.f32.mrf.mxu0
        %v2330 = vadd.f32 0.0, %v2329
        %v2331 = vpop.f32.mrf.mxu0
        %2332 = vmatprep.mubr.f32.mxu0 0.0
        %2333 = vmatmul.mubr.f32.gmra.mxu0 %v2204
        %v2334 = vpop.f32.mrf.mxu0
        %v2335 = vadd.f32 0.0, %v2334
        %v2336 = vpop.f32.mrf.mxu0
        %2337 = vmatprep.mubr.f32.mxu0 0.0
        %2338 = vmatmul.mubr.f32.gmra.mxu0 %v2207
        %v2339 = vpop.f32.mrf.mxu0
        %v2340 = vadd.f32 0.0, %v2339
        %v2341 = vpop.f32.mrf.mxu0
        %2342 = vmatprep.mubr.f32.mxu0 0.0
        %2343 = vmatmul.mubr.f32.gmra.mxu0 %v2210
        %v2344 = vpop.f32.mrf.mxu0
        %v2345 = vadd.f32 0.0, %v2344
        %v2346 = vpop.f32.mrf.mxu0
        %2347 = vmatprep.mubr.f32.mxu0 0.0
        %2348 = vmatmul.mubr.f32.gmra.mxu0 %v2213
        %v2349 = vpop.f32.mrf.mxu0
        %v2350 = vadd.f32 0.0, %v2349
        %v2351 = vpop.f32.mrf.mxu0
        %2352 = vmatprep.mubr.f32.mxu0 0.0
        %2353 = vmatmul.mubr.f32.gmra.mxu0 %v2216
        %v2354 = vpop.f32.mrf.mxu0
        %v2355 = vadd.f32 0.0, %v2354
        %v2356 = vpop.f32.mrf.mxu0
        %2357 = vmatprep.mubr.f32.mxu0 0.0
        %2358 = vmatmul.mubr.f32.gmra.mxu0 %v2219
        %v2359 = vpop.f32.mrf.mxu0
        %v2360 = vadd.f32 0.0, %v2359
        %v2361 = vpop.f32.mrf.mxu0
        %2362 = vmatprep.mubr.f32.mxu0 0.0
        %2363 = vmatmul.mubr.f32.gmra.mxu0 %v2222
        %v2364 = vpop.f32.mrf.mxu0
        %v2365 = vadd.f32 0.0, %v2364
        %v2366 = vpop.f32.mrf.mxu0
        %2367 = vmatprep.mubr.f32.mxu0 0.0
        %2368 = vmatmul.mubr.f32.gmra.mxu0 %v2225
        %v2369 = vpop.f32.mrf.mxu0
        %v2370 = vadd.f32 0.0, %v2369
        %v2371 = vpop.f32.mrf.mxu0
        %2372 = vmatprep.mubr.f32.mxu0 0.0
        %2373 = vmatmul.mubr.f32.gmra.mxu0 %v2228
        %v2374 = vpop.f32.mrf.mxu0
        %v2375 = vadd.f32 0.0, %v2374
        %v2376 = vpop.f32.mrf.mxu0
        %2377 = vdwg.mxu0
        %v2378 = vadd.f32 %v2147, %v2300
        %v2379 = vadd.f32 %v2148, %v2305
        %v2380 = vadd.f32 %v2149, %v2310
        %v2381 = vadd.f32 %v2150, %v2315
        %v2382 = vadd.f32 %v2151, %v2320
        %v2383 = vadd.f32 %v2152, %v2325
        %v2384 = vadd.f32 %v2153, %v2330
        %v2385 = vadd.f32 %v2154, %v2335
        %v2386 = vadd.f32 %v2155, %v2340
        %v2387 = vadd.f32 %v2156, %v2345
        %v2388 = vadd.f32 %v2157, %v2350
        %v2389 = vadd.f32 %v2158, %v2355
        %v2390 = vadd.f32 %v2159, %v2360
        %v2391 = vadd.f32 %v2160, %v2365
        %v2392 = vadd.f32 %v2161, %v2370
        %v2393 = vadd.f32 %v2162, %v2375
        %v2394 = vld [vmem:[%s2163 + $0x8] sm:$0xff]
        %v2395 = vld [vmem:[%s2163 + $0x10] sm:$0xff]
        %v2396 = vld [vmem:[%s2163 + $0x28] sm:$0xff]
        %v2397 = vld [vmem:[%s2163 + $0x30] sm:$0xff]
        %v2398 = vld [vmem:[%s2163 + $0x48] sm:$0xff]
        %v2399 = vld [vmem:[%s2163 + $0x50] sm:$0xff]
        %v2400 = vld [vmem:[%s2163 + $0x68] sm:$0xff]
        %v2401 = vld [vmem:[%s2163 + $0x70] sm:$0xff]
        %v2402 = vld [vmem:[%s2163 + $0x88] sm:$0xff]
        %v2403 = vld [vmem:[%s2163 + $0x90] sm:$0xff]
        %v2404 = vld [vmem:[%s2163 + $0xa8] sm:$0xff]
        %v2405 = vld [vmem:[%s2163 + $0xb0] sm:$0xff]
        %v2406 = vld [vmem:[%s2163 + $0xc8] sm:$0xff]
        %v2407 = vld [vmem:[%s2163 + $0xd0] sm:$0xff]
        %v2408 = vld [vmem:[%s2163 + $0xe8] sm:$0xff]
        %v2409 = vld [vmem:[%s2163 + $0xf0] sm:$0xff]
        %s2410 = scalar_lea.vmem %s3, 28
        %v2411 = vld [vmem:[%s2410] sm:$0xf]
        %v2413 = vsel %vm331, %v2394, 0
        %v2416 = vsel %vm331, %v2395, 0
        %v2419 = vsel %vm331, %v2396, 0
        %v2422 = vsel %vm331, %v2397, 0
        %v2425 = vsel %vm331, %v2398, 0
        %v2428 = vsel %vm331, %v2399, 0
        %v2431 = vsel %vm331, %v2400, 0
        %v2434 = vsel %vm331, %v2401, 0
        %v2437 = vsel %vm331, %v2402, 0
        %v2440 = vsel %vm331, %v2403, 0
        %v2443 = vsel %vm331, %v2404, 0
        %v2446 = vsel %vm331, %v2405, 0
        %v2449 = vsel %vm331, %v2406, 0
        %v2452 = vsel %vm331, %v2407, 0
        %v2455 = vsel %vm331, %v2408, 0
        %v2458 = vsel %vm331, %v2409, 0
        %v2461 = vsel %vm898, %v2411, 0
        %2463 = vmatprep.subr.mxu0 0.0
        %2464 = vmatpush1.msra.mxu0 0.0
        %2465 = vmatprep.subr.mxu0 0.0
        %2466 = vmatpush1.msra.mxu0 0.0
        %2467 = vmatprep.subr.mxu0 0.0
        %2468 = vmatpush1.msra.mxu0 0.0
        %2469 = vmatprep.subr.mxu0 0.0
        %2470 = vmatpush1.msra.mxu0 0.0
        %2471 = vmatprep.subr.mxu0 0.0
        %2472 = vmatpush1.msra.mxu0 0.0
        %2473 = vmatprep.subr.mxu0 0.0
        %2474 = vmatpush1.msra.mxu0 0.0
        %2475 = vmatprep.subr.mxu0 0.0
        %2476 = vmatpush1.msra.mxu0 0.0
        %2477 = vmatprep.subr.mxu0 0.0
        %2478 = vmatpush1.msra.mxu0 0.0
        %2479 = vmatprep.subr.mxu0 0.0
        %2480 = vmatpush1.msra.mxu0 0.0
        %2481 = vmatprep.subr.mxu0 0.0
        %2482 = vmatpush1.msra.mxu0 0.0
        %2483 = vmatprep.subr.mxu0 0.0
        %2484 = vmatpush1.msra.mxu0 0.0
        %2485 = vmatprep.subr.mxu0 0.0
        %2486 = vmatpush1.msra.mxu0 0.0
        %2487 = vmatprep.subr.mxu0 0.0
        %2488 = vmatpush1.msra.mxu0 0.0
        %2489 = vmatprep.subr.mxu0 0.0
        %2490 = vmatpush1.msra.mxu0 0.0
        %2491 = vmatprep.subr.mxu0 0.0
        %2492 = vmatpush1.msra.mxu0 0.0
        %2493 = vmatprep.subr.mxu0 0.0
        %2494 = vmatpush1.msra.mxu0 %v2461
        %2495 = vmatprep.subr.mxu0 0.0
        %2496 = vmatpush2.msra.mxu0 0.0
        %2497 = vmatprep.subr.mxu0 0.0
        %2498 = vmatpush2.msra.mxu0 0.0
        %2499 = vmatprep.subr.mxu0 0.0
        %2500 = vmatpush2.msra.mxu0 0.0
        %2501 = vmatprep.subr.mxu0 0.0
        %2502 = vmatpush2.msra.mxu0 0.0
        %2503 = vmatprep.subr.mxu0 0.0
        %2504 = vmatpush2.msra.mxu0 0.0
        %2505 = vmatprep.subr.mxu0 0.0
        %2506 = vmatpush2.msra.mxu0 0.0
        %2507 = vmatprep.subr.mxu0 0.0
        %2508 = vmatpush2.msra.mxu0 0.0
        %2509 = vmatprep.subr.mxu0 0.0
        %2510 = vmatpush2.msra.mxu0 0.0
        %2511 = vmatprep.subr.mxu0 0.0
        %2512 = vmatpush2.msra.mxu0 0.0
        %2513 = vmatprep.subr.mxu0 0.0
        %2514 = vmatpush2.msra.mxu0 0.0
        %2515 = vmatprep.subr.mxu0 0.0
        %2516 = vmatpush2.msra.mxu0 0.0
        %2517 = vmatprep.subr.mxu0 0.0
        %2518 = vmatpush2.msra.mxu0 0.0
        %2519 = vmatprep.subr.mxu0 0.0
        %2520 = vmatpush2.msra.mxu0 0.0
        %2521 = vmatprep.subr.mxu0 0.0
        %2522 = vmatpush2.msra.mxu0 0.0
        %2523 = vmatprep.subr.mxu0 0.0
        %2524 = vmatpush2.msra.mxu0 0.0
        %2525 = vmatprep.subr.mxu0 0.0
        %2526 = vmatpush2.msra.mxu0 0.0
        %2527 = vmatprep.mubr.f32.mxu0 0.0
        %2528 = vmatmul.mubr.f32.gmra.mxu0 %v2413
        %v2529 = vpop.f32.mrf.mxu0
        %v2530 = vadd.f32 0.0, %v2529
        %v2531 = vpop.f32.mrf.mxu0
        %2532 = vmatprep.mubr.f32.mxu0 0.0
        %2533 = vmatmul.mubr.f32.gmra.mxu0 %v2416
        %v2534 = vpop.f32.mrf.mxu0
        %v2535 = vadd.f32 0.0, %v2534
        %v2536 = vpop.f32.mrf.mxu0
        %2537 = vmatprep.mubr.f32.mxu0 0.0
        %2538 = vmatmul.mubr.f32.gmra.mxu0 %v2419
        %v2539 = vpop.f32.mrf.mxu0
        %v2540 = vadd.f32 0.0, %v2539
        %v2541 = vpop.f32.mrf.mxu0
        %2542 = vmatprep.mubr.f32.mxu0 0.0
        %2543 = vmatmul.mubr.f32.gmra.mxu0 %v2422
        %v2544 = vpop.f32.mrf.mxu0
        %v2545 = vadd.f32 0.0, %v2544
        %v2546 = vpop.f32.mrf.mxu0
        %2547 = vmatprep.mubr.f32.mxu0 0.0
        %2548 = vmatmul.mubr.f32.gmra.mxu0 %v2425
        %v2549 = vpop.f32.mrf.mxu0
        %v2550 = vadd.f32 0.0, %v2549
        %v2551 = vpop.f32.mrf.mxu0
        %2552 = vmatprep.mubr.f32.mxu0 0.0
        %2553 = vmatmul.mubr.f32.gmra.mxu0 %v2428
        %v2554 = vpop.f32.mrf.mxu0
        %v2555 = vadd.f32 0.0, %v2554
        %v2556 = vpop.f32.mrf.mxu0
        %2557 = vmatprep.mubr.f32.mxu0 0.0
        %2558 = vmatmul.mubr.f32.gmra.mxu0 %v2431
        %v2559 = vpop.f32.mrf.mxu0
        %v2560 = vadd.f32 0.0, %v2559
        %v2561 = vpop.f32.mrf.mxu0
        %2562 = vmatprep.mubr.f32.mxu0 0.0
        %2563 = vmatmul.mubr.f32.gmra.mxu0 %v2434
        %v2564 = vpop.f32.mrf.mxu0
        %v2565 = vadd.f32 0.0, %v2564
        %v2566 = vpop.f32.mrf.mxu0
        %2567 = vmatprep.mubr.f32.mxu0 0.0
        %2568 = vmatmul.mubr.f32.gmra.mxu0 %v2437
        %v2569 = vpop.f32.mrf.mxu0
        %v2570 = vadd.f32 0.0, %v2569
        %v2571 = vpop.f32.mrf.mxu0
        %2572 = vmatprep.mubr.f32.mxu0 0.0
        %2573 = vmatmul.mubr.f32.gmra.mxu0 %v2440
        %v2574 = vpop.f32.mrf.mxu0
        %v2575 = vadd.f32 0.0, %v2574
        %v2576 = vpop.f32.mrf.mxu0
        %2577 = vmatprep.mubr.f32.mxu0 0.0
        %2578 = vmatmul.mubr.f32.gmra.mxu0 %v2443
        %v2579 = vpop.f32.mrf.mxu0
        %v2580 = vadd.f32 0.0, %v2579
        %v2581 = vpop.f32.mrf.mxu0
        %2582 = vmatprep.mubr.f32.mxu0 0.0
        %2583 = vmatmul.mubr.f32.gmra.mxu0 %v2446
        %v2584 = vpop.f32.mrf.mxu0
        %v2585 = vadd.f32 0.0, %v2584
        %v2586 = vpop.f32.mrf.mxu0
        %2587 = vmatprep.mubr.f32.mxu0 0.0
        %2588 = vmatmul.mubr.f32.gmra.mxu0 %v2449
        %v2589 = vpop.f32.mrf.mxu0
        %v2590 = vadd.f32 0.0, %v2589
        %v2591 = vpop.f32.mrf.mxu0
        %2592 = vmatprep.mubr.f32.mxu0 0.0
        %2593 = vmatmul.mubr.f32.gmra.mxu0 %v2452
        %v2594 = vpop.f32.mrf.mxu0
        %v2595 = vadd.f32 0.0, %v2594
        %v2596 = vpop.f32.mrf.mxu0
        %2597 = vmatprep.mubr.f32.mxu0 0.0
        %2598 = vmatmul.mubr.f32.gmra.mxu0 %v2455
        %v2599 = vpop.f32.mrf.mxu0
        %v2600 = vadd.f32 0.0, %v2599
        %v2601 = vpop.f32.mrf.mxu0
        %2602 = vmatprep.mubr.f32.mxu0 0.0
        %2603 = vmatmul.mubr.f32.gmra.mxu0 %v2458
        %v2604 = vpop.f32.mrf.mxu0
        %v2605 = vadd.f32 0.0, %v2604
        %v2606 = vpop.f32.mrf.mxu0
        %2607 = vdwg.mxu0
        %v2608 = vadd.f32 %v2378, %v2530
        %v2609 = vadd.f32 %v2379, %v2535
        %v2610 = vadd.f32 %v2380, %v2540
        %v2611 = vadd.f32 %v2381, %v2545
        %v2612 = vadd.f32 %v2382, %v2550
        %v2613 = vadd.f32 %v2383, %v2555
        %v2614 = vadd.f32 %v2384, %v2560
        %v2615 = vadd.f32 %v2385, %v2565
        %v2616 = vadd.f32 %v2386, %v2570
        %v2617 = vadd.f32 %v2387, %v2575
        %v2618 = vadd.f32 %v2388, %v2580
        %v2619 = vadd.f32 %v2389, %v2585
        %v2620 = vadd.f32 %v2390, %v2590
        %v2621 = vadd.f32 %v2391, %v2595
        %v2622 = vadd.f32 %v2392, %v2600
        %v2623 = vadd.f32 %v2393, %v2605
        %v2624 = vld [vmem:[%s2163 + $0x9] sm:$0xff]
        %v2625 = vld [vmem:[%s2163 + $0x11] sm:$0xff]
        %v2626 = vld [vmem:[%s2163 + $0x29] sm:$0xff]
        %v2627 = vld [vmem:[%s2163 + $0x31] sm:$0xff]
        %v2628 = vld [vmem:[%s2163 + $0x49] sm:$0xff]
        %v2629 = vld [vmem:[%s2163 + $0x51] sm:$0xff]
        %v2630 = vld [vmem:[%s2163 + $0x69] sm:$0xff]
        %v2631 = vld [vmem:[%s2163 + $0x71] sm:$0xff]
        %v2632 = vld [vmem:[%s2163 + $0x89] sm:$0xff]
        %v2633 = vld [vmem:[%s2163 + $0x91] sm:$0xff]
        %v2634 = vld [vmem:[%s2163 + $0xa9] sm:$0xff]
        %v2635 = vld [vmem:[%s2163 + $0xb1] sm:$0xff]
        %v2636 = vld [vmem:[%s2163 + $0xc9] sm:$0xff]
        %v2637 = vld [vmem:[%s2163 + $0xd1] sm:$0xff]
        %v2638 = vld [vmem:[%s2163 + $0xe9] sm:$0xff]
        %v2639 = vld [vmem:[%s2163 + $0xf1] sm:$0xff]
        %s2640 = scalar_lea.vmem %s3, 32
        %v2641 = vld [vmem:[%s2640] sm:$0xf]
        %v2643 = vsel %vm331, %v2624, 0
        %v2646 = vsel %vm331, %v2625, 0
        %v2649 = vsel %vm331, %v2626, 0
        %v2652 = vsel %vm331, %v2627, 0
        %v2655 = vsel %vm331, %v2628, 0
        %v2658 = vsel %vm331, %v2629, 0
        %v2661 = vsel %vm331, %v2630, 0
        %v2664 = vsel %vm331, %v2631, 0
        %v2667 = vsel %vm331, %v2632, 0
        %v2670 = vsel %vm331, %v2633, 0
        %v2673 = vsel %vm331, %v2634, 0
        %v2676 = vsel %vm331, %v2635, 0
        %v2679 = vsel %vm331, %v2636, 0
        %v2682 = vsel %vm331, %v2637, 0
        %v2685 = vsel %vm331, %v2638, 0
        %v2688 = vsel %vm331, %v2639, 0
        %v2691 = vsel %vm898, %v2641, 0
        %2693 = vmatprep.subr.mxu0 0.0
        %2694 = vmatpush1.msra.mxu0 0.0
        %2695 = vmatprep.subr.mxu0 0.0
        %2696 = vmatpush1.msra.mxu0 0.0
        %2697 = vmatprep.subr.mxu0 0.0
        %2698 = vmatpush1.msra.mxu0 0.0
        %2699 = vmatprep.subr.mxu0 0.0
        %2700 = vmatpush1.msra.mxu0 0.0
        %2701 = vmatprep.subr.mxu0 0.0
        %2702 = vmatpush1.msra.mxu0 0.0
        %2703 = vmatprep.subr.mxu0 0.0
        %2704 = vmatpush1.msra.mxu0 0.0
        %2705 = vmatprep.subr.mxu0 0.0
        %2706 = vmatpush1.msra.mxu0 0.0
        %2707 = vmatprep.subr.mxu0 0.0
        %2708 = vmatpush1.msra.mxu0 0.0
        %2709 = vmatprep.subr.mxu0 0.0
        %2710 = vmatpush1.msra.mxu0 0.0
        %2711 = vmatprep.subr.mxu0 0.0
        %2712 = vmatpush1.msra.mxu0 0.0
        %2713 = vmatprep.subr.mxu0 0.0
        %2714 = vmatpush1.msra.mxu0 0.0
        %2715 = vmatprep.subr.mxu0 0.0
        %2716 = vmatpush1.msra.mxu0 0.0
        %2717 = vmatprep.subr.mxu0 0.0
        %2718 = vmatpush1.msra.mxu0 0.0
        %2719 = vmatprep.subr.mxu0 0.0
        %2720 = vmatpush1.msra.mxu0 0.0
        %2721 = vmatprep.subr.mxu0 0.0
        %2722 = vmatpush1.msra.mxu0 0.0
        %2723 = vmatprep.subr.mxu0 0.0
        %2724 = vmatpush1.msra.mxu0 %v2691
        %2725 = vmatprep.subr.mxu0 0.0
        %2726 = vmatpush2.msra.mxu0 0.0
        %2727 = vmatprep.subr.mxu0 0.0
        %2728 = vmatpush2.msra.mxu0 0.0
        %2729 = vmatprep.subr.mxu0 0.0
        %2730 = vmatpush2.msra.mxu0 0.0
        %2731 = vmatprep.subr.mxu0 0.0
        %2732 = vmatpush2.msra.mxu0 0.0
        %2733 = vmatprep.subr.mxu0 0.0
        %2734 = vmatpush2.msra.mxu0 0.0
        %2735 = vmatprep.subr.mxu0 0.0
        %2736 = vmatpush2.msra.mxu0 0.0
        %2737 = vmatprep.subr.mxu0 0.0
        %2738 = vmatpush2.msra.mxu0 0.0
        %2739 = vmatprep.subr.mxu0 0.0
        %2740 = vmatpush2.msra.mxu0 0.0
        %2741 = vmatprep.subr.mxu0 0.0
        %2742 = vmatpush2.msra.mxu0 0.0
        %2743 = vmatprep.subr.mxu0 0.0
        %2744 = vmatpush2.msra.mxu0 0.0
        %2745 = vmatprep.subr.mxu0 0.0
        %2746 = vmatpush2.msra.mxu0 0.0
        %2747 = vmatprep.subr.mxu0 0.0
        %2748 = vmatpush2.msra.mxu0 0.0
        %2749 = vmatprep.subr.mxu0 0.0
        %2750 = vmatpush2.msra.mxu0 0.0
        %2751 = vmatprep.subr.mxu0 0.0
        %2752 = vmatpush2.msra.mxu0 0.0
        %2753 = vmatprep.subr.mxu0 0.0
        %2754 = vmatpush2.msra.mxu0 0.0
        %2755 = vmatprep.subr.mxu0 0.0
        %2756 = vmatpush2.msra.mxu0 0.0
        %2757 = vmatprep.mubr.f32.mxu0 0.0
        %2758 = vmatmul.mubr.f32.gmra.mxu0 %v2643
        %v2759 = vpop.f32.mrf.mxu0
        %v2760 = vadd.f32 0.0, %v2759
        %v2761 = vpop.f32.mrf.mxu0
        %2762 = vmatprep.mubr.f32.mxu0 0.0
        %2763 = vmatmul.mubr.f32.gmra.mxu0 %v2646
        %v2764 = vpop.f32.mrf.mxu0
        %v2765 = vadd.f32 0.0, %v2764
        %v2766 = vpop.f32.mrf.mxu0
        %2767 = vmatprep.mubr.f32.mxu0 0.0
        %2768 = vmatmul.mubr.f32.gmra.mxu0 %v2649
        %v2769 = vpop.f32.mrf.mxu0
        %v2770 = vadd.f32 0.0, %v2769
        %v2771 = vpop.f32.mrf.mxu0
        %2772 = vmatprep.mubr.f32.mxu0 0.0
        %2773 = vmatmul.mubr.f32.gmra.mxu0 %v2652
        %v2774 = vpop.f32.mrf.mxu0
        %v2775 = vadd.f32 0.0, %v2774
        %v2776 = vpop.f32.mrf.mxu0
        %2777 = vmatprep.mubr.f32.mxu0 0.0
        %2778 = vmatmul.mubr.f32.gmra.mxu0 %v2655
        %v2779 = vpop.f32.mrf.mxu0
        %v2780 = vadd.f32 0.0, %v2779
        %v2781 = vpop.f32.mrf.mxu0
        %2782 = vmatprep.mubr.f32.mxu0 0.0
        %2783 = vmatmul.mubr.f32.gmra.mxu0 %v2658
        %v2784 = vpop.f32.mrf.mxu0
        %v2785 = vadd.f32 0.0, %v2784
        %v2786 = vpop.f32.mrf.mxu0
        %2787 = vmatprep.mubr.f32.mxu0 0.0
        %2788 = vmatmul.mubr.f32.gmra.mxu0 %v2661
        %v2789 = vpop.f32.mrf.mxu0
        %v2790 = vadd.f32 0.0, %v2789
        %v2791 = vpop.f32.mrf.mxu0
        %2792 = vmatprep.mubr.f32.mxu0 0.0
        %2793 = vmatmul.mubr.f32.gmra.mxu0 %v2664
        %v2794 = vpop.f32.mrf.mxu0
        %v2795 = vadd.f32 0.0, %v2794
        %v2796 = vpop.f32.mrf.mxu0
        %2797 = vmatprep.mubr.f32.mxu0 0.0
        %2798 = vmatmul.mubr.f32.gmra.mxu0 %v2667
        %v2799 = vpop.f32.mrf.mxu0
        %v2800 = vadd.f32 0.0, %v2799
        %v2801 = vpop.f32.mrf.mxu0
        %2802 = vmatprep.mubr.f32.mxu0 0.0
        %2803 = vmatmul.mubr.f32.gmra.mxu0 %v2670
        %v2804 = vpop.f32.mrf.mxu0
        %v2805 = vadd.f32 0.0, %v2804
        %v2806 = vpop.f32.mrf.mxu0
        %2807 = vmatprep.mubr.f32.mxu0 0.0
        %2808 = vmatmul.mubr.f32.gmra.mxu0 %v2673
        %v2809 = vpop.f32.mrf.mxu0
        %v2810 = vadd.f32 0.0, %v2809
        %v2811 = vpop.f32.mrf.mxu0
        %2812 = vmatprep.mubr.f32.mxu0 0.0
        %2813 = vmatmul.mubr.f32.gmra.mxu0 %v2676
        %v2814 = vpop.f32.mrf.mxu0
        %v2815 = vadd.f32 0.0, %v2814
        %v2816 = vpop.f32.mrf.mxu0
        %2817 = vmatprep.mubr.f32.mxu0 0.0
        %2818 = vmatmul.mubr.f32.gmra.mxu0 %v2679
        %v2819 = vpop.f32.mrf.mxu0
        %v2820 = vadd.f32 0.0, %v2819
        %v2821 = vpop.f32.mrf.mxu0
        %2822 = vmatprep.mubr.f32.mxu0 0.0
        %2823 = vmatmul.mubr.f32.gmra.mxu0 %v2682
        %v2824 = vpop.f32.mrf.mxu0
        %v2825 = vadd.f32 0.0, %v2824
        %v2826 = vpop.f32.mrf.mxu0
        %2827 = vmatprep.mubr.f32.mxu0 0.0
        %2828 = vmatmul.mubr.f32.gmra.mxu0 %v2685
        %v2829 = vpop.f32.mrf.mxu0
        %v2830 = vadd.f32 0.0, %v2829
        %v2831 = vpop.f32.mrf.mxu0
        %2832 = vmatprep.mubr.f32.mxu0 0.0
        %2833 = vmatmul.mubr.f32.gmra.mxu0 %v2688
        %v2834 = vpop.f32.mrf.mxu0
        %v2835 = vadd.f32 0.0, %v2834
        %v2836 = vpop.f32.mrf.mxu0
        %2837 = vdwg.mxu0
        %v2838 = vadd.f32 %v2608, %v2760
        %v2839 = vadd.f32 %v2609, %v2765
        %v2840 = vadd.f32 %v2610, %v2770
        %v2841 = vadd.f32 %v2611, %v2775
        %v2842 = vadd.f32 %v2612, %v2780
        %v2843 = vadd.f32 %v2613, %v2785
        %v2844 = vadd.f32 %v2614, %v2790
        %v2845 = vadd.f32 %v2615, %v2795
        %v2846 = vadd.f32 %v2616, %v2800
        %v2847 = vadd.f32 %v2617, %v2805
        %v2848 = vadd.f32 %v2618, %v2810
        %v2849 = vadd.f32 %v2619, %v2815
        %v2850 = vadd.f32 %v2620, %v2820
        %v2851 = vadd.f32 %v2621, %v2825
        %v2852 = vadd.f32 %v2622, %v2830
        %v2853 = vadd.f32 %v2623, %v2835
        %v2854 = vld [vmem:[%s4] sm:$0x1]
        %v2856 = vlaneseq
        %v2857 = vshrl.u32 %v2856, 7
        %v2858 = vsub.s32 0, %v2857
        %v2859 = vrot.slane %v2854, %v2858
        %v2861 = vadd.f32 %v2838, %v2859
        %v2862 = vadd.f32 %v2839, %v2859
        %v2863 = vadd.f32 %v2840, %v2859
        %v2864 = vadd.f32 %v2841, %v2859
        %v2865 = vadd.f32 %v2842, %v2859
        %v2866 = vadd.f32 %v2843, %v2859
        %v2867 = vadd.f32 %v2844, %v2859
        %v2868 = vadd.f32 %v2845, %v2859
        %v2869 = vadd.f32 %v2846, %v2859
        %v2870 = vadd.f32 %v2847, %v2859
        %v2871 = vadd.f32 %v2848, %v2859
        %v2872 = vadd.f32 %v2849, %v2859
        %v2873 = vadd.f32 %v2850, %v2859
        %v2874 = vadd.f32 %v2851, %v2859
        %v2875 = vadd.f32 %v2852, %v2859
        %v2876 = vadd.f32 %v2853, %v2859
        %v2877 = vmax.f32 %v2861, 0.0
        %v2878 = vmax.f32 %v2862, 0.0
        %v2879 = vmax.f32 %v2863, 0.0
        %v2880 = vmax.f32 %v2864, 0.0
        %v2881 = vmax.f32 %v2865, 0.0
        %v2882 = vmax.f32 %v2866, 0.0
        %v2883 = vmax.f32 %v2867, 0.0
        %v2884 = vmax.f32 %v2868, 0.0
        %v2885 = vmax.f32 %v2869, 0.0
        %v2886 = vmax.f32 %v2870, 0.0
        %v2887 = vmax.f32 %v2871, 0.0
        %v2888 = vmax.f32 %v2872, 0.0
        %v2889 = vmax.f32 %v2873, 0.0
        %v2890 = vmax.f32 %v2874, 0.0
        %v2891 = vmax.f32 %v2875, 0.0
        %v2892 = vmax.f32 %v2876, 0.0
        %v2893 = vld [vmem:[%s5] sm:$0xf]
        %v2894 = vld [vmem:[%s6] sm:$0x1]
        %v2896 = vlaneseq
        %v2897 = vshrl.u32 %v2896, 7
        %v2898 = vsub.s32 0, %v2897
        %v2899 = vrot.slane %v2894, %v2898
        %v2902 = vsel %vm331, %v2877, 0
        %v2905 = vsel %vm331, %v2878, 0
        %v2908 = vsel %vm331, %v2879, 0
        %v2911 = vsel %vm331, %v2880, 0
        %v2914 = vsel %vm331, %v2881, 0
        %v2917 = vsel %vm331, %v2882, 0
        %v2920 = vsel %vm331, %v2883, 0
        %v2923 = vsel %vm331, %v2884, 0
        %v2926 = vsel %vm331, %v2885, 0
        %v2929 = vsel %vm331, %v2886, 0
        %v2932 = vsel %vm331, %v2887, 0
        %v2935 = vsel %vm331, %v2888, 0
        %v2938 = vsel %vm331, %v2889, 0
        %v2941 = vsel %vm331, %v2890, 0
        %v2944 = vsel %vm331, %v2891, 0
        %v2947 = vsel %vm331, %v2892, 0
        %v2950 = vsel %vm898, %v2893, 0
        %2952 = vmatprep.subr.mxu0 0.0
        %2953 = vmatpush1.msra.mxu0 0.0
        %2954 = vmatprep.subr.mxu0 0.0
        %2955 = vmatpush1.msra.mxu0 0.0
        %2956 = vmatprep.subr.mxu0 0.0
        %2957 = vmatpush1.msra.mxu0 0.0
        %2958 = vmatprep.subr.mxu0 0.0
        %2959 = vmatpush1.msra.mxu0 0.0
        %2960 = vmatprep.subr.mxu0 0.0
        %2961 = vmatpush1.msra.mxu0 0.0
        %2962 = vmatprep.subr.mxu0 0.0
        %2963 = vmatpush1.msra.mxu0 0.0
        %2964 = vmatprep.subr.mxu0 0.0
        %2965 = vmatpush1.msra.mxu0 0.0
        %2966 = vmatprep.subr.mxu0 0.0
        %2967 = vmatpush1.msra.mxu0 0.0
        %2968 = vmatprep.subr.mxu0 0.0
        %2969 = vmatpush1.msra.mxu0 0.0
        %2970 = vmatprep.subr.mxu0 0.0
        %2971 = vmatpush1.msra.mxu0 0.0
        %2972 = vmatprep.subr.mxu0 0.0
        %2973 = vmatpush1.msra.mxu0 0.0
        %2974 = vmatprep.subr.mxu0 0.0
        %2975 = vmatpush1.msra.mxu0 0.0
        %2976 = vmatprep.subr.mxu0 0.0
        %2977 = vmatpush1.msra.mxu0 0.0
        %2978 = vmatprep.subr.mxu0 0.0
        %2979 = vmatpush1.msra.mxu0 0.0
        %2980 = vmatprep.subr.mxu0 0.0
        %2981 = vmatpush1.msra.mxu0 0.0
        %2982 = vmatprep.subr.mxu0 0.0
        %2983 = vmatpush1.msra.mxu0 %v2950
        %2984 = vmatprep.subr.mxu0 0.0
        %2985 = vmatpush2.msra.mxu0 0.0
        %2986 = vmatprep.subr.mxu0 0.0
        %2987 = vmatpush2.msra.mxu0 0.0
        %2988 = vmatprep.subr.mxu0 0.0
        %2989 = vmatpush2.msra.mxu0 0.0
        %2990 = vmatprep.subr.mxu0 0.0
        %2991 = vmatpush2.msra.mxu0 0.0
        %2992 = vmatprep.subr.mxu0 0.0
        %2993 = vmatpush2.msra.mxu0 0.0
        %2994 = vmatprep.subr.mxu0 0.0
        %2995 = vmatpush2.msra.mxu0 0.0
        %2996 = vmatprep.subr.mxu0 0.0
        %2997 = vmatpush2.msra.mxu0 0.0
        %2998 = vmatprep.subr.mxu0 0.0
        %2999 = vmatpush2.msra.mxu0 0.0
        %3000 = vmatprep.subr.mxu0 0.0
        %3001 = vmatpush2.msra.mxu0 0.0
        %3002 = vmatprep.subr.mxu0 0.0
        %3003 = vmatpush2.msra.mxu0 0.0
        %3004 = vmatprep.subr.mxu0 0.0
        %3005 = vmatpush2.msra.mxu0 0.0
        %3006 = vmatprep.subr.mxu0 0.0
        %3007 = vmatpush2.msra.mxu0 0.0
        %3008 = vmatprep.subr.mxu0 0.0
        %3009 = vmatpush2.msra.mxu0 0.0
        %3010 = vmatprep.subr.mxu0 0.0
        %3011 = vmatpush2.msra.mxu0 0.0
        %3012 = vmatprep.subr.mxu0 0.0
        %3013 = vmatpush2.msra.mxu0 0.0
        %3014 = vmatprep.subr.mxu0 0.0
        %3015 = vmatpush2.msra.mxu0 0.0
        %3016 = vmatprep.mubr.f32.mxu0 0.0
        %3017 = vmatmul.mubr.f32.gmra.mxu0 %v2902
        %v3018 = vpop.f32.mrf.mxu0
        %v3019 = vadd.f32 %v2899, %v3018
        %v3020 = vpop.f32.mrf.mxu0
        %3021 = vmatprep.mubr.f32.mxu0 0.0
        %3022 = vmatmul.mubr.f32.gmra.mxu0 %v2905
        %v3023 = vpop.f32.mrf.mxu0
        %v3024 = vadd.f32 %v2899, %v3023
        %v3025 = vpop.f32.mrf.mxu0
        %3026 = vmatprep.mubr.f32.mxu0 0.0
        %3027 = vmatmul.mubr.f32.gmra.mxu0 %v2908
        %v3028 = vpop.f32.mrf.mxu0
        %v3029 = vadd.f32 %v2899, %v3028
        %v3030 = vpop.f32.mrf.mxu0
        %3031 = vmatprep.mubr.f32.mxu0 0.0
        %3032 = vmatmul.mubr.f32.gmra.mxu0 %v2911
        %v3033 = vpop.f32.mrf.mxu0
        %v3034 = vadd.f32 %v2899, %v3033
        %v3035 = vpop.f32.mrf.mxu0
        %3036 = vmatprep.mubr.f32.mxu0 0.0
        %3037 = vmatmul.mubr.f32.gmra.mxu0 %v2914
        %v3038 = vpop.f32.mrf.mxu0
        %v3039 = vadd.f32 %v2899, %v3038
        %v3040 = vpop.f32.mrf.mxu0
        %3041 = vmatprep.mubr.f32.mxu0 0.0
        %3042 = vmatmul.mubr.f32.gmra.mxu0 %v2917
        %v3043 = vpop.f32.mrf.mxu0
        %v3044 = vadd.f32 %v2899, %v3043
        %v3045 = vpop.f32.mrf.mxu0
        %3046 = vmatprep.mubr.f32.mxu0 0.0
        %3047 = vmatmul.mubr.f32.gmra.mxu0 %v2920
        %v3048 = vpop.f32.mrf.mxu0
        %v3049 = vadd.f32 %v2899, %v3048
        %v3050 = vpop.f32.mrf.mxu0
        %3051 = vmatprep.mubr.f32.mxu0 0.0
        %3052 = vmatmul.mubr.f32.gmra.mxu0 %v2923
        %v3053 = vpop.f32.mrf.mxu0
        %v3054 = vadd.f32 %v2899, %v3053
        %v3055 = vpop.f32.mrf.mxu0
        %3056 = vmatprep.mubr.f32.mxu0 0.0
        %3057 = vmatmul.mubr.f32.gmra.mxu0 %v2926
        %v3058 = vpop.f32.mrf.mxu0
        %v3059 = vadd.f32 %v2899, %v3058
        %v3060 = vpop.f32.mrf.mxu0
        %3061 = vmatprep.mubr.f32.mxu0 0.0
        %3062 = vmatmul.mubr.f32.gmra.mxu0 %v2929
        %v3063 = vpop.f32.mrf.mxu0
        %v3064 = vadd.f32 %v2899, %v3063
        %v3065 = vpop.f32.mrf.mxu0
        %3066 = vmatprep.mubr.f32.mxu0 0.0
        %3067 = vmatmul.mubr.f32.gmra.mxu0 %v2932
        %v3068 = vpop.f32.mrf.mxu0
        %v3069 = vadd.f32 %v2899, %v3068
        %v3070 = vpop.f32.mrf.mxu0
        %3071 = vmatprep.mubr.f32.mxu0 0.0
        %3072 = vmatmul.mubr.f32.gmra.mxu0 %v2935
        %v3073 = vpop.f32.mrf.mxu0
        %v3074 = vadd.f32 %v2899, %v3073
        %v3075 = vpop.f32.mrf.mxu0
        %3076 = vmatprep.mubr.f32.mxu0 0.0
        %3077 = vmatmul.mubr.f32.gmra.mxu0 %v2938
        %v3078 = vpop.f32.mrf.mxu0
        %v3079 = vadd.f32 %v2899, %v3078
        %v3080 = vpop.f32.mrf.mxu0
        %3081 = vmatprep.mubr.f32.mxu0 0.0
        %3082 = vmatmul.mubr.f32.gmra.mxu0 %v2941
        %v3083 = vpop.f32.mrf.mxu0
        %v3084 = vadd.f32 %v2899, %v3083
        %v3085 = vpop.f32.mrf.mxu0
        %3086 = vmatprep.mubr.f32.mxu0 0.0
        %3087 = vmatmul.mubr.f32.gmra.mxu0 %v2944
        %v3088 = vpop.f32.mrf.mxu0
        %v3089 = vadd.f32 %v2899, %v3088
        %v3090 = vpop.f32.mrf.mxu0
        %3091 = vmatprep.mubr.f32.mxu0 0.0
        %3092 = vmatmul.mubr.f32.gmra.mxu0 %v2947
        %v3093 = vpop.f32.mrf.mxu0
        %v3094 = vadd.f32 %v2899, %v3093
        %v3095 = vpop.f32.mrf.mxu0
        %3096 = vdwg.mxu0
        %v3097 = vadd.f32 %v3019, %v315
        %v3098 = vadd.f32 %v3024, %v316
        %v3099 = vadd.f32 %v3029, %v317
        %v3100 = vadd.f32 %v3034, %v318
        %v3101 = vadd.f32 %v3039, %v319
        %v3102 = vadd.f32 %v3044, %v320
        %v3103 = vadd.f32 %v3049, %v321
        %v3104 = vadd.f32 %v3054, %v322
        %v3105 = vadd.f32 %v3059, %v323
        %v3106 = vadd.f32 %v3064, %v324
        %v3107 = vadd.f32 %v3069, %v325
        %v3108 = vadd.f32 %v3074, %v326
        %v3109 = vadd.f32 %v3079, %v327
        %v3110 = vadd.f32 %v3084, %v328
        %v3111 = vadd.f32 %v3089, %v329
        %v3112 = vadd.f32 %v3094, %v330
        %v3113 = vmax.f32 %v3097, 0.0
        %v3114 = vmax.f32 %v3098, 0.0
        %v3115 = vmax.f32 %v3099, 0.0
        %v3116 = vmax.f32 %v3100, 0.0
        %v3117 = vmax.f32 %v3101, 0.0
        %v3118 = vmax.f32 %v3102, 0.0
        %v3119 = vmax.f32 %v3103, 0.0
        %v3120 = vmax.f32 %v3104, 0.0
        %v3121 = vmax.f32 %v3105, 0.0
        %v3122 = vmax.f32 %v3106, 0.0
        %v3123 = vmax.f32 %v3107, 0.0
        %v3124 = vmax.f32 %v3108, 0.0
        %v3125 = vmax.f32 %v3109, 0.0
        %v3126 = vmax.f32 %v3110, 0.0
        %v3127 = vmax.f32 %v3111, 0.0
        %v3128 = vmax.f32 %v3112, 0.0
        %3129 = vst.msk [vmem:[%s310] sm:$0xff] %vm381, %v3113
        %3130 = vst.msk [vmem:[%s310 + $0x8] sm:$0xff] %vm381, %v3114
        %3131 = vst.msk [vmem:[%s310 + $0x10] sm:$0xff] %vm381, %v3115
        %3132 = vst.msk [vmem:[%s310 + $0x18] sm:$0xff] %vm381, %v3116
        %3133 = vst.msk [vmem:[%s310 + $0x20] sm:$0xff] %vm381, %v3117
        %3134 = vst.msk [vmem:[%s310 + $0x28] sm:$0xff] %vm381, %v3118
        %3135 = vst.msk [vmem:[%s310 + $0x30] sm:$0xff] %vm381, %v3119
        %3136 = vst.msk [vmem:[%s310 + $0x38] sm:$0xff] %vm381, %v3120
        %3137 = vst.msk [vmem:[%s310 + $0x40] sm:$0xff] %vm381, %v3121
        %3138 = vst.msk [vmem:[%s310 + $0x48] sm:$0xff] %vm381, %v3122
        %3139 = vst.msk [vmem:[%s310 + $0x50] sm:$0xff] %vm381, %v3123
        %3140 = vst.msk [vmem:[%s310 + $0x58] sm:$0xff] %vm381, %v3124
        %3141 = vst.msk [vmem:[%s310 + $0x60] sm:$0xff] %vm381, %v3125
        %3142 = vst.msk [vmem:[%s310 + $0x68] sm:$0xff] %vm381, %v3126
        %3143 = vst.msk [vmem:[%s310 + $0x70] sm:$0xff] %vm381, %v3127
        %3144 = vst.msk [vmem:[%s310 + $0x78] sm:$0xff] %vm381, %v3128
        %s3145 = sand.u32 %s198, 1
        %s3146 = scalar_lea.sflag [#allocation5], %s3145
        %s3147 = sand.u32 %s198, 1
        %s3148 = smul.addr %s3147, 128
        %s3149 = scalar_lea.vmem [#allocation6], %s3148
        // Predicated region
        $region61: #{tpu_custom_call.1} parent=47 // pred_check
          %p3150 = pneg %p208
        $region62: #{tpu_custom_call.1} parent=47 // pred_check_branch
          %3152 = sbr.rel (%p3150) target = $region64
        $region63: #{tpu_custom_call.1} parent=47 // pred_region
          %s3153 = smul.u32 8, %s29
          %s3155 = ssub.s32 2048, 2048
          %3156 = vsyncadd %s3146, %s3155
          %s3157 = smul.addr %s3153, 2
          %s3158 = smul.addr %s28, 32
          %s3159 = sadd.s32 %s3157, %s3158
          %s3160 = smul.addr %s3159, 128
          %s3161 = scalar_lea.hbm %s7, %s3160
          %s3162 = sshll.u32 %s3149, 4
          %s3163 = int_to_ptr.vmem [resolvable:$true] %s3162
          %3168 = dma.vmem_to_hbm [thread:$0]  %s3163, 2048, %s3161, %s3146, 128, 128, 8
        $region64: #{tpu_custom_call.1} parent=47 // pred_fallthru
          _
      $region48: #{tpu_custom_call.1} parent=5 // pred_fallthru
        _
      %p3169 = scmp.le.s32.totalorder 2, %s19
      // Predicated region
      $region65: #{tpu_custom_call.1} parent=5 // pred_check
        %p3170 = pneg %p3169
      $region66: #{tpu_custom_call.1} parent=5 // pred_check_branch
        %3172 = sbr.rel (%p3170) target = $region68
      $region67: #{tpu_custom_call.1} parent=5 // pred_region
        %s3173 = ssub.s32 %s19, 2
        // Predicated region
        $region69: #{tpu_custom_call.1} parent=67 // pred_check
          %p3174 = pneg %p214
        $region70: #{tpu_custom_call.1} parent=67 // pred_check_branch
          %3176 = sbr.rel (%p3174) target = $region72
        $region71: #{tpu_custom_call.1} parent=67 // pred_region
          %s3177 = sand.u32 %s199, 1
          %s3178 = scalar_lea.sflag [#allocation5], %s3177
          %s3179 = sand.u32 %s199, 1
          %s3180 = smul.addr %s3179, 128
          %s3181 = scalar_lea.vmem [#allocation6], %s3180
          %3182 = dma.done %s3178, 2048
        $region72: #{tpu_custom_call.1} parent=67 // pred_fallthru
          _
      $region68: #{tpu_custom_call.1} parent=5 // pred_fallthru
        _
    $region6: #{tpu_custom_call.1} parent=1 // loop_footer
      %s23 = sadd.s32 1, %s19
    $region7: #{tpu_custom_call.1} parent=1 // loop_footer_branch
      %18 = sbr.rel target = $region3
    $region8: #{tpu_custom_call.1} parent=1 // loop_exit
      _
    %3183 = vsyncpa [#allocation4], 1
    %s3184 = scalar_lea.sflag [#allocation4], 1
    %3185 = vsyncpa %s3184, 1
    %3186 = vsyncpa [#allocation5], 1
    %s3187 = scalar_lea.sflag [#allocation5], 1
    %3188 = vsyncpa %s3187, 1

</llo_original>
